<compile_context>
chip_gen: v6e
topology: v6e:2x2x1
jax: 0.10.0
libtpu: 0.0.40
codegen_flags: <defaults>
</compile_context>

<pallas_src>
import functools

import jax
import jax.numpy as jnp
from jax.experimental import pallas as pl
from jax.experimental.pallas import tpu as pltpu

EPS = 1e-5


def _resnet_block_kernel(x_ref, wv1_ref, g1_ref, b1_ref, wv2_ref, g2_ref, b2_ref,
                         out_ref, *, C, N, H, W):
  """Whole ResNet block on one stacked (N*C, H*W) slab.

  x_ref   : (N*C, H*W) f32 VMEM  -- pure reshape of NCHW (rows n-major/c-minor)
  wv*_ref : (9, C, N*C, 1) f32 VMEM -- per-row channel-mix weights, index
            [tap, d, r, 0] = w[tap, ci=(r%C + d)%C, co=r%C]
  g*/b*   : (N*C, 1) f32 VMEM    -- per-row BatchNorm gamma / beta (g[r % C])
  out_ref : (N*C, H*W)           -- same stacked layout as the input
  """
  R = N * C
  HW = H * W
  inv_m = 1.0 / float(N * HW)

  # ---- per-tap validity masks, built once and shared by both convs ----------
  pos = jax.lax.broadcasted_iota(jnp.int32, (1, HW), 1)
  col = pos % W
  taps = []
  for dy in range(3):
    for dx in range(3):
      off = (dy - 1) * W + (dx - 1)
      valid = ((pos + off >= 0) & (pos + off < HW)
               & (col + (dx - 1) >= 0) & (col + (dx - 1) < W))
      taps.append((off, valid))

  # Row masks for the same-batch channel roll (d >= 1): True where (r%C)+d < C.
  row_ch = jax.lax.broadcasted_iota(jnp.int32, (R, 1), 0) % C
  rowmask = [None] + [(row_ch + d) < C for d in range(1, C)]

  def group_roll(t, d):
    # result[r = n*C + c] = t[n*C + (c + d) % C]: channel rotation inside each
    # batch group, built from two full sublane rolls + one select.
    if d == 0:
      return t
    hi = pltpu.roll(t, shift=(R - d) % R, axis=0)   # rows with c + d <  C
    lo = pltpu.roll(t, shift=(C - d) % R, axis=0)   # rows with c + d >= C
    return jnp.where(rowmask[d], hi, lo)

  def conv3x3(xs, wv_ref):
    # xs: (R, HW) f32 stacked slab.  Pure VPU/XLU broadcast-MACs; the MXU is
    # intentionally unused at C=4 (tiny contraction dims).
    accs = [None, None, None]                       # 3 partial accumulators
    for k, (off, valid) in enumerate(taps):
      if off == 0:
        t = xs                                      # center tap: no shift/mask
      else:
        t = jnp.where(valid, pltpu.roll(xs, shift=(-off) % HW, axis=1), 0.0)
      terms = [wv_ref[k, d] * group_roll(t, d) for d in range(C)]
      while len(terms) > 1:                         # balanced-tree reduction
        nxt = [terms[i] + terms[i + 1] for i in range(0, len(terms) - 1, 2)]
        if len(terms) % 2:
          nxt.append(terms[-1])
        terms = nxt
      slot = k % 3
      accs[slot] = terms[0] if accs[slot] is None else accs[slot] + terms[0]
    total = accs[0]
    for a in accs[1:]:
      if a is not None:
        total = total + a
    return total

  def batch_norm(y, g_ref, b_ref):
    # Training-mode BatchNorm2d: biased per-channel batch stats over (N, H, W).
    stacked = jnp.concatenate([y, y * y], axis=0)       # (2R, HW)
    rsum = jnp.sum(stacked, axis=1, keepdims=True)      # one fused lane-reduce
    s0, q0 = rsum[:R], rsum[R:]
    s, q = s0, q0
    for j in range(1, N):                               # fold a channel's batches
      s = s + pltpu.roll(s0, shift=(j * C) % R, axis=0)
      q = q + pltpu.roll(q0, shift=(j * C) % R, axis=0)
    mean = s * inv_m
    var = jnp.maximum(q * inv_m - mean * mean, 0.0)     # guard fp cancellation
    scale = g_ref[...] * jax.lax.rsqrt(var + EPS)       # rsqrt on the EUP
    bias = b_ref[...] - mean * scale
    return y * scale + bias                             # folded affine: mul + add

  x0 = x_ref[...].astype(jnp.float32)                   # conv1 input
  y = conv3x3(x0, wv1_ref)                              # conv1
  y = jnp.maximum(batch_norm(y, g1_ref, b1_ref), 0.0)   # bn1 + relu
  z = conv3x3(y, wv2_ref)                               # conv2
  z = batch_norm(z, g2_ref, b2_ref)                     # bn2
  # Residual: re-read x from VMEM (cheap vld) instead of keeping it live above.
  out = jnp.maximum(z + x_ref[...].astype(jnp.float32), 0.0)
  out_ref[...] = out.astype(out_ref.dtype)              # single lane-dense store


def _mix_table(w_oihw, C, N):
  """Per-row channel-mix weights, shape (9, C, N*C, 1), f32.

  table[k, d, r, 0] = w[k, ci=(r%C + d)%C, co=r%C] with k = ky*3 + kx.
  Tiny (weights-sized) wrapper-side computation, fused under jit.
  """
  R = N * C
  w = jnp.transpose(w_oihw.astype(jnp.float32), (2, 3, 1, 0)).reshape(9, C, C)
  co = jnp.arange(R, dtype=jnp.int32) % C
  cols = []
  for d in range(C):
    ci = (co + d) % C
    cols.append(w[:, ci, co])              # (9, R)
  return jnp.stack(cols, axis=1)[..., None]  # (9, C, R, 1)


@jax.jit
def resnet_block_encoder(x_nchw, w1_oihw, g1, b1, w2_oihw, g2, b2):
  """NCHW input -> NCHW output.  Conv weights in PyTorch OIHW layout."""
  N, C, H, W = x_nchw.shape
  assert w1_oihw.shape == (C, C, 3, 3) and w2_oihw.shape == (C, C, 3, 3), (
      "identity residual (downsample=None) requires Cin == Cout, stride=1")
  R, HW = N * C, H * W

  x_flat = x_nchw.reshape(R, HW)           # pure reshape: no wrapper transpose

  wv1 = _mix_table(w1_oihw, C, N)
  wv2 = _mix_table(w2_oihw, C, N)
  g1r = jnp.tile(g1.astype(jnp.float32), N).reshape(R, 1)
  b1r = jnp.tile(b1.astype(jnp.float32), N).reshape(R, 1)
  g2r = jnp.tile(g2.astype(jnp.float32), N).reshape(R, 1)
  b2r = jnp.tile(b2.astype(jnp.float32), N).reshape(R, 1)

  vmem = pl.BlockSpec(memory_space=pltpu.MemorySpace.VMEM)
  out_flat = pl.pallas_call(
      functools.partial(_resnet_block_kernel, C=C, N=N, H=H, W=W),
      out_shape=jax.ShapeDtypeStruct((R, HW), x_nchw.dtype),
      in_specs=[vmem, vmem, vmem, vmem, vmem, vmem, vmem],
      out_specs=vmem,
  )(x_flat, wv1, g1r, b1r, wv2, g2r, b2r)

  return out_flat.reshape(N, C, H, W)      # pure reshape back to NCHW


# ---------------------------- pure-JAX reference ----------------------------
def _reference(x_nchw, w1_oihw, g1, b1, w2_oihw, g2, b2):
  x = jnp.transpose(x_nchw, (0, 2, 3, 1))
  dn = ('NHWC', 'HWIO', 'NHWC')

  def conv(x, w_oihw):
    w = jnp.transpose(w_oihw, (2, 3, 1, 0))
    return jax.lax.conv_general_dilated(x, w, (1, 1), ((1, 1), (1, 1)),
                                        dimension_numbers=dn)

  def bn(y, g, b):
    mean = jnp.mean(y, axis=(0, 1, 2), keepdims=True)
    var = jnp.mean((y - mean) ** 2, axis=(0, 1, 2), keepdims=True)
    return (y - mean) * jax.lax.rsqrt(var + EPS) * g + b

  out = jax.nn.relu(bn(conv(x, w1_oihw), g1, b1))
  out = bn(conv(out, w2_oihw), g2, b2)
  out = jax.nn.relu(out + x)
  return jnp.transpose(out, (0, 3, 1, 2))


if __name__ == "__main__":
  N, C, H, W = 2, 4, 16, 16          # in_channels == out_channels, stride=1
  key = jax.random.PRNGKey(0)
  k_x, k_w1, k_w2 = jax.random.split(key, 3)

  x = jax.random.normal(k_x, (N, C, H, W), jnp.float32)

  # Conv weights in PyTorch OIHW layout, kaiming-uniform-like bound 1/sqrt(fan_in).
  fan_in = C * 9
  bound = 1.0 / (fan_in ** 0.5)
  w1 = jax.random.uniform(k_w1, (C, C, 3, 3), jnp.float32, -bound, bound)
  w2 = jax.random.uniform(k_w2, (C, C, 3, 3), jnp.float32, -bound, bound)
  # BatchNorm affine params at PyTorch default init.
  g1 = jnp.ones((C,), jnp.float32); b1 = jnp.zeros((C,), jnp.float32)
  g2 = jnp.ones((C,), jnp.float32); b2 = jnp.zeros((C,), jnp.float32)

  out = jax.block_until_ready(resnet_block_encoder(x, w1, g1, b1, w2, g2, b2))
  ref = jax.block_until_ready(_reference(x, w1, g1, b1, w2, g2, b2))

  assert out.shape == (N, C, H, W)
  assert jnp.allclose(out, ref, atol=1e-4, rtol=1e-4), "mismatch vs reference"
  print("KERNEL_OK")
</pallas_src>

<mosaic_0001>
module attributes {stable_mosaic.version = 11 : i64} {
  func.func @_resnet_block_kernel(%arg0: memref<8x256xf32, #tpu.memory_space<vmem>>, %arg1: memref<9x4x8x1xf32, #tpu.memory_space<vmem>>, %arg2: memref<8x1xf32, #tpu.memory_space<vmem>>, %arg3: memref<8x1xf32, #tpu.memory_space<vmem>>, %arg4: memref<9x4x8x1xf32, #tpu.memory_space<vmem>>, %arg5: memref<8x1xf32, #tpu.memory_space<vmem>>, %arg6: memref<8x1xf32, #tpu.memory_space<vmem>>, %arg7: memref<8x256xf32, #tpu.memory_space<vmem>>) attributes {dimension_semantics = [], scalar_prefetch = 0 : i64, scratch_operands = 0 : i64, tpu.core_type = #tpu.core_type<tc>} {
    %0 = tpu.iota {dimensions = array<i32: 1>} : vector<1x256xi32>
    %c16_i32 = arith.constant 16 : i32
    %c0_i32 = arith.constant 0 : i32
    %1 = arith.cmpi eq, %c16_i32, %c0_i32 : i32
    %c1_i32 = arith.constant 1 : i32
    %2 = arith.select %1, %c1_i32, %c16_i32 : i32
    %3 = vector.broadcast %2 : i32 to vector<1x256xi32>
    %4 = arith.remsi %0, %3 : vector<1x256xi32>
    %c0_i32_0 = arith.constant 0 : i32
    %5 = vector.broadcast %c0_i32_0 : i32 to vector<1x256xi32>
    %6 = arith.cmpi ne, %4, %5 : vector<1x256xi32>
    %c0_i32_1 = arith.constant 0 : i32
    %7 = vector.broadcast %c0_i32_1 : i32 to vector<1x256xi32>
    %8 = arith.cmpi slt, %4, %7 : vector<1x256xi32>
    %c0_i32_2 = arith.constant 0 : i32
    %9 = arith.cmpi slt, %2, %c0_i32_2 : i32
    %10 = vector.broadcast %9 : i1 to vector<1x256xi1>
    %11 = vector.broadcast %10 : vector<1x256xi1> to vector<1x256xi1>
    %12 = arith.xori %8, %11 : vector<1x256xi1>
    %13 = arith.andi %12, %6 : vector<1x256xi1>
    %14 = vector.broadcast %2 : i32 to vector<1x256xi32>
    %15 = arith.addi %4, %14 : vector<1x256xi32>
    %16 = arith.select %13, %15, %4 : vector<1x256xi1>, vector<1x256xi32>
    %c-17_i32 = arith.constant -17 : i32
    %17 = vector.broadcast %c-17_i32 : i32 to vector<1x256xi32>
    %18 = arith.addi %0, %17 : vector<1x256xi32>
    %c0_i32_3 = arith.constant 0 : i32
    %19 = vector.broadcast %c0_i32_3 : i32 to vector<1x256xi32>
    %20 = arith.cmpi sge, %18, %19 : vector<1x256xi32>
    %c-17_i32_4 = arith.constant -17 : i32
    %21 = vector.broadcast %c-17_i32_4 : i32 to vector<1x256xi32>
    %22 = arith.addi %0, %21 : vector<1x256xi32>
    %c256_i32 = arith.constant 256 : i32
    %23 = vector.broadcast %c256_i32 : i32 to vector<1x256xi32>
    %24 = arith.cmpi slt, %22, %23 : vector<1x256xi32>
    %25 = arith.andi %20, %24 : vector<1x256xi1>
    %c-1_i32 = arith.constant -1 : i32
    %26 = vector.broadcast %c-1_i32 : i32 to vector<1x256xi32>
    %27 = arith.addi %16, %26 : vector<1x256xi32>
    %c0_i32_5 = arith.constant 0 : i32
    %28 = vector.broadcast %c0_i32_5 : i32 to vector<1x256xi32>
    %29 = arith.cmpi sge, %27, %28 : vector<1x256xi32>
    %30 = arith.andi %25, %29 : vector<1x256xi1>
    %c-1_i32_6 = arith.constant -1 : i32
    %31 = vector.broadcast %c-1_i32_6 : i32 to vector<1x256xi32>
    %32 = arith.addi %16, %31 : vector<1x256xi32>
    %c16_i32_7 = arith.constant 16 : i32
    %33 = vector.broadcast %c16_i32_7 : i32 to vector<1x256xi32>
    %34 = arith.cmpi slt, %32, %33 : vector<1x256xi32>
    %35 = arith.andi %30, %34 : vector<1x256xi1>
    %c-16_i32 = arith.constant -16 : i32
    %36 = vector.broadcast %c-16_i32 : i32 to vector<1x256xi32>
    %37 = arith.addi %0, %36 : vector<1x256xi32>
    %c0_i32_8 = arith.constant 0 : i32
    %38 = vector.broadcast %c0_i32_8 : i32 to vector<1x256xi32>
    %39 = arith.cmpi sge, %37, %38 : vector<1x256xi32>
    %c-16_i32_9 = arith.constant -16 : i32
    %40 = vector.broadcast %c-16_i32_9 : i32 to vector<1x256xi32>
    %41 = arith.addi %0, %40 : vector<1x256xi32>
    %c256_i32_10 = arith.constant 256 : i32
    %42 = vector.broadcast %c256_i32_10 : i32 to vector<1x256xi32>
    %43 = arith.cmpi slt, %41, %42 : vector<1x256xi32>
    %44 = arith.andi %39, %43 : vector<1x256xi1>
    %c0_i32_11 = arith.constant 0 : i32
    %45 = vector.broadcast %c0_i32_11 : i32 to vector<1x256xi32>
    %46 = arith.addi %16, %45 : vector<1x256xi32>
    %c0_i32_12 = arith.constant 0 : i32
    %47 = vector.broadcast %c0_i32_12 : i32 to vector<1x256xi32>
    %48 = arith.cmpi sge, %46, %47 : vector<1x256xi32>
    %49 = arith.andi %44, %48 : vector<1x256xi1>
    %c0_i32_13 = arith.constant 0 : i32
    %50 = vector.broadcast %c0_i32_13 : i32 to vector<1x256xi32>
    %51 = arith.addi %16, %50 : vector<1x256xi32>
    %c16_i32_14 = arith.constant 16 : i32
    %52 = vector.broadcast %c16_i32_14 : i32 to vector<1x256xi32>
    %53 = arith.cmpi slt, %51, %52 : vector<1x256xi32>
    %54 = arith.andi %49, %53 : vector<1x256xi1>
    %c-15_i32 = arith.constant -15 : i32
    %55 = vector.broadcast %c-15_i32 : i32 to vector<1x256xi32>
    %56 = arith.addi %0, %55 : vector<1x256xi32>
    %c0_i32_15 = arith.constant 0 : i32
    %57 = vector.broadcast %c0_i32_15 : i32 to vector<1x256xi32>
    %58 = arith.cmpi sge, %56, %57 : vector<1x256xi32>
    %c-15_i32_16 = arith.constant -15 : i32
    %59 = vector.broadcast %c-15_i32_16 : i32 to vector<1x256xi32>
    %60 = arith.addi %0, %59 : vector<1x256xi32>
    %c256_i32_17 = arith.constant 256 : i32
    %61 = vector.broadcast %c256_i32_17 : i32 to vector<1x256xi32>
    %62 = arith.cmpi slt, %60, %61 : vector<1x256xi32>
    %63 = arith.andi %58, %62 : vector<1x256xi1>
    %c1_i32_18 = arith.constant 1 : i32
    %64 = vector.broadcast %c1_i32_18 : i32 to vector<1x256xi32>
    %65 = arith.addi %16, %64 : vector<1x256xi32>
    %c0_i32_19 = arith.constant 0 : i32
    %66 = vector.broadcast %c0_i32_19 : i32 to vector<1x256xi32>
    %67 = arith.cmpi sge, %65, %66 : vector<1x256xi32>
    %68 = arith.andi %63, %67 : vector<1x256xi1>
    %c1_i32_20 = arith.constant 1 : i32
    %69 = vector.broadcast %c1_i32_20 : i32 to vector<1x256xi32>
    %70 = arith.addi %16, %69 : vector<1x256xi32>
    %c16_i32_21 = arith.constant 16 : i32
    %71 = vector.broadcast %c16_i32_21 : i32 to vector<1x256xi32>
    %72 = arith.cmpi slt, %70, %71 : vector<1x256xi32>
    %73 = arith.andi %68, %72 : vector<1x256xi1>
    %c-1_i32_22 = arith.constant -1 : i32
    %74 = vector.broadcast %c-1_i32_22 : i32 to vector<1x256xi32>
    %75 = arith.addi %0, %74 : vector<1x256xi32>
    %c0_i32_23 = arith.constant 0 : i32
    %76 = vector.broadcast %c0_i32_23 : i32 to vector<1x256xi32>
    %77 = arith.cmpi sge, %75, %76 : vector<1x256xi32>
    %c-1_i32_24 = arith.constant -1 : i32
    %78 = vector.broadcast %c-1_i32_24 : i32 to vector<1x256xi32>
    %79 = arith.addi %0, %78 : vector<1x256xi32>
    %c256_i32_25 = arith.constant 256 : i32
    %80 = vector.broadcast %c256_i32_25 : i32 to vector<1x256xi32>
    %81 = arith.cmpi slt, %79, %80 : vector<1x256xi32>
    %82 = arith.andi %77, %81 : vector<1x256xi1>
    %c-1_i32_26 = arith.constant -1 : i32
    %83 = vector.broadcast %c-1_i32_26 : i32 to vector<1x256xi32>
    %84 = arith.addi %16, %83 : vector<1x256xi32>
    %c0_i32_27 = arith.constant 0 : i32
    %85 = vector.broadcast %c0_i32_27 : i32 to vector<1x256xi32>
    %86 = arith.cmpi sge, %84, %85 : vector<1x256xi32>
    %87 = arith.andi %82, %86 : vector<1x256xi1>
    %c-1_i32_28 = arith.constant -1 : i32
    %88 = vector.broadcast %c-1_i32_28 : i32 to vector<1x256xi32>
    %89 = arith.addi %16, %88 : vector<1x256xi32>
    %c16_i32_29 = arith.constant 16 : i32
    %90 = vector.broadcast %c16_i32_29 : i32 to vector<1x256xi32>
    %91 = arith.cmpi slt, %89, %90 : vector<1x256xi32>
    %92 = arith.andi %87, %91 : vector<1x256xi1>
    %c1_i32_30 = arith.constant 1 : i32
    %93 = vector.broadcast %c1_i32_30 : i32 to vector<1x256xi32>
    %94 = arith.addi %0, %93 : vector<1x256xi32>
    %c0_i32_31 = arith.constant 0 : i32
    %95 = vector.broadcast %c0_i32_31 : i32 to vector<1x256xi32>
    %96 = arith.cmpi sge, %94, %95 : vector<1x256xi32>
    %c1_i32_32 = arith.constant 1 : i32
    %97 = vector.broadcast %c1_i32_32 : i32 to vector<1x256xi32>
    %98 = arith.addi %0, %97 : vector<1x256xi32>
    %c256_i32_33 = arith.constant 256 : i32
    %99 = vector.broadcast %c256_i32_33 : i32 to vector<1x256xi32>
    %100 = arith.cmpi slt, %98, %99 : vector<1x256xi32>
    %101 = arith.andi %96, %100 : vector<1x256xi1>
    %c1_i32_34 = arith.constant 1 : i32
    %102 = vector.broadcast %c1_i32_34 : i32 to vector<1x256xi32>
    %103 = arith.addi %16, %102 : vector<1x256xi32>
    %c0_i32_35 = arith.constant 0 : i32
    %104 = vector.broadcast %c0_i32_35 : i32 to vector<1x256xi32>
    %105 = arith.cmpi sge, %103, %104 : vector<1x256xi32>
    %106 = arith.andi %101, %105 : vector<1x256xi1>
    %c1_i32_36 = arith.constant 1 : i32
    %107 = vector.broadcast %c1_i32_36 : i32 to vector<1x256xi32>
    %108 = arith.addi %16, %107 : vector<1x256xi32>
    %c16_i32_37 = arith.constant 16 : i32
    %109 = vector.broadcast %c16_i32_37 : i32 to vector<1x256xi32>
    %110 = arith.cmpi slt, %108, %109 : vector<1x256xi32>
    %111 = arith.andi %106, %110 : vector<1x256xi1>
    %c15_i32 = arith.constant 15 : i32
    %112 = vector.broadcast %c15_i32 : i32 to vector<1x256xi32>
    %113 = arith.addi %0, %112 : vector<1x256xi32>
    %c0_i32_38 = arith.constant 0 : i32
    %114 = vector.broadcast %c0_i32_38 : i32 to vector<1x256xi32>
    %115 = arith.cmpi sge, %113, %114 : vector<1x256xi32>
    %c15_i32_39 = arith.constant 15 : i32
    %116 = vector.broadcast %c15_i32_39 : i32 to vector<1x256xi32>
    %117 = arith.addi %0, %116 : vector<1x256xi32>
    %c256_i32_40 = arith.constant 256 : i32
    %118 = vector.broadcast %c256_i32_40 : i32 to vector<1x256xi32>
    %119 = arith.cmpi slt, %117, %118 : vector<1x256xi32>
    %120 = arith.andi %115, %119 : vector<1x256xi1>
    %c-1_i32_41 = arith.constant -1 : i32
    %121 = vector.broadcast %c-1_i32_41 : i32 to vector<1x256xi32>
    %122 = arith.addi %16, %121 : vector<1x256xi32>
    %c0_i32_42 = arith.constant 0 : i32
    %123 = vector.broadcast %c0_i32_42 : i32 to vector<1x256xi32>
    %124 = arith.cmpi sge, %122, %123 : vector<1x256xi32>
    %125 = arith.andi %120, %124 : vector<1x256xi1>
    %c-1_i32_43 = arith.constant -1 : i32
    %126 = vector.broadcast %c-1_i32_43 : i32 to vector<1x256xi32>
    %127 = arith.addi %16, %126 : vector<1x256xi32>
    %c16_i32_44 = arith.constant 16 : i32
    %128 = vector.broadcast %c16_i32_44 : i32 to vector<1x256xi32>
    %129 = arith.cmpi slt, %127, %128 : vector<1x256xi32>
    %130 = arith.andi %125, %129 : vector<1x256xi1>
    %c16_i32_45 = arith.constant 16 : i32
    %131 = vector.broadcast %c16_i32_45 : i32 to vector<1x256xi32>
    %132 = arith.addi %0, %131 : vector<1x256xi32>
    %c0_i32_46 = arith.constant 0 : i32
    %133 = vector.broadcast %c0_i32_46 : i32 to vector<1x256xi32>
    %134 = arith.cmpi sge, %132, %133 : vector<1x256xi32>
    %c16_i32_47 = arith.constant 16 : i32
    %135 = vector.broadcast %c16_i32_47 : i32 to vector<1x256xi32>
    %136 = arith.addi %0, %135 : vector<1x256xi32>
    %c256_i32_48 = arith.constant 256 : i32
    %137 = vector.broadcast %c256_i32_48 : i32 to vector<1x256xi32>
    %138 = arith.cmpi slt, %136, %137 : vector<1x256xi32>
    %139 = arith.andi %134, %138 : vector<1x256xi1>
    %c0_i32_49 = arith.constant 0 : i32
    %140 = vector.broadcast %c0_i32_49 : i32 to vector<1x256xi32>
    %141 = arith.addi %16, %140 : vector<1x256xi32>
    %c0_i32_50 = arith.constant 0 : i32
    %142 = vector.broadcast %c0_i32_50 : i32 to vector<1x256xi32>
    %143 = arith.cmpi sge, %141, %142 : vector<1x256xi32>
    %144 = arith.andi %139, %143 : vector<1x256xi1>
    %c0_i32_51 = arith.constant 0 : i32
    %145 = vector.broadcast %c0_i32_51 : i32 to vector<1x256xi32>
    %146 = arith.addi %16, %145 : vector<1x256xi32>
    %c16_i32_52 = arith.constant 16 : i32
    %147 = vector.broadcast %c16_i32_52 : i32 to vector<1x256xi32>
    %148 = arith.cmpi slt, %146, %147 : vector<1x256xi32>
    %149 = arith.andi %144, %148 : vector<1x256xi1>
    %c17_i32 = arith.constant 17 : i32
    %150 = vector.broadcast %c17_i32 : i32 to vector<1x256xi32>
    %151 = arith.addi %0, %150 : vector<1x256xi32>
    %c0_i32_53 = arith.constant 0 : i32
    %152 = vector.broadcast %c0_i32_53 : i32 to vector<1x256xi32>
    %153 = arith.cmpi sge, %151, %152 : vector<1x256xi32>
    %c17_i32_54 = arith.constant 17 : i32
    %154 = vector.broadcast %c17_i32_54 : i32 to vector<1x256xi32>
    %155 = arith.addi %0, %154 : vector<1x256xi32>
    %c256_i32_55 = arith.constant 256 : i32
    %156 = vector.broadcast %c256_i32_55 : i32 to vector<1x256xi32>
    %157 = arith.cmpi slt, %155, %156 : vector<1x256xi32>
    %158 = arith.andi %153, %157 : vector<1x256xi1>
    %c1_i32_56 = arith.constant 1 : i32
    %159 = vector.broadcast %c1_i32_56 : i32 to vector<1x256xi32>
    %160 = arith.addi %16, %159 : vector<1x256xi32>
    %c0_i32_57 = arith.constant 0 : i32
    %161 = vector.broadcast %c0_i32_57 : i32 to vector<1x256xi32>
    %162 = arith.cmpi sge, %160, %161 : vector<1x256xi32>
    %163 = arith.andi %158, %162 : vector<1x256xi1>
    %c1_i32_58 = arith.constant 1 : i32
    %164 = vector.broadcast %c1_i32_58 : i32 to vector<1x256xi32>
    %165 = arith.addi %16, %164 : vector<1x256xi32>
    %c16_i32_59 = arith.constant 16 : i32
    %166 = vector.broadcast %c16_i32_59 : i32 to vector<1x256xi32>
    %167 = arith.cmpi slt, %165, %166 : vector<1x256xi32>
    %168 = arith.andi %163, %167 : vector<1x256xi1>
    %169 = tpu.iota {dimensions = array<i32: 0>} : vector<8x1xi32>
    %c4_i32 = arith.constant 4 : i32
    %c0_i32_60 = arith.constant 0 : i32
    %170 = arith.cmpi eq, %c4_i32, %c0_i32_60 : i32
    %c1_i32_61 = arith.constant 1 : i32
    %171 = arith.select %170, %c1_i32_61, %c4_i32 : i32
    %172 = vector.broadcast %171 : i32 to vector<8x1xi32>
    %173 = arith.remsi %169, %172 : vector<8x1xi32>
    %c0_i32_62 = arith.constant 0 : i32
    %174 = vector.broadcast %c0_i32_62 : i32 to vector<8x1xi32>
    %175 = arith.cmpi ne, %173, %174 : vector<8x1xi32>
    %c0_i32_63 = arith.constant 0 : i32
    %176 = vector.broadcast %c0_i32_63 : i32 to vector<8x1xi32>
    %177 = arith.cmpi slt, %173, %176 : vector<8x1xi32>
    %c0_i32_64 = arith.constant 0 : i32
    %178 = arith.cmpi slt, %171, %c0_i32_64 : i32
    %179 = vector.broadcast %178 : i1 to vector<8x1xi1>
    %180 = vector.broadcast %179 : vector<8x1xi1> to vector<8x1xi1>
    %181 = arith.xori %177, %180 : vector<8x1xi1>
    %182 = arith.andi %181, %175 : vector<8x1xi1>
    %183 = vector.broadcast %171 : i32 to vector<8x1xi32>
    %184 = arith.addi %173, %183 : vector<8x1xi32>
    %185 = arith.select %182, %184, %173 : vector<8x1xi1>, vector<8x1xi32>
    %c1_i32_65 = arith.constant 1 : i32
    %186 = vector.broadcast %c1_i32_65 : i32 to vector<8x1xi32>
    %187 = arith.addi %185, %186 : vector<8x1xi32>
    %c4_i32_66 = arith.constant 4 : i32
    %188 = vector.broadcast %c4_i32_66 : i32 to vector<8x1xi32>
    %189 = arith.cmpi slt, %187, %188 : vector<8x1xi32>
    %c2_i32 = arith.constant 2 : i32
    %190 = vector.broadcast %c2_i32 : i32 to vector<8x1xi32>
    %191 = arith.addi %185, %190 : vector<8x1xi32>
    %c4_i32_67 = arith.constant 4 : i32
    %192 = vector.broadcast %c4_i32_67 : i32 to vector<8x1xi32>
    %193 = arith.cmpi slt, %191, %192 : vector<8x1xi32>
    %c3_i32 = arith.constant 3 : i32
    %194 = vector.broadcast %c3_i32 : i32 to vector<8x1xi32>
    %195 = arith.addi %185, %194 : vector<8x1xi32>
    %c4_i32_68 = arith.constant 4 : i32
    %196 = vector.broadcast %c4_i32_68 : i32 to vector<8x1xi32>
    %197 = arith.cmpi slt, %195, %196 : vector<8x1xi32>
    %c0 = arith.constant 0 : index
    %c0_69 = arith.constant 0 : index
    %198 = vector.load %arg0[%c0, %c0_69] : memref<8x256xf32, #tpu.memory_space<vmem>>, vector<8x256xf32>
    %c17_i32_70 = arith.constant 17 : i32
    %199 = tpu.dynamic_rotate %198 by %c17_i32_70 dim 1 : vector<8x256xf32>, i32 -> vector<8x256xf32>
    %cst = arith.constant 0.000000e+00 : f32
    %200 = vector.shape_cast %35 : vector<1x256xi1> to vector<1x256xi1>
    %201 = vector.broadcast %200 : vector<1x256xi1> to vector<8x256xi1>
    %202 = vector.broadcast %cst : f32 to vector<8x256xf32>
    %203 = arith.select %201, %199, %202 : vector<8x256xi1>, vector<8x256xf32>
    %c0_71 = arith.constant 0 : index
    %c0_72 = arith.constant 0 : index
    %c0_73 = arith.constant 0 : index
    %c0_74 = arith.constant 0 : index
    %204 = vector.load %arg1[%c0_71, %c0_72, %c0_73, %c0_74] : memref<9x4x8x1xf32, #tpu.memory_space<vmem>>, vector<1x1x8x1xf32>
    %205 = vector.shape_cast %204 : vector<1x1x8x1xf32> to vector<8x1xf32>
    %206 = vector.broadcast %205 : vector<8x1xf32> to vector<8x256xf32>
    %207 = arith.mulf %206, %203 : vector<8x256xf32>
    %c0_75 = arith.constant 0 : index
    %c1 = arith.constant 1 : index
    %c0_76 = arith.constant 0 : index
    %c0_77 = arith.constant 0 : index
    %208 = vector.load %arg1[%c0_75, %c1, %c0_76, %c0_77] : memref<9x4x8x1xf32, #tpu.memory_space<vmem>>, vector<1x1x8x1xf32>
    %209 = vector.shape_cast %208 : vector<1x1x8x1xf32> to vector<8x1xf32>
    %c7_i32 = arith.constant 7 : i32
    %210 = tpu.dynamic_rotate %203 by %c7_i32 dim 0 : vector<8x256xf32>, i32 -> vector<8x256xf32>
    %c3_i32_78 = arith.constant 3 : i32
    %211 = tpu.dynamic_rotate %203 by %c3_i32_78 dim 0 : vector<8x256xf32>, i32 -> vector<8x256xf32>
    %212 = vector.shape_cast %189 : vector<8x1xi1> to vector<8x1xi1>
    %213 = vector.broadcast %212 : vector<8x1xi1> to vector<8x256xi1>
    %214 = arith.select %213, %210, %211 : vector<8x256xi1>, vector<8x256xf32>
    %215 = vector.broadcast %209 : vector<8x1xf32> to vector<8x256xf32>
    %216 = arith.mulf %215, %214 : vector<8x256xf32>
    %c0_79 = arith.constant 0 : index
    %c2 = arith.constant 2 : index
    %c0_80 = arith.constant 0 : index
    %c0_81 = arith.constant 0 : index
    %217 = vector.load %arg1[%c0_79, %c2, %c0_80, %c0_81] : memref<9x4x8x1xf32, #tpu.memory_space<vmem>>, vector<1x1x8x1xf32>
    %218 = vector.shape_cast %217 : vector<1x1x8x1xf32> to vector<8x1xf32>
    %c6_i32 = arith.constant 6 : i32
    %219 = tpu.dynamic_rotate %203 by %c6_i32 dim 0 : vector<8x256xf32>, i32 -> vector<8x256xf32>
    %c2_i32_82 = arith.constant 2 : i32
    %220 = tpu.dynamic_rotate %203 by %c2_i32_82 dim 0 : vector<8x256xf32>, i32 -> vector<8x256xf32>
    %221 = vector.shape_cast %193 : vector<8x1xi1> to vector<8x1xi1>
    %222 = vector.broadcast %221 : vector<8x1xi1> to vector<8x256xi1>
    %223 = arith.select %222, %219, %220 : vector<8x256xi1>, vector<8x256xf32>
    %224 = vector.broadcast %218 : vector<8x1xf32> to vector<8x256xf32>
    %225 = arith.mulf %224, %223 : vector<8x256xf32>
    %c0_83 = arith.constant 0 : index
    %c3 = arith.constant 3 : index
    %c0_84 = arith.constant 0 : index
    %c0_85 = arith.constant 0 : index
    %226 = vector.load %arg1[%c0_83, %c3, %c0_84, %c0_85] : memref<9x4x8x1xf32, #tpu.memory_space<vmem>>, vector<1x1x8x1xf32>
    %227 = vector.shape_cast %226 : vector<1x1x8x1xf32> to vector<8x1xf32>
    %c5_i32 = arith.constant 5 : i32
    %228 = tpu.dynamic_rotate %203 by %c5_i32 dim 0 : vector<8x256xf32>, i32 -> vector<8x256xf32>
    %c1_i32_86 = arith.constant 1 : i32
    %229 = tpu.dynamic_rotate %203 by %c1_i32_86 dim 0 : vector<8x256xf32>, i32 -> vector<8x256xf32>
    %230 = vector.shape_cast %197 : vector<8x1xi1> to vector<8x1xi1>
    %231 = vector.broadcast %230 : vector<8x1xi1> to vector<8x256xi1>
    %232 = arith.select %231, %228, %229 : vector<8x256xi1>, vector<8x256xf32>
    %233 = vector.broadcast %227 : vector<8x1xf32> to vector<8x256xf32>
    %234 = arith.mulf %233, %232 : vector<8x256xf32>
    %235 = arith.addf %207, %216 : vector<8x256xf32>
    %236 = arith.addf %225, %234 : vector<8x256xf32>
    %237 = arith.addf %235, %236 : vector<8x256xf32>
    %c16_i32_87 = arith.constant 16 : i32
    %238 = tpu.dynamic_rotate %198 by %c16_i32_87 dim 1 : vector<8x256xf32>, i32 -> vector<8x256xf32>
    %cst_88 = arith.constant 0.000000e+00 : f32
    %239 = vector.shape_cast %54 : vector<1x256xi1> to vector<1x256xi1>
    %240 = vector.broadcast %239 : vector<1x256xi1> to vector<8x256xi1>
    %241 = vector.broadcast %cst_88 : f32 to vector<8x256xf32>
    %242 = arith.select %240, %238, %241 : vector<8x256xi1>, vector<8x256xf32>
    %c1_89 = arith.constant 1 : index
    %c0_90 = arith.constant 0 : index
    %c0_91 = arith.constant 0 : index
    %c0_92 = arith.constant 0 : index
    %243 = vector.load %arg1[%c1_89, %c0_90, %c0_91, %c0_92] : memref<9x4x8x1xf32, #tpu.memory_space<vmem>>, vector<1x1x8x1xf32>
    %244 = vector.shape_cast %243 : vector<1x1x8x1xf32> to vector<8x1xf32>
    %245 = vector.broadcast %244 : vector<8x1xf32> to vector<8x256xf32>
    %246 = arith.mulf %245, %242 : vector<8x256xf32>
    %c1_93 = arith.constant 1 : index
    %c1_94 = arith.constant 1 : index
    %c0_95 = arith.constant 0 : index
    %c0_96 = arith.constant 0 : index
    %247 = vector.load %arg1[%c1_93, %c1_94, %c0_95, %c0_96] : memref<9x4x8x1xf32, #tpu.memory_space<vmem>>, vector<1x1x8x1xf32>
    %248 = vector.shape_cast %247 : vector<1x1x8x1xf32> to vector<8x1xf32>
    %c7_i32_97 = arith.constant 7 : i32
    %249 = tpu.dynamic_rotate %242 by %c7_i32_97 dim 0 : vector<8x256xf32>, i32 -> vector<8x256xf32>
    %c3_i32_98 = arith.constant 3 : i32
    %250 = tpu.dynamic_rotate %242 by %c3_i32_98 dim 0 : vector<8x256xf32>, i32 -> vector<8x256xf32>
    %251 = vector.shape_cast %189 : vector<8x1xi1> to vector<8x1xi1>
    %252 = vector.broadcast %251 : vector<8x1xi1> to vector<8x256xi1>
    %253 = arith.select %252, %249, %250 : vector<8x256xi1>, vector<8x256xf32>
    %254 = vector.broadcast %248 : vector<8x1xf32> to vector<8x256xf32>
    %255 = arith.mulf %254, %253 : vector<8x256xf32>
    %c1_99 = arith.constant 1 : index
    %c2_100 = arith.constant 2 : index
    %c0_101 = arith.constant 0 : index
    %c0_102 = arith.constant 0 : index
    %256 = vector.load %arg1[%c1_99, %c2_100, %c0_101, %c0_102] : memref<9x4x8x1xf32, #tpu.memory_space<vmem>>, vector<1x1x8x1xf32>
    %257 = vector.shape_cast %256 : vector<1x1x8x1xf32> to vector<8x1xf32>
    %c6_i32_103 = arith.constant 6 : i32
    %258 = tpu.dynamic_rotate %242 by %c6_i32_103 dim 0 : vector<8x256xf32>, i32 -> vector<8x256xf32>
    %c2_i32_104 = arith.constant 2 : i32
    %259 = tpu.dynamic_rotate %242 by %c2_i32_104 dim 0 : vector<8x256xf32>, i32 -> vector<8x256xf32>
    %260 = vector.shape_cast %193 : vector<8x1xi1> to vector<8x1xi1>
    %261 = vector.broadcast %260 : vector<8x1xi1> to vector<8x256xi1>
    %262 = arith.select %261, %258, %259 : vector<8x256xi1>, vector<8x256xf32>
    %263 = vector.broadcast %257 : vector<8x1xf32> to vector<8x256xf32>
    %264 = arith.mulf %263, %262 : vector<8x256xf32>
    %c1_105 = arith.constant 1 : index
    %c3_106 = arith.constant 3 : index
    %c0_107 = arith.constant 0 : index
    %c0_108 = arith.constant 0 : index
    %265 = vector.load %arg1[%c1_105, %c3_106, %c0_107, %c0_108] : memref<9x4x8x1xf32, #tpu.memory_space<vmem>>, vector<1x1x8x1xf32>
    %266 = vector.shape_cast %265 : vector<1x1x8x1xf32> to vector<8x1xf32>
    %c5_i32_109 = arith.constant 5 : i32
    %267 = tpu.dynamic_rotate %242 by %c5_i32_109 dim 0 : vector<8x256xf32>, i32 -> vector<8x256xf32>
    %c1_i32_110 = arith.constant 1 : i32
    %268 = tpu.dynamic_rotate %242 by %c1_i32_110 dim 0 : vector<8x256xf32>, i32 -> vector<8x256xf32>
    %269 = vector.shape_cast %197 : vector<8x1xi1> to vector<8x1xi1>
    %270 = vector.broadcast %269 : vector<8x1xi1> to vector<8x256xi1>
    %271 = arith.select %270, %267, %268 : vector<8x256xi1>, vector<8x256xf32>
    %272 = vector.broadcast %266 : vector<8x1xf32> to vector<8x256xf32>
    %273 = arith.mulf %272, %271 : vector<8x256xf32>
    %274 = arith.addf %246, %255 : vector<8x256xf32>
    %275 = arith.addf %264, %273 : vector<8x256xf32>
    %276 = arith.addf %274, %275 : vector<8x256xf32>
    %c15_i32_111 = arith.constant 15 : i32
    %277 = tpu.dynamic_rotate %198 by %c15_i32_111 dim 1 : vector<8x256xf32>, i32 -> vector<8x256xf32>
    %cst_112 = arith.constant 0.000000e+00 : f32
    %278 = vector.shape_cast %73 : vector<1x256xi1> to vector<1x256xi1>
    %279 = vector.broadcast %278 : vector<1x256xi1> to vector<8x256xi1>
    %280 = vector.broadcast %cst_112 : f32 to vector<8x256xf32>
    %281 = arith.select %279, %277, %280 : vector<8x256xi1>, vector<8x256xf32>
    %c2_113 = arith.constant 2 : index
    %c0_114 = arith.constant 0 : index
    %c0_115 = arith.constant 0 : index
    %c0_116 = arith.constant 0 : index
    %282 = vector.load %arg1[%c2_113, %c0_114, %c0_115, %c0_116] : memref<9x4x8x1xf32, #tpu.memory_space<vmem>>, vector<1x1x8x1xf32>
    %283 = vector.shape_cast %282 : vector<1x1x8x1xf32> to vector<8x1xf32>
    %284 = vector.broadcast %283 : vector<8x1xf32> to vector<8x256xf32>
    %285 = arith.mulf %284, %281 : vector<8x256xf32>
    %c2_117 = arith.constant 2 : index
    %c1_118 = arith.constant 1 : index
    %c0_119 = arith.constant 0 : index
    %c0_120 = arith.constant 0 : index
    %286 = vector.load %arg1[%c2_117, %c1_118, %c0_119, %c0_120] : memref<9x4x8x1xf32, #tpu.memory_space<vmem>>, vector<1x1x8x1xf32>
    %287 = vector.shape_cast %286 : vector<1x1x8x1xf32> to vector<8x1xf32>
    %c7_i32_121 = arith.constant 7 : i32
    %288 = tpu.dynamic_rotate %281 by %c7_i32_121 dim 0 : vector<8x256xf32>, i32 -> vector<8x256xf32>
    %c3_i32_122 = arith.constant 3 : i32
    %289 = tpu.dynamic_rotate %281 by %c3_i32_122 dim 0 : vector<8x256xf32>, i32 -> vector<8x256xf32>
    %290 = vector.shape_cast %189 : vector<8x1xi1> to vector<8x1xi1>
    %291 = vector.broadcast %290 : vector<8x1xi1> to vector<8x256xi1>
    %292 = arith.select %291, %288, %289 : vector<8x256xi1>, vector<8x256xf32>
    %293 = vector.broadcast %287 : vector<8x1xf32> to vector<8x256xf32>
    %294 = arith.mulf %293, %292 : vector<8x256xf32>
    %c2_123 = arith.constant 2 : index
    %c2_124 = arith.constant 2 : index
    %c0_125 = arith.constant 0 : index
    %c0_126 = arith.constant 0 : index
    %295 = vector.load %arg1[%c2_123, %c2_124, %c0_125, %c0_126] : memref<9x4x8x1xf32, #tpu.memory_space<vmem>>, vector<1x1x8x1xf32>
    %296 = vector.shape_cast %295 : vector<1x1x8x1xf32> to vector<8x1xf32>
    %c6_i32_127 = arith.constant 6 : i32
    %297 = tpu.dynamic_rotate %281 by %c6_i32_127 dim 0 : vector<8x256xf32>, i32 -> vector<8x256xf32>
    %c2_i32_128 = arith.constant 2 : i32
    %298 = tpu.dynamic_rotate %281 by %c2_i32_128 dim 0 : vector<8x256xf32>, i32 -> vector<8x256xf32>
    %299 = vector.shape_cast %193 : vector<8x1xi1> to vector<8x1xi1>
    %300 = vector.broadcast %299 : vector<8x1xi1> to vector<8x256xi1>
    %301 = arith.select %300, %297, %298 : vector<8x256xi1>, vector<8x256xf32>
    %302 = vector.broadcast %296 : vector<8x1xf32> to vector<8x256xf32>
    %303 = arith.mulf %302, %301 : vector<8x256xf32>
    %c2_129 = arith.constant 2 : index
    %c3_130 = arith.constant 3 : index
    %c0_131 = arith.constant 0 : index
    %c0_132 = arith.constant 0 : index
    %304 = vector.load %arg1[%c2_129, %c3_130, %c0_131, %c0_132] : memref<9x4x8x1xf32, #tpu.memory_space<vmem>>, vector<1x1x8x1xf32>
    %305 = vector.shape_cast %304 : vector<1x1x8x1xf32> to vector<8x1xf32>
    %c5_i32_133 = arith.constant 5 : i32
    %306 = tpu.dynamic_rotate %281 by %c5_i32_133 dim 0 : vector<8x256xf32>, i32 -> vector<8x256xf32>
    %c1_i32_134 = arith.constant 1 : i32
    %307 = tpu.dynamic_rotate %281 by %c1_i32_134 dim 0 : vector<8x256xf32>, i32 -> vector<8x256xf32>
    %308 = vector.shape_cast %197 : vector<8x1xi1> to vector<8x1xi1>
    %309 = vector.broadcast %308 : vector<8x1xi1> to vector<8x256xi1>
    %310 = arith.select %309, %306, %307 : vector<8x256xi1>, vector<8x256xf32>
    %311 = vector.broadcast %305 : vector<8x1xf32> to vector<8x256xf32>
    %312 = arith.mulf %311, %310 : vector<8x256xf32>
    %313 = arith.addf %285, %294 : vector<8x256xf32>
    %314 = arith.addf %303, %312 : vector<8x256xf32>
    %315 = arith.addf %313, %314 : vector<8x256xf32>
    %c1_i32_135 = arith.constant 1 : i32
    %316 = tpu.dynamic_rotate %198 by %c1_i32_135 dim 1 : vector<8x256xf32>, i32 -> vector<8x256xf32>
    %cst_136 = arith.constant 0.000000e+00 : f32
    %317 = vector.shape_cast %92 : vector<1x256xi1> to vector<1x256xi1>
    %318 = vector.broadcast %317 : vector<1x256xi1> to vector<8x256xi1>
    %319 = vector.broadcast %cst_136 : f32 to vector<8x256xf32>
    %320 = arith.select %318, %316, %319 : vector<8x256xi1>, vector<8x256xf32>
    %c3_137 = arith.constant 3 : index
    %c0_138 = arith.constant 0 : index
    %c0_139 = arith.constant 0 : index
    %c0_140 = arith.constant 0 : index
    %321 = vector.load %arg1[%c3_137, %c0_138, %c0_139, %c0_140] : memref<9x4x8x1xf32, #tpu.memory_space<vmem>>, vector<1x1x8x1xf32>
    %322 = vector.shape_cast %321 : vector<1x1x8x1xf32> to vector<8x1xf32>
    %323 = vector.broadcast %322 : vector<8x1xf32> to vector<8x256xf32>
    %324 = arith.mulf %323, %320 : vector<8x256xf32>
    %c3_141 = arith.constant 3 : index
    %c1_142 = arith.constant 1 : index
    %c0_143 = arith.constant 0 : index
    %c0_144 = arith.constant 0 : index
    %325 = vector.load %arg1[%c3_141, %c1_142, %c0_143, %c0_144] : memref<9x4x8x1xf32, #tpu.memory_space<vmem>>, vector<1x1x8x1xf32>
    %326 = vector.shape_cast %325 : vector<1x1x8x1xf32> to vector<8x1xf32>
    %c7_i32_145 = arith.constant 7 : i32
    %327 = tpu.dynamic_rotate %320 by %c7_i32_145 dim 0 : vector<8x256xf32>, i32 -> vector<8x256xf32>
    %c3_i32_146 = arith.constant 3 : i32
    %328 = tpu.dynamic_rotate %320 by %c3_i32_146 dim 0 : vector<8x256xf32>, i32 -> vector<8x256xf32>
    %329 = vector.shape_cast %189 : vector<8x1xi1> to vector<8x1xi1>
    %330 = vector.broadcast %329 : vector<8x1xi1> to vector<8x256xi1>
    %331 = arith.select %330, %327, %328 : vector<8x256xi1>, vector<8x256xf32>
    %332 = vector.broadcast %326 : vector<8x1xf32> to vector<8x256xf32>
    %333 = arith.mulf %332, %331 : vector<8x256xf32>
    %c3_147 = arith.constant 3 : index
    %c2_148 = arith.constant 2 : index
    %c0_149 = arith.constant 0 : index
    %c0_150 = arith.constant 0 : index
    %334 = vector.load %arg1[%c3_147, %c2_148, %c0_149, %c0_150] : memref<9x4x8x1xf32, #tpu.memory_space<vmem>>, vector<1x1x8x1xf32>
    %335 = vector.shape_cast %334 : vector<1x1x8x1xf32> to vector<8x1xf32>
    %c6_i32_151 = arith.constant 6 : i32
    %336 = tpu.dynamic_rotate %320 by %c6_i32_151 dim 0 : vector<8x256xf32>, i32 -> vector<8x256xf32>
    %c2_i32_152 = arith.constant 2 : i32
    %337 = tpu.dynamic_rotate %320 by %c2_i32_152 dim 0 : vector<8x256xf32>, i32 -> vector<8x256xf32>
    %338 = vector.shape_cast %193 : vector<8x1xi1> to vector<8x1xi1>
    %339 = vector.broadcast %338 : vector<8x1xi1> to vector<8x256xi1>
    %340 = arith.select %339, %336, %337 : vector<8x256xi1>, vector<8x256xf32>
    %341 = vector.broadcast %335 : vector<8x1xf32> to vector<8x256xf32>
    %342 = arith.mulf %341, %340 : vector<8x256xf32>
    %c3_153 = arith.constant 3 : index
    %c3_154 = arith.constant 3 : index
    %c0_155 = arith.constant 0 : index
    %c0_156 = arith.constant 0 : index
    %343 = vector.load %arg1[%c3_153, %c3_154, %c0_155, %c0_156] : memref<9x4x8x1xf32, #tpu.memory_space<vmem>>, vector<1x1x8x1xf32>
    %344 = vector.shape_cast %343 : vector<1x1x8x1xf32> to vector<8x1xf32>
    %c5_i32_157 = arith.constant 5 : i32
    %345 = tpu.dynamic_rotate %320 by %c5_i32_157 dim 0 : vector<8x256xf32>, i32 -> vector<8x256xf32>
    %c1_i32_158 = arith.constant 1 : i32
    %346 = tpu.dynamic_rotate %320 by %c1_i32_158 dim 0 : vector<8x256xf32>, i32 -> vector<8x256xf32>
    %347 = vector.shape_cast %197 : vector<8x1xi1> to vector<8x1xi1>
    %348 = vector.broadcast %347 : vector<8x1xi1> to vector<8x256xi1>
    %349 = arith.select %348, %345, %346 : vector<8x256xi1>, vector<8x256xf32>
    %350 = vector.broadcast %344 : vector<8x1xf32> to vector<8x256xf32>
    %351 = arith.mulf %350, %349 : vector<8x256xf32>
    %352 = arith.addf %324, %333 : vector<8x256xf32>
    %353 = arith.addf %342, %351 : vector<8x256xf32>
    %354 = arith.addf %352, %353 : vector<8x256xf32>
    %355 = arith.addf %237, %354 : vector<8x256xf32>
    %c4 = arith.constant 4 : index
    %c0_159 = arith.constant 0 : index
    %c0_160 = arith.constant 0 : index
    %c0_161 = arith.constant 0 : index
    %356 = vector.load %arg1[%c4, %c0_159, %c0_160, %c0_161] : memref<9x4x8x1xf32, #tpu.memory_space<vmem>>, vector<1x1x8x1xf32>
    %357 = vector.shape_cast %356 : vector<1x1x8x1xf32> to vector<8x1xf32>
    %358 = vector.broadcast %357 : vector<8x1xf32> to vector<8x256xf32>
    %359 = arith.mulf %358, %198 : vector<8x256xf32>
    %c4_162 = arith.constant 4 : index
    %c1_163 = arith.constant 1 : index
    %c0_164 = arith.constant 0 : index
    %c0_165 = arith.constant 0 : index
    %360 = vector.load %arg1[%c4_162, %c1_163, %c0_164, %c0_165] : memref<9x4x8x1xf32, #tpu.memory_space<vmem>>, vector<1x1x8x1xf32>
    %361 = vector.shape_cast %360 : vector<1x1x8x1xf32> to vector<8x1xf32>
    %c7_i32_166 = arith.constant 7 : i32
    %362 = tpu.dynamic_rotate %198 by %c7_i32_166 dim 0 : vector<8x256xf32>, i32 -> vector<8x256xf32>
    %c3_i32_167 = arith.constant 3 : i32
    %363 = tpu.dynamic_rotate %198 by %c3_i32_167 dim 0 : vector<8x256xf32>, i32 -> vector<8x256xf32>
    %364 = vector.shape_cast %189 : vector<8x1xi1> to vector<8x1xi1>
    %365 = vector.broadcast %364 : vector<8x1xi1> to vector<8x256xi1>
    %366 = arith.select %365, %362, %363 : vector<8x256xi1>, vector<8x256xf32>
    %367 = vector.broadcast %361 : vector<8x1xf32> to vector<8x256xf32>
    %368 = arith.mulf %367, %366 : vector<8x256xf32>
    %c4_168 = arith.constant 4 : index
    %c2_169 = arith.constant 2 : index
    %c0_170 = arith.constant 0 : index
    %c0_171 = arith.constant 0 : index
    %369 = vector.load %arg1[%c4_168, %c2_169, %c0_170, %c0_171] : memref<9x4x8x1xf32, #tpu.memory_space<vmem>>, vector<1x1x8x1xf32>
    %370 = vector.shape_cast %369 : vector<1x1x8x1xf32> to vector<8x1xf32>
    %c6_i32_172 = arith.constant 6 : i32
    %371 = tpu.dynamic_rotate %198 by %c6_i32_172 dim 0 : vector<8x256xf32>, i32 -> vector<8x256xf32>
    %c2_i32_173 = arith.constant 2 : i32
    %372 = tpu.dynamic_rotate %198 by %c2_i32_173 dim 0 : vector<8x256xf32>, i32 -> vector<8x256xf32>
    %373 = vector.shape_cast %193 : vector<8x1xi1> to vector<8x1xi1>
    %374 = vector.broadcast %373 : vector<8x1xi1> to vector<8x256xi1>
    %375 = arith.select %374, %371, %372 : vector<8x256xi1>, vector<8x256xf32>
    %376 = vector.broadcast %370 : vector<8x1xf32> to vector<8x256xf32>
    %377 = arith.mulf %376, %375 : vector<8x256xf32>
    %c4_174 = arith.constant 4 : index
    %c3_175 = arith.constant 3 : index
    %c0_176 = arith.constant 0 : index
    %c0_177 = arith.constant 0 : index
    %378 = vector.load %arg1[%c4_174, %c3_175, %c0_176, %c0_177] : memref<9x4x8x1xf32, #tpu.memory_space<vmem>>, vector<1x1x8x1xf32>
    %379 = vector.shape_cast %378 : vector<1x1x8x1xf32> to vector<8x1xf32>
    %c5_i32_178 = arith.constant 5 : i32
    %380 = tpu.dynamic_rotate %198 by %c5_i32_178 dim 0 : vector<8x256xf32>, i32 -> vector<8x256xf32>
    %c1_i32_179 = arith.constant 1 : i32
    %381 = tpu.dynamic_rotate %198 by %c1_i32_179 dim 0 : vector<8x256xf32>, i32 -> vector<8x256xf32>
    %382 = vector.shape_cast %197 : vector<8x1xi1> to vector<8x1xi1>
    %383 = vector.broadcast %382 : vector<8x1xi1> to vector<8x256xi1>
    %384 = arith.select %383, %380, %381 : vector<8x256xi1>, vector<8x256xf32>
    %385 = vector.broadcast %379 : vector<8x1xf32> to vector<8x256xf32>
    %386 = arith.mulf %385, %384 : vector<8x256xf32>
    %387 = arith.addf %359, %368 : vector<8x256xf32>
    %388 = arith.addf %377, %386 : vector<8x256xf32>
    %389 = arith.addf %387, %388 : vector<8x256xf32>
    %390 = arith.addf %276, %389 : vector<8x256xf32>
    %c255_i32 = arith.constant 255 : i32
    %391 = tpu.dynamic_rotate %198 by %c255_i32 dim 1 : vector<8x256xf32>, i32 -> vector<8x256xf32>
    %cst_180 = arith.constant 0.000000e+00 : f32
    %392 = vector.shape_cast %111 : vector<1x256xi1> to vector<1x256xi1>
    %393 = vector.broadcast %392 : vector<1x256xi1> to vector<8x256xi1>
    %394 = vector.broadcast %cst_180 : f32 to vector<8x256xf32>
    %395 = arith.select %393, %391, %394 : vector<8x256xi1>, vector<8x256xf32>
    %c5 = arith.constant 5 : index
    %c0_181 = arith.constant 0 : index
    %c0_182 = arith.constant 0 : index
    %c0_183 = arith.constant 0 : index
    %396 = vector.load %arg1[%c5, %c0_181, %c0_182, %c0_183] : memref<9x4x8x1xf32, #tpu.memory_space<vmem>>, vector<1x1x8x1xf32>
    %397 = vector.shape_cast %396 : vector<1x1x8x1xf32> to vector<8x1xf32>
    %398 = vector.broadcast %397 : vector<8x1xf32> to vector<8x256xf32>
    %399 = arith.mulf %398, %395 : vector<8x256xf32>
    %c5_184 = arith.constant 5 : index
    %c1_185 = arith.constant 1 : index
    %c0_186 = arith.constant 0 : index
    %c0_187 = arith.constant 0 : index
    %400 = vector.load %arg1[%c5_184, %c1_185, %c0_186, %c0_187] : memref<9x4x8x1xf32, #tpu.memory_space<vmem>>, vector<1x1x8x1xf32>
    %401 = vector.shape_cast %400 : vector<1x1x8x1xf32> to vector<8x1xf32>
    %c7_i32_188 = arith.constant 7 : i32
    %402 = tpu.dynamic_rotate %395 by %c7_i32_188 dim 0 : vector<8x256xf32>, i32 -> vector<8x256xf32>
    %c3_i32_189 = arith.constant 3 : i32
    %403 = tpu.dynamic_rotate %395 by %c3_i32_189 dim 0 : vector<8x256xf32>, i32 -> vector<8x256xf32>
    %404 = vector.shape_cast %189 : vector<8x1xi1> to vector<8x1xi1>
    %405 = vector.broadcast %404 : vector<8x1xi1> to vector<8x256xi1>
    %406 = arith.select %405, %402, %403 : vector<8x256xi1>, vector<8x256xf32>
    %407 = vector.broadcast %401 : vector<8x1xf32> to vector<8x256xf32>
    %408 = arith.mulf %407, %406 : vector<8x256xf32>
    %c5_190 = arith.constant 5 : index
    %c2_191 = arith.constant 2 : index
    %c0_192 = arith.constant 0 : index
    %c0_193 = arith.constant 0 : index
    %409 = vector.load %arg1[%c5_190, %c2_191, %c0_192, %c0_193] : memref<9x4x8x1xf32, #tpu.memory_space<vmem>>, vector<1x1x8x1xf32>
    %410 = vector.shape_cast %409 : vector<1x1x8x1xf32> to vector<8x1xf32>
    %c6_i32_194 = arith.constant 6 : i32
    %411 = tpu.dynamic_rotate %395 by %c6_i32_194 dim 0 : vector<8x256xf32>, i32 -> vector<8x256xf32>
    %c2_i32_195 = arith.constant 2 : i32
    %412 = tpu.dynamic_rotate %395 by %c2_i32_195 dim 0 : vector<8x256xf32>, i32 -> vector<8x256xf32>
    %413 = vector.shape_cast %193 : vector<8x1xi1> to vector<8x1xi1>
    %414 = vector.broadcast %413 : vector<8x1xi1> to vector<8x256xi1>
    %415 = arith.select %414, %411, %412 : vector<8x256xi1>, vector<8x256xf32>
    %416 = vector.broadcast %410 : vector<8x1xf32> to vector<8x256xf32>
    %417 = arith.mulf %416, %415 : vector<8x256xf32>
    %c5_196 = arith.constant 5 : index
    %c3_197 = arith.constant 3 : index
    %c0_198 = arith.constant 0 : index
    %c0_199 = arith.constant 0 : index
    %418 = vector.load %arg1[%c5_196, %c3_197, %c0_198, %c0_199] : memref<9x4x8x1xf32, #tpu.memory_space<vmem>>, vector<1x1x8x1xf32>
    %419 = vector.shape_cast %418 : vector<1x1x8x1xf32> to vector<8x1xf32>
    %c5_i32_200 = arith.constant 5 : i32
    %420 = tpu.dynamic_rotate %395 by %c5_i32_200 dim 0 : vector<8x256xf32>, i32 -> vector<8x256xf32>
    %c1_i32_201 = arith.constant 1 : i32
    %421 = tpu.dynamic_rotate %395 by %c1_i32_201 dim 0 : vector<8x256xf32>, i32 -> vector<8x256xf32>
    %422 = vector.shape_cast %197 : vector<8x1xi1> to vector<8x1xi1>
    %423 = vector.broadcast %422 : vector<8x1xi1> to vector<8x256xi1>
    %424 = arith.select %423, %420, %421 : vector<8x256xi1>, vector<8x256xf32>
    %425 = vector.broadcast %419 : vector<8x1xf32> to vector<8x256xf32>
    %426 = arith.mulf %425, %424 : vector<8x256xf32>
    %427 = arith.addf %399, %408 : vector<8x256xf32>
    %428 = arith.addf %417, %426 : vector<8x256xf32>
    %429 = arith.addf %427, %428 : vector<8x256xf32>
    %430 = arith.addf %315, %429 : vector<8x256xf32>
    %c241_i32 = arith.constant 241 : i32
    %431 = tpu.dynamic_rotate %198 by %c241_i32 dim 1 : vector<8x256xf32>, i32 -> vector<8x256xf32>
    %cst_202 = arith.constant 0.000000e+00 : f32
    %432 = vector.shape_cast %130 : vector<1x256xi1> to vector<1x256xi1>
    %433 = vector.broadcast %432 : vector<1x256xi1> to vector<8x256xi1>
    %434 = vector.broadcast %cst_202 : f32 to vector<8x256xf32>
    %435 = arith.select %433, %431, %434 : vector<8x256xi1>, vector<8x256xf32>
    %c6 = arith.constant 6 : index
    %c0_203 = arith.constant 0 : index
    %c0_204 = arith.constant 0 : index
    %c0_205 = arith.constant 0 : index
    %436 = vector.load %arg1[%c6, %c0_203, %c0_204, %c0_205] : memref<9x4x8x1xf32, #tpu.memory_space<vmem>>, vector<1x1x8x1xf32>
    %437 = vector.shape_cast %436 : vector<1x1x8x1xf32> to vector<8x1xf32>
    %438 = vector.broadcast %437 : vector<8x1xf32> to vector<8x256xf32>
    %439 = arith.mulf %438, %435 : vector<8x256xf32>
    %c6_206 = arith.constant 6 : index
    %c1_207 = arith.constant 1 : index
    %c0_208 = arith.constant 0 : index
    %c0_209 = arith.constant 0 : index
    %440 = vector.load %arg1[%c6_206, %c1_207, %c0_208, %c0_209] : memref<9x4x8x1xf32, #tpu.memory_space<vmem>>, vector<1x1x8x1xf32>
    %441 = vector.shape_cast %440 : vector<1x1x8x1xf32> to vector<8x1xf32>
    %c7_i32_210 = arith.constant 7 : i32
    %442 = tpu.dynamic_rotate %435 by %c7_i32_210 dim 0 : vector<8x256xf32>, i32 -> vector<8x256xf32>
    %c3_i32_211 = arith.constant 3 : i32
    %443 = tpu.dynamic_rotate %435 by %c3_i32_211 dim 0 : vector<8x256xf32>, i32 -> vector<8x256xf32>
    %444 = vector.shape_cast %189 : vector<8x1xi1> to vector<8x1xi1>
    %445 = vector.broadcast %444 : vector<8x1xi1> to vector<8x256xi1>
    %446 = arith.select %445, %442, %443 : vector<8x256xi1>, vector<8x256xf32>
    %447 = vector.broadcast %441 : vector<8x1xf32> to vector<8x256xf32>
    %448 = arith.mulf %447, %446 : vector<8x256xf32>
    %c6_212 = arith.constant 6 : index
    %c2_213 = arith.constant 2 : index
    %c0_214 = arith.constant 0 : index
    %c0_215 = arith.constant 0 : index
    %449 = vector.load %arg1[%c6_212, %c2_213, %c0_214, %c0_215] : memref<9x4x8x1xf32, #tpu.memory_space<vmem>>, vector<1x1x8x1xf32>
    %450 = vector.shape_cast %449 : vector<1x1x8x1xf32> to vector<8x1xf32>
    %c6_i32_216 = arith.constant 6 : i32
    %451 = tpu.dynamic_rotate %435 by %c6_i32_216 dim 0 : vector<8x256xf32>, i32 -> vector<8x256xf32>
    %c2_i32_217 = arith.constant 2 : i32
    %452 = tpu.dynamic_rotate %435 by %c2_i32_217 dim 0 : vector<8x256xf32>, i32 -> vector<8x256xf32>
    %453 = vector.shape_cast %193 : vector<8x1xi1> to vector<8x1xi1>
    %454 = vector.broadcast %453 : vector<8x1xi1> to vector<8x256xi1>
    %455 = arith.select %454, %451, %452 : vector<8x256xi1>, vector<8x256xf32>
    %456 = vector.broadcast %450 : vector<8x1xf32> to vector<8x256xf32>
    %457 = arith.mulf %456, %455 : vector<8x256xf32>
    %c6_218 = arith.constant 6 : index
    %c3_219 = arith.constant 3 : index
    %c0_220 = arith.constant 0 : index
    %c0_221 = arith.constant 0 : index
    %458 = vector.load %arg1[%c6_218, %c3_219, %c0_220, %c0_221] : memref<9x4x8x1xf32, #tpu.memory_space<vmem>>, vector<1x1x8x1xf32>
    %459 = vector.shape_cast %458 : vector<1x1x8x1xf32> to vector<8x1xf32>
    %c5_i32_222 = arith.constant 5 : i32
    %460 = tpu.dynamic_rotate %435 by %c5_i32_222 dim 0 : vector<8x256xf32>, i32 -> vector<8x256xf32>
    %c1_i32_223 = arith.constant 1 : i32
    %461 = tpu.dynamic_rotate %435 by %c1_i32_223 dim 0 : vector<8x256xf32>, i32 -> vector<8x256xf32>
    %462 = vector.shape_cast %197 : vector<8x1xi1> to vector<8x1xi1>
    %463 = vector.broadcast %462 : vector<8x1xi1> to vector<8x256xi1>
    %464 = arith.select %463, %460, %461 : vector<8x256xi1>, vector<8x256xf32>
    %465 = vector.broadcast %459 : vector<8x1xf32> to vector<8x256xf32>
    %466 = arith.mulf %465, %464 : vector<8x256xf32>
    %467 = arith.addf %439, %448 : vector<8x256xf32>
    %468 = arith.addf %457, %466 : vector<8x256xf32>
    %469 = arith.addf %467, %468 : vector<8x256xf32>
    %470 = arith.addf %355, %469 : vector<8x256xf32>
    %c240_i32 = arith.constant 240 : i32
    %471 = tpu.dynamic_rotate %198 by %c240_i32 dim 1 : vector<8x256xf32>, i32 -> vector<8x256xf32>
    %cst_224 = arith.constant 0.000000e+00 : f32
    %472 = vector.shape_cast %149 : vector<1x256xi1> to vector<1x256xi1>
    %473 = vector.broadcast %472 : vector<1x256xi1> to vector<8x256xi1>
    %474 = vector.broadcast %cst_224 : f32 to vector<8x256xf32>
    %475 = arith.select %473, %471, %474 : vector<8x256xi1>, vector<8x256xf32>
    %c7 = arith.constant 7 : index
    %c0_225 = arith.constant 0 : index
    %c0_226 = arith.constant 0 : index
    %c0_227 = arith.constant 0 : index
    %476 = vector.load %arg1[%c7, %c0_225, %c0_226, %c0_227] : memref<9x4x8x1xf32, #tpu.memory_space<vmem>>, vector<1x1x8x1xf32>
    %477 = vector.shape_cast %476 : vector<1x1x8x1xf32> to vector<8x1xf32>
    %478 = vector.broadcast %477 : vector<8x1xf32> to vector<8x256xf32>
    %479 = arith.mulf %478, %475 : vector<8x256xf32>
    %c7_228 = arith.constant 7 : index
    %c1_229 = arith.constant 1 : index
    %c0_230 = arith.constant 0 : index
    %c0_231 = arith.constant 0 : index
    %480 = vector.load %arg1[%c7_228, %c1_229, %c0_230, %c0_231] : memref<9x4x8x1xf32, #tpu.memory_space<vmem>>, vector<1x1x8x1xf32>
    %481 = vector.shape_cast %480 : vector<1x1x8x1xf32> to vector<8x1xf32>
    %c7_i32_232 = arith.constant 7 : i32
    %482 = tpu.dynamic_rotate %475 by %c7_i32_232 dim 0 : vector<8x256xf32>, i32 -> vector<8x256xf32>
    %c3_i32_233 = arith.constant 3 : i32
    %483 = tpu.dynamic_rotate %475 by %c3_i32_233 dim 0 : vector<8x256xf32>, i32 -> vector<8x256xf32>
    %484 = vector.shape_cast %189 : vector<8x1xi1> to vector<8x1xi1>
    %485 = vector.broadcast %484 : vector<8x1xi1> to vector<8x256xi1>
    %486 = arith.select %485, %482, %483 : vector<8x256xi1>, vector<8x256xf32>
    %487 = vector.broadcast %481 : vector<8x1xf32> to vector<8x256xf32>
    %488 = arith.mulf %487, %486 : vector<8x256xf32>
    %c7_234 = arith.constant 7 : index
    %c2_235 = arith.constant 2 : index
    %c0_236 = arith.constant 0 : index
    %c0_237 = arith.constant 0 : index
    %489 = vector.load %arg1[%c7_234, %c2_235, %c0_236, %c0_237] : memref<9x4x8x1xf32, #tpu.memory_space<vmem>>, vector<1x1x8x1xf32>
    %490 = vector.shape_cast %489 : vector<1x1x8x1xf32> to vector<8x1xf32>
    %c6_i32_238 = arith.constant 6 : i32
    %491 = tpu.dynamic_rotate %475 by %c6_i32_238 dim 0 : vector<8x256xf32>, i32 -> vector<8x256xf32>
    %c2_i32_239 = arith.constant 2 : i32
    %492 = tpu.dynamic_rotate %475 by %c2_i32_239 dim 0 : vector<8x256xf32>, i32 -> vector<8x256xf32>
    %493 = vector.shape_cast %193 : vector<8x1xi1> to vector<8x1xi1>
    %494 = vector.broadcast %493 : vector<8x1xi1> to vector<8x256xi1>
    %495 = arith.select %494, %491, %492 : vector<8x256xi1>, vector<8x256xf32>
    %496 = vector.broadcast %490 : vector<8x1xf32> to vector<8x256xf32>
    %497 = arith.mulf %496, %495 : vector<8x256xf32>
    %c7_240 = arith.constant 7 : index
    %c3_241 = arith.constant 3 : index
    %c0_242 = arith.constant 0 : index
    %c0_243 = arith.constant 0 : index
    %498 = vector.load %arg1[%c7_240, %c3_241, %c0_242, %c0_243] : memref<9x4x8x1xf32, #tpu.memory_space<vmem>>, vector<1x1x8x1xf32>
    %499 = vector.shape_cast %498 : vector<1x1x8x1xf32> to vector<8x1xf32>
    %c5_i32_244 = arith.constant 5 : i32
    %500 = tpu.dynamic_rotate %475 by %c5_i32_244 dim 0 : vector<8x256xf32>, i32 -> vector<8x256xf32>
    %c1_i32_245 = arith.constant 1 : i32
    %501 = tpu.dynamic_rotate %475 by %c1_i32_245 dim 0 : vector<8x256xf32>, i32 -> vector<8x256xf32>
    %502 = vector.shape_cast %197 : vector<8x1xi1> to vector<8x1xi1>
    %503 = vector.broadcast %502 : vector<8x1xi1> to vector<8x256xi1>
    %504 = arith.select %503, %500, %501 : vector<8x256xi1>, vector<8x256xf32>
    %505 = vector.broadcast %499 : vector<8x1xf32> to vector<8x256xf32>
    %506 = arith.mulf %505, %504 : vector<8x256xf32>
    %507 = arith.addf %479, %488 : vector<8x256xf32>
    %508 = arith.addf %497, %506 : vector<8x256xf32>
    %509 = arith.addf %507, %508 : vector<8x256xf32>
    %510 = arith.addf %390, %509 : vector<8x256xf32>
    %c239_i32 = arith.constant 239 : i32
    %511 = tpu.dynamic_rotate %198 by %c239_i32 dim 1 : vector<8x256xf32>, i32 -> vector<8x256xf32>
    %cst_246 = arith.constant 0.000000e+00 : f32
    %512 = vector.shape_cast %168 : vector<1x256xi1> to vector<1x256xi1>
    %513 = vector.broadcast %512 : vector<1x256xi1> to vector<8x256xi1>
    %514 = vector.broadcast %cst_246 : f32 to vector<8x256xf32>
    %515 = arith.select %513, %511, %514 : vector<8x256xi1>, vector<8x256xf32>
    %c8 = arith.constant 8 : index
    %c0_247 = arith.constant 0 : index
    %c0_248 = arith.constant 0 : index
    %c0_249 = arith.constant 0 : index
    %516 = vector.load %arg1[%c8, %c0_247, %c0_248, %c0_249] : memref<9x4x8x1xf32, #tpu.memory_space<vmem>>, vector<1x1x8x1xf32>
    %517 = vector.shape_cast %516 : vector<1x1x8x1xf32> to vector<8x1xf32>
    %518 = vector.broadcast %517 : vector<8x1xf32> to vector<8x256xf32>
    %519 = arith.mulf %518, %515 : vector<8x256xf32>
    %c8_250 = arith.constant 8 : index
    %c1_251 = arith.constant 1 : index
    %c0_252 = arith.constant 0 : index
    %c0_253 = arith.constant 0 : index
    %520 = vector.load %arg1[%c8_250, %c1_251, %c0_252, %c0_253] : memref<9x4x8x1xf32, #tpu.memory_space<vmem>>, vector<1x1x8x1xf32>
    %521 = vector.shape_cast %520 : vector<1x1x8x1xf32> to vector<8x1xf32>
    %c7_i32_254 = arith.constant 7 : i32
    %522 = tpu.dynamic_rotate %515 by %c7_i32_254 dim 0 : vector<8x256xf32>, i32 -> vector<8x256xf32>
    %c3_i32_255 = arith.constant 3 : i32
    %523 = tpu.dynamic_rotate %515 by %c3_i32_255 dim 0 : vector<8x256xf32>, i32 -> vector<8x256xf32>
    %524 = vector.shape_cast %189 : vector<8x1xi1> to vector<8x1xi1>
    %525 = vector.broadcast %524 : vector<8x1xi1> to vector<8x256xi1>
    %526 = arith.select %525, %522, %523 : vector<8x256xi1>, vector<8x256xf32>
    %527 = vector.broadcast %521 : vector<8x1xf32> to vector<8x256xf32>
    %528 = arith.mulf %527, %526 : vector<8x256xf32>
    %c8_256 = arith.constant 8 : index
    %c2_257 = arith.constant 2 : index
    %c0_258 = arith.constant 0 : index
    %c0_259 = arith.constant 0 : index
    %529 = vector.load %arg1[%c8_256, %c2_257, %c0_258, %c0_259] : memref<9x4x8x1xf32, #tpu.memory_space<vmem>>, vector<1x1x8x1xf32>
    %530 = vector.shape_cast %529 : vector<1x1x8x1xf32> to vector<8x1xf32>
    %c6_i32_260 = arith.constant 6 : i32
    %531 = tpu.dynamic_rotate %515 by %c6_i32_260 dim 0 : vector<8x256xf32>, i32 -> vector<8x256xf32>
    %c2_i32_261 = arith.constant 2 : i32
    %532 = tpu.dynamic_rotate %515 by %c2_i32_261 dim 0 : vector<8x256xf32>, i32 -> vector<8x256xf32>
    %533 = vector.shape_cast %193 : vector<8x1xi1> to vector<8x1xi1>
    %534 = vector.broadcast %533 : vector<8x1xi1> to vector<8x256xi1>
    %535 = arith.select %534, %531, %532 : vector<8x256xi1>, vector<8x256xf32>
    %536 = vector.broadcast %530 : vector<8x1xf32> to vector<8x256xf32>
    %537 = arith.mulf %536, %535 : vector<8x256xf32>
    %c8_262 = arith.constant 8 : index
    %c3_263 = arith.constant 3 : index
    %c0_264 = arith.constant 0 : index
    %c0_265 = arith.constant 0 : index
    %538 = vector.load %arg1[%c8_262, %c3_263, %c0_264, %c0_265] : memref<9x4x8x1xf32, #tpu.memory_space<vmem>>, vector<1x1x8x1xf32>
    %539 = vector.shape_cast %538 : vector<1x1x8x1xf32> to vector<8x1xf32>
    %c5_i32_266 = arith.constant 5 : i32
    %540 = tpu.dynamic_rotate %515 by %c5_i32_266 dim 0 : vector<8x256xf32>, i32 -> vector<8x256xf32>
    %c1_i32_267 = arith.constant 1 : i32
    %541 = tpu.dynamic_rotate %515 by %c1_i32_267 dim 0 : vector<8x256xf32>, i32 -> vector<8x256xf32>
    %542 = vector.shape_cast %197 : vector<8x1xi1> to vector<8x1xi1>
    %543 = vector.broadcast %542 : vector<8x1xi1> to vector<8x256xi1>
    %544 = arith.select %543, %540, %541 : vector<8x256xi1>, vector<8x256xf32>
    %545 = vector.broadcast %539 : vector<8x1xf32> to vector<8x256xf32>
    %546 = arith.mulf %545, %544 : vector<8x256xf32>
    %547 = arith.addf %519, %528 : vector<8x256xf32>
    %548 = arith.addf %537, %546 : vector<8x256xf32>
    %549 = arith.addf %547, %548 : vector<8x256xf32>
    %550 = arith.addf %430, %549 : vector<8x256xf32>
    %551 = arith.addf %470, %510 : vector<8x256xf32>
    %552 = arith.addf %551, %550 : vector<8x256xf32>
    %553 = arith.mulf %552, %552 : vector<8x256xf32>
    %554 = tpu.concatenate %552, %553 in 0 : vector<8x256xf32>, vector<8x256xf32> -> vector<16x256xf32>
    %cst_268 = arith.constant dense<0.000000e+00> : vector<16xf32>
    %555 = vector.multi_reduction <add>, %554, %cst_268 [1] : vector<16x256xf32> to vector<16xf32>
    %556 = vector.shape_cast %555 : vector<16xf32> to vector<16x1xf32>
    %557 = vector.extract_strided_slice %556 {offsets = [0, 0], sizes = [8, 1], strides = [1, 1]} : vector<16x1xf32> to vector<8x1xf32>
    %558 = vector.extract_strided_slice %556 {offsets = [8, 0], sizes = [8, 1], strides = [1, 1]} : vector<16x1xf32> to vector<8x1xf32>
    %c4_i32_269 = arith.constant 4 : i32
    %559 = tpu.dynamic_rotate %557 by %c4_i32_269 dim 0 : vector<8x1xf32>, i32 -> vector<8x1xf32>
    %560 = arith.addf %557, %559 : vector<8x1xf32>
    %c4_i32_270 = arith.constant 4 : i32
    %561 = tpu.dynamic_rotate %558 by %c4_i32_270 dim 0 : vector<8x1xf32>, i32 -> vector<8x1xf32>
    %562 = arith.addf %558, %561 : vector<8x1xf32>
    %cst_271 = arith.constant 0.001953125 : f32
    %563 = vector.broadcast %cst_271 : f32 to vector<8x1xf32>
    %564 = arith.mulf %560, %563 : vector<8x1xf32>
    %cst_272 = arith.constant 0.001953125 : f32
    %565 = vector.broadcast %cst_272 : f32 to vector<8x1xf32>
    %566 = arith.mulf %562, %565 : vector<8x1xf32>
    %567 = arith.mulf %564, %564 : vector<8x1xf32>
    %568 = arith.subf %566, %567 : vector<8x1xf32>
    %cst_273 = arith.constant 0.000000e+00 : f32
    %569 = vector.broadcast %cst_273 : f32 to vector<8x1xf32>
    %570 = arith.maximumf %568, %569 : vector<8x1xf32>
    %c0_274 = arith.constant 0 : index
    %c0_275 = arith.constant 0 : index
    %571 = vector.load %arg2[%c0_274, %c0_275] : memref<8x1xf32, #tpu.memory_space<vmem>>, vector<8x1xf32>
    %cst_276 = arith.constant 9.99999974E-6 : f32
    %572 = vector.broadcast %cst_276 : f32 to vector<8x1xf32>
    %573 = arith.addf %570, %572 : vector<8x1xf32>
    %574 = math.rsqrt %573 : vector<8x1xf32>
    %575 = arith.mulf %571, %574 : vector<8x1xf32>
    %c0_277 = arith.constant 0 : index
    %c0_278 = arith.constant 0 : index
    %576 = vector.load %arg3[%c0_277, %c0_278] : memref<8x1xf32, #tpu.memory_space<vmem>>, vector<8x1xf32>
    %577 = arith.mulf %564, %575 : vector<8x1xf32>
    %578 = arith.subf %576, %577 : vector<8x1xf32>
    %579 = vector.broadcast %575 : vector<8x1xf32> to vector<8x256xf32>
    %580 = arith.mulf %552, %579 : vector<8x256xf32>
    %581 = vector.broadcast %578 : vector<8x1xf32> to vector<8x256xf32>
    %582 = arith.addf %580, %581 : vector<8x256xf32>
    %cst_279 = arith.constant 0.000000e+00 : f32
    %583 = vector.broadcast %cst_279 : f32 to vector<8x256xf32>
    %584 = arith.maximumf %582, %583 : vector<8x256xf32>
    %c17_i32_280 = arith.constant 17 : i32
    %585 = tpu.dynamic_rotate %584 by %c17_i32_280 dim 1 : vector<8x256xf32>, i32 -> vector<8x256xf32>
    %cst_281 = arith.constant 0.000000e+00 : f32
    %586 = vector.shape_cast %35 : vector<1x256xi1> to vector<1x256xi1>
    %587 = vector.broadcast %586 : vector<1x256xi1> to vector<8x256xi1>
    %588 = vector.broadcast %cst_281 : f32 to vector<8x256xf32>
    %589 = arith.select %587, %585, %588 : vector<8x256xi1>, vector<8x256xf32>
    %c0_282 = arith.constant 0 : index
    %c0_283 = arith.constant 0 : index
    %c0_284 = arith.constant 0 : index
    %c0_285 = arith.constant 0 : index
    %590 = vector.load %arg4[%c0_282, %c0_283, %c0_284, %c0_285] : memref<9x4x8x1xf32, #tpu.memory_space<vmem>>, vector<1x1x8x1xf32>
    %591 = vector.shape_cast %590 : vector<1x1x8x1xf32> to vector<8x1xf32>
    %592 = vector.broadcast %591 : vector<8x1xf32> to vector<8x256xf32>
    %593 = arith.mulf %592, %589 : vector<8x256xf32>
    %c0_286 = arith.constant 0 : index
    %c1_287 = arith.constant 1 : index
    %c0_288 = arith.constant 0 : index
    %c0_289 = arith.constant 0 : index
    %594 = vector.load %arg4[%c0_286, %c1_287, %c0_288, %c0_289] : memref<9x4x8x1xf32, #tpu.memory_space<vmem>>, vector<1x1x8x1xf32>
    %595 = vector.shape_cast %594 : vector<1x1x8x1xf32> to vector<8x1xf32>
    %c7_i32_290 = arith.constant 7 : i32
    %596 = tpu.dynamic_rotate %589 by %c7_i32_290 dim 0 : vector<8x256xf32>, i32 -> vector<8x256xf32>
    %c3_i32_291 = arith.constant 3 : i32
    %597 = tpu.dynamic_rotate %589 by %c3_i32_291 dim 0 : vector<8x256xf32>, i32 -> vector<8x256xf32>
    %598 = vector.shape_cast %189 : vector<8x1xi1> to vector<8x1xi1>
    %599 = vector.broadcast %598 : vector<8x1xi1> to vector<8x256xi1>
    %600 = arith.select %599, %596, %597 : vector<8x256xi1>, vector<8x256xf32>
    %601 = vector.broadcast %595 : vector<8x1xf32> to vector<8x256xf32>
    %602 = arith.mulf %601, %600 : vector<8x256xf32>
    %c0_292 = arith.constant 0 : index
    %c2_293 = arith.constant 2 : index
    %c0_294 = arith.constant 0 : index
    %c0_295 = arith.constant 0 : index
    %603 = vector.load %arg4[%c0_292, %c2_293, %c0_294, %c0_295] : memref<9x4x8x1xf32, #tpu.memory_space<vmem>>, vector<1x1x8x1xf32>
    %604 = vector.shape_cast %603 : vector<1x1x8x1xf32> to vector<8x1xf32>
    %c6_i32_296 = arith.constant 6 : i32
    %605 = tpu.dynamic_rotate %589 by %c6_i32_296 dim 0 : vector<8x256xf32>, i32 -> vector<8x256xf32>
    %c2_i32_297 = arith.constant 2 : i32
    %606 = tpu.dynamic_rotate %589 by %c2_i32_297 dim 0 : vector<8x256xf32>, i32 -> vector<8x256xf32>
    %607 = vector.shape_cast %193 : vector<8x1xi1> to vector<8x1xi1>
    %608 = vector.broadcast %607 : vector<8x1xi1> to vector<8x256xi1>
    %609 = arith.select %608, %605, %606 : vector<8x256xi1>, vector<8x256xf32>
    %610 = vector.broadcast %604 : vector<8x1xf32> to vector<8x256xf32>
    %611 = arith.mulf %610, %609 : vector<8x256xf32>
    %c0_298 = arith.constant 0 : index
    %c3_299 = arith.constant 3 : index
    %c0_300 = arith.constant 0 : index
    %c0_301 = arith.constant 0 : index
    %612 = vector.load %arg4[%c0_298, %c3_299, %c0_300, %c0_301] : memref<9x4x8x1xf32, #tpu.memory_space<vmem>>, vector<1x1x8x1xf32>
    %613 = vector.shape_cast %612 : vector<1x1x8x1xf32> to vector<8x1xf32>
    %c5_i32_302 = arith.constant 5 : i32
    %614 = tpu.dynamic_rotate %589 by %c5_i32_302 dim 0 : vector<8x256xf32>, i32 -> vector<8x256xf32>
    %c1_i32_303 = arith.constant 1 : i32
    %615 = tpu.dynamic_rotate %589 by %c1_i32_303 dim 0 : vector<8x256xf32>, i32 -> vector<8x256xf32>
    %616 = vector.shape_cast %197 : vector<8x1xi1> to vector<8x1xi1>
    %617 = vector.broadcast %616 : vector<8x1xi1> to vector<8x256xi1>
    %618 = arith.select %617, %614, %615 : vector<8x256xi1>, vector<8x256xf32>
    %619 = vector.broadcast %613 : vector<8x1xf32> to vector<8x256xf32>
    %620 = arith.mulf %619, %618 : vector<8x256xf32>
    %621 = arith.addf %593, %602 : vector<8x256xf32>
    %622 = arith.addf %611, %620 : vector<8x256xf32>
    %623 = arith.addf %621, %622 : vector<8x256xf32>
    %c16_i32_304 = arith.constant 16 : i32
    %624 = tpu.dynamic_rotate %584 by %c16_i32_304 dim 1 : vector<8x256xf32>, i32 -> vector<8x256xf32>
    %cst_305 = arith.constant 0.000000e+00 : f32
    %625 = vector.shape_cast %54 : vector<1x256xi1> to vector<1x256xi1>
    %626 = vector.broadcast %625 : vector<1x256xi1> to vector<8x256xi1>
    %627 = vector.broadcast %cst_305 : f32 to vector<8x256xf32>
    %628 = arith.select %626, %624, %627 : vector<8x256xi1>, vector<8x256xf32>
    %c1_306 = arith.constant 1 : index
    %c0_307 = arith.constant 0 : index
    %c0_308 = arith.constant 0 : index
    %c0_309 = arith.constant 0 : index
    %629 = vector.load %arg4[%c1_306, %c0_307, %c0_308, %c0_309] : memref<9x4x8x1xf32, #tpu.memory_space<vmem>>, vector<1x1x8x1xf32>
    %630 = vector.shape_cast %629 : vector<1x1x8x1xf32> to vector<8x1xf32>
    %631 = vector.broadcast %630 : vector<8x1xf32> to vector<8x256xf32>
    %632 = arith.mulf %631, %628 : vector<8x256xf32>
    %c1_310 = arith.constant 1 : index
    %c1_311 = arith.constant 1 : index
    %c0_312 = arith.constant 0 : index
    %c0_313 = arith.constant 0 : index
    %633 = vector.load %arg4[%c1_310, %c1_311, %c0_312, %c0_313] : memref<9x4x8x1xf32, #tpu.memory_space<vmem>>, vector<1x1x8x1xf32>
    %634 = vector.shape_cast %633 : vector<1x1x8x1xf32> to vector<8x1xf32>
    %c7_i32_314 = arith.constant 7 : i32
    %635 = tpu.dynamic_rotate %628 by %c7_i32_314 dim 0 : vector<8x256xf32>, i32 -> vector<8x256xf32>
    %c3_i32_315 = arith.constant 3 : i32
    %636 = tpu.dynamic_rotate %628 by %c3_i32_315 dim 0 : vector<8x256xf32>, i32 -> vector<8x256xf32>
    %637 = vector.shape_cast %189 : vector<8x1xi1> to vector<8x1xi1>
    %638 = vector.broadcast %637 : vector<8x1xi1> to vector<8x256xi1>
    %639 = arith.select %638, %635, %636 : vector<8x256xi1>, vector<8x256xf32>
    %640 = vector.broadcast %634 : vector<8x1xf32> to vector<8x256xf32>
    %641 = arith.mulf %640, %639 : vector<8x256xf32>
    %c1_316 = arith.constant 1 : index
    %c2_317 = arith.constant 2 : index
    %c0_318 = arith.constant 0 : index
    %c0_319 = arith.constant 0 : index
    %642 = vector.load %arg4[%c1_316, %c2_317, %c0_318, %c0_319] : memref<9x4x8x1xf32, #tpu.memory_space<vmem>>, vector<1x1x8x1xf32>
    %643 = vector.shape_cast %642 : vector<1x1x8x1xf32> to vector<8x1xf32>
    %c6_i32_320 = arith.constant 6 : i32
    %644 = tpu.dynamic_rotate %628 by %c6_i32_320 dim 0 : vector<8x256xf32>, i32 -> vector<8x256xf32>
    %c2_i32_321 = arith.constant 2 : i32
    %645 = tpu.dynamic_rotate %628 by %c2_i32_321 dim 0 : vector<8x256xf32>, i32 -> vector<8x256xf32>
    %646 = vector.shape_cast %193 : vector<8x1xi1> to vector<8x1xi1>
    %647 = vector.broadcast %646 : vector<8x1xi1> to vector<8x256xi1>
    %648 = arith.select %647, %644, %645 : vector<8x256xi1>, vector<8x256xf32>
    %649 = vector.broadcast %643 : vector<8x1xf32> to vector<8x256xf32>
    %650 = arith.mulf %649, %648 : vector<8x256xf32>
    %c1_322 = arith.constant 1 : index
    %c3_323 = arith.constant 3 : index
    %c0_324 = arith.constant 0 : index
    %c0_325 = arith.constant 0 : index
    %651 = vector.load %arg4[%c1_322, %c3_323, %c0_324, %c0_325] : memref<9x4x8x1xf32, #tpu.memory_space<vmem>>, vector<1x1x8x1xf32>
    %652 = vector.shape_cast %651 : vector<1x1x8x1xf32> to vector<8x1xf32>
    %c5_i32_326 = arith.constant 5 : i32
    %653 = tpu.dynamic_rotate %628 by %c5_i32_326 dim 0 : vector<8x256xf32>, i32 -> vector<8x256xf32>
    %c1_i32_327 = arith.constant 1 : i32
    %654 = tpu.dynamic_rotate %628 by %c1_i32_327 dim 0 : vector<8x256xf32>, i32 -> vector<8x256xf32>
    %655 = vector.shape_cast %197 : vector<8x1xi1> to vector<8x1xi1>
    %656 = vector.broadcast %655 : vector<8x1xi1> to vector<8x256xi1>
    %657 = arith.select %656, %653, %654 : vector<8x256xi1>, vector<8x256xf32>
    %658 = vector.broadcast %652 : vector<8x1xf32> to vector<8x256xf32>
    %659 = arith.mulf %658, %657 : vector<8x256xf32>
    %660 = arith.addf %632, %641 : vector<8x256xf32>
    %661 = arith.addf %650, %659 : vector<8x256xf32>
    %662 = arith.addf %660, %661 : vector<8x256xf32>
    %c15_i32_328 = arith.constant 15 : i32
    %663 = tpu.dynamic_rotate %584 by %c15_i32_328 dim 1 : vector<8x256xf32>, i32 -> vector<8x256xf32>
    %cst_329 = arith.constant 0.000000e+00 : f32
    %664 = vector.shape_cast %73 : vector<1x256xi1> to vector<1x256xi1>
    %665 = vector.broadcast %664 : vector<1x256xi1> to vector<8x256xi1>
    %666 = vector.broadcast %cst_329 : f32 to vector<8x256xf32>
    %667 = arith.select %665, %663, %666 : vector<8x256xi1>, vector<8x256xf32>
    %c2_330 = arith.constant 2 : index
    %c0_331 = arith.constant 0 : index
    %c0_332 = arith.constant 0 : index
    %c0_333 = arith.constant 0 : index
    %668 = vector.load %arg4[%c2_330, %c0_331, %c0_332, %c0_333] : memref<9x4x8x1xf32, #tpu.memory_space<vmem>>, vector<1x1x8x1xf32>
    %669 = vector.shape_cast %668 : vector<1x1x8x1xf32> to vector<8x1xf32>
    %670 = vector.broadcast %669 : vector<8x1xf32> to vector<8x256xf32>
    %671 = arith.mulf %670, %667 : vector<8x256xf32>
    %c2_334 = arith.constant 2 : index
    %c1_335 = arith.constant 1 : index
    %c0_336 = arith.constant 0 : index
    %c0_337 = arith.constant 0 : index
    %672 = vector.load %arg4[%c2_334, %c1_335, %c0_336, %c0_337] : memref<9x4x8x1xf32, #tpu.memory_space<vmem>>, vector<1x1x8x1xf32>
    %673 = vector.shape_cast %672 : vector<1x1x8x1xf32> to vector<8x1xf32>
    %c7_i32_338 = arith.constant 7 : i32
    %674 = tpu.dynamic_rotate %667 by %c7_i32_338 dim 0 : vector<8x256xf32>, i32 -> vector<8x256xf32>
    %c3_i32_339 = arith.constant 3 : i32
    %675 = tpu.dynamic_rotate %667 by %c3_i32_339 dim 0 : vector<8x256xf32>, i32 -> vector<8x256xf32>
    %676 = vector.shape_cast %189 : vector<8x1xi1> to vector<8x1xi1>
    %677 = vector.broadcast %676 : vector<8x1xi1> to vector<8x256xi1>
    %678 = arith.select %677, %674, %675 : vector<8x256xi1>, vector<8x256xf32>
    %679 = vector.broadcast %673 : vector<8x1xf32> to vector<8x256xf32>
    %680 = arith.mulf %679, %678 : vector<8x256xf32>
    %c2_340 = arith.constant 2 : index
    %c2_341 = arith.constant 2 : index
    %c0_342 = arith.constant 0 : index
    %c0_343 = arith.constant 0 : index
    %681 = vector.load %arg4[%c2_340, %c2_341, %c0_342, %c0_343] : memref<9x4x8x1xf32, #tpu.memory_space<vmem>>, vector<1x1x8x1xf32>
    %682 = vector.shape_cast %681 : vector<1x1x8x1xf32> to vector<8x1xf32>
    %c6_i32_344 = arith.constant 6 : i32
    %683 = tpu.dynamic_rotate %667 by %c6_i32_344 dim 0 : vector<8x256xf32>, i32 -> vector<8x256xf32>
    %c2_i32_345 = arith.constant 2 : i32
    %684 = tpu.dynamic_rotate %667 by %c2_i32_345 dim 0 : vector<8x256xf32>, i32 -> vector<8x256xf32>
    %685 = vector.shape_cast %193 : vector<8x1xi1> to vector<8x1xi1>
    %686 = vector.broadcast %685 : vector<8x1xi1> to vector<8x256xi1>
    %687 = arith.select %686, %683, %684 : vector<8x256xi1>, vector<8x256xf32>
    %688 = vector.broadcast %682 : vector<8x1xf32> to vector<8x256xf32>
    %689 = arith.mulf %688, %687 : vector<8x256xf32>
    %c2_346 = arith.constant 2 : index
    %c3_347 = arith.constant 3 : index
    %c0_348 = arith.constant 0 : index
    %c0_349 = arith.constant 0 : index
    %690 = vector.load %arg4[%c2_346, %c3_347, %c0_348, %c0_349] : memref<9x4x8x1xf32, #tpu.memory_space<vmem>>, vector<1x1x8x1xf32>
    %691 = vector.shape_cast %690 : vector<1x1x8x1xf32> to vector<8x1xf32>
    %c5_i32_350 = arith.constant 5 : i32
    %692 = tpu.dynamic_rotate %667 by %c5_i32_350 dim 0 : vector<8x256xf32>, i32 -> vector<8x256xf32>
    %c1_i32_351 = arith.constant 1 : i32
    %693 = tpu.dynamic_rotate %667 by %c1_i32_351 dim 0 : vector<8x256xf32>, i32 -> vector<8x256xf32>
    %694 = vector.shape_cast %197 : vector<8x1xi1> to vector<8x1xi1>
    %695 = vector.broadcast %694 : vector<8x1xi1> to vector<8x256xi1>
    %696 = arith.select %695, %692, %693 : vector<8x256xi1>, vector<8x256xf32>
    %697 = vector.broadcast %691 : vector<8x1xf32> to vector<8x256xf32>
    %698 = arith.mulf %697, %696 : vector<8x256xf32>
    %699 = arith.addf %671, %680 : vector<8x256xf32>
    %700 = arith.addf %689, %698 : vector<8x256xf32>
    %701 = arith.addf %699, %700 : vector<8x256xf32>
    %c1_i32_352 = arith.constant 1 : i32
    %702 = tpu.dynamic_rotate %584 by %c1_i32_352 dim 1 : vector<8x256xf32>, i32 -> vector<8x256xf32>
    %cst_353 = arith.constant 0.000000e+00 : f32
    %703 = vector.shape_cast %92 : vector<1x256xi1> to vector<1x256xi1>
    %704 = vector.broadcast %703 : vector<1x256xi1> to vector<8x256xi1>
    %705 = vector.broadcast %cst_353 : f32 to vector<8x256xf32>
    %706 = arith.select %704, %702, %705 : vector<8x256xi1>, vector<8x256xf32>
    %c3_354 = arith.constant 3 : index
    %c0_355 = arith.constant 0 : index
    %c0_356 = arith.constant 0 : index
    %c0_357 = arith.constant 0 : index
    %707 = vector.load %arg4[%c3_354, %c0_355, %c0_356, %c0_357] : memref<9x4x8x1xf32, #tpu.memory_space<vmem>>, vector<1x1x8x1xf32>
    %708 = vector.shape_cast %707 : vector<1x1x8x1xf32> to vector<8x1xf32>
    %709 = vector.broadcast %708 : vector<8x1xf32> to vector<8x256xf32>
    %710 = arith.mulf %709, %706 : vector<8x256xf32>
    %c3_358 = arith.constant 3 : index
    %c1_359 = arith.constant 1 : index
    %c0_360 = arith.constant 0 : index
    %c0_361 = arith.constant 0 : index
    %711 = vector.load %arg4[%c3_358, %c1_359, %c0_360, %c0_361] : memref<9x4x8x1xf32, #tpu.memory_space<vmem>>, vector<1x1x8x1xf32>
    %712 = vector.shape_cast %711 : vector<1x1x8x1xf32> to vector<8x1xf32>
    %c7_i32_362 = arith.constant 7 : i32
    %713 = tpu.dynamic_rotate %706 by %c7_i32_362 dim 0 : vector<8x256xf32>, i32 -> vector<8x256xf32>
    %c3_i32_363 = arith.constant 3 : i32
    %714 = tpu.dynamic_rotate %706 by %c3_i32_363 dim 0 : vector<8x256xf32>, i32 -> vector<8x256xf32>
    %715 = vector.shape_cast %189 : vector<8x1xi1> to vector<8x1xi1>
    %716 = vector.broadcast %715 : vector<8x1xi1> to vector<8x256xi1>
    %717 = arith.select %716, %713, %714 : vector<8x256xi1>, vector<8x256xf32>
    %718 = vector.broadcast %712 : vector<8x1xf32> to vector<8x256xf32>
    %719 = arith.mulf %718, %717 : vector<8x256xf32>
    %c3_364 = arith.constant 3 : index
    %c2_365 = arith.constant 2 : index
    %c0_366 = arith.constant 0 : index
    %c0_367 = arith.constant 0 : index
    %720 = vector.load %arg4[%c3_364, %c2_365, %c0_366, %c0_367] : memref<9x4x8x1xf32, #tpu.memory_space<vmem>>, vector<1x1x8x1xf32>
    %721 = vector.shape_cast %720 : vector<1x1x8x1xf32> to vector<8x1xf32>
    %c6_i32_368 = arith.constant 6 : i32
    %722 = tpu.dynamic_rotate %706 by %c6_i32_368 dim 0 : vector<8x256xf32>, i32 -> vector<8x256xf32>
    %c2_i32_369 = arith.constant 2 : i32
    %723 = tpu.dynamic_rotate %706 by %c2_i32_369 dim 0 : vector<8x256xf32>, i32 -> vector<8x256xf32>
    %724 = vector.shape_cast %193 : vector<8x1xi1> to vector<8x1xi1>
    %725 = vector.broadcast %724 : vector<8x1xi1> to vector<8x256xi1>
    %726 = arith.select %725, %722, %723 : vector<8x256xi1>, vector<8x256xf32>
    %727 = vector.broadcast %721 : vector<8x1xf32> to vector<8x256xf32>
    %728 = arith.mulf %727, %726 : vector<8x256xf32>
    %c3_370 = arith.constant 3 : index
    %c3_371 = arith.constant 3 : index
    %c0_372 = arith.constant 0 : index
    %c0_373 = arith.constant 0 : index
    %729 = vector.load %arg4[%c3_370, %c3_371, %c0_372, %c0_373] : memref<9x4x8x1xf32, #tpu.memory_space<vmem>>, vector<1x1x8x1xf32>
    %730 = vector.shape_cast %729 : vector<1x1x8x1xf32> to vector<8x1xf32>
    %c5_i32_374 = arith.constant 5 : i32
    %731 = tpu.dynamic_rotate %706 by %c5_i32_374 dim 0 : vector<8x256xf32>, i32 -> vector<8x256xf32>
    %c1_i32_375 = arith.constant 1 : i32
    %732 = tpu.dynamic_rotate %706 by %c1_i32_375 dim 0 : vector<8x256xf32>, i32 -> vector<8x256xf32>
    %733 = vector.shape_cast %197 : vector<8x1xi1> to vector<8x1xi1>
    %734 = vector.broadcast %733 : vector<8x1xi1> to vector<8x256xi1>
    %735 = arith.select %734, %731, %732 : vector<8x256xi1>, vector<8x256xf32>
    %736 = vector.broadcast %730 : vector<8x1xf32> to vector<8x256xf32>
    %737 = arith.mulf %736, %735 : vector<8x256xf32>
    %738 = arith.addf %710, %719 : vector<8x256xf32>
    %739 = arith.addf %728, %737 : vector<8x256xf32>
    %740 = arith.addf %738, %739 : vector<8x256xf32>
    %741 = arith.addf %623, %740 : vector<8x256xf32>
    %c4_376 = arith.constant 4 : index
    %c0_377 = arith.constant 0 : index
    %c0_378 = arith.constant 0 : index
    %c0_379 = arith.constant 0 : index
    %742 = vector.load %arg4[%c4_376, %c0_377, %c0_378, %c0_379] : memref<9x4x8x1xf32, #tpu.memory_space<vmem>>, vector<1x1x8x1xf32>
    %743 = vector.shape_cast %742 : vector<1x1x8x1xf32> to vector<8x1xf32>
    %744 = vector.broadcast %743 : vector<8x1xf32> to vector<8x256xf32>
    %745 = arith.mulf %744, %584 : vector<8x256xf32>
    %c4_380 = arith.constant 4 : index
    %c1_381 = arith.constant 1 : index
    %c0_382 = arith.constant 0 : index
    %c0_383 = arith.constant 0 : index
    %746 = vector.load %arg4[%c4_380, %c1_381, %c0_382, %c0_383] : memref<9x4x8x1xf32, #tpu.memory_space<vmem>>, vector<1x1x8x1xf32>
    %747 = vector.shape_cast %746 : vector<1x1x8x1xf32> to vector<8x1xf32>
    %c7_i32_384 = arith.constant 7 : i32
    %748 = tpu.dynamic_rotate %584 by %c7_i32_384 dim 0 : vector<8x256xf32>, i32 -> vector<8x256xf32>
    %c3_i32_385 = arith.constant 3 : i32
    %749 = tpu.dynamic_rotate %584 by %c3_i32_385 dim 0 : vector<8x256xf32>, i32 -> vector<8x256xf32>
    %750 = vector.shape_cast %189 : vector<8x1xi1> to vector<8x1xi1>
    %751 = vector.broadcast %750 : vector<8x1xi1> to vector<8x256xi1>
    %752 = arith.select %751, %748, %749 : vector<8x256xi1>, vector<8x256xf32>
    %753 = vector.broadcast %747 : vector<8x1xf32> to vector<8x256xf32>
    %754 = arith.mulf %753, %752 : vector<8x256xf32>
    %c4_386 = arith.constant 4 : index
    %c2_387 = arith.constant 2 : index
    %c0_388 = arith.constant 0 : index
    %c0_389 = arith.constant 0 : index
    %755 = vector.load %arg4[%c4_386, %c2_387, %c0_388, %c0_389] : memref<9x4x8x1xf32, #tpu.memory_space<vmem>>, vector<1x1x8x1xf32>
    %756 = vector.shape_cast %755 : vector<1x1x8x1xf32> to vector<8x1xf32>
    %c6_i32_390 = arith.constant 6 : i32
    %757 = tpu.dynamic_rotate %584 by %c6_i32_390 dim 0 : vector<8x256xf32>, i32 -> vector<8x256xf32>
    %c2_i32_391 = arith.constant 2 : i32
    %758 = tpu.dynamic_rotate %584 by %c2_i32_391 dim 0 : vector<8x256xf32>, i32 -> vector<8x256xf32>
    %759 = vector.shape_cast %193 : vector<8x1xi1> to vector<8x1xi1>
    %760 = vector.broadcast %759 : vector<8x1xi1> to vector<8x256xi1>
    %761 = arith.select %760, %757, %758 : vector<8x256xi1>, vector<8x256xf32>
    %762 = vector.broadcast %756 : vector<8x1xf32> to vector<8x256xf32>
    %763 = arith.mulf %762, %761 : vector<8x256xf32>
    %c4_392 = arith.constant 4 : index
    %c3_393 = arith.constant 3 : index
    %c0_394 = arith.constant 0 : index
    %c0_395 = arith.constant 0 : index
    %764 = vector.load %arg4[%c4_392, %c3_393, %c0_394, %c0_395] : memref<9x4x8x1xf32, #tpu.memory_space<vmem>>, vector<1x1x8x1xf32>
    %765 = vector.shape_cast %764 : vector<1x1x8x1xf32> to vector<8x1xf32>
    %c5_i32_396 = arith.constant 5 : i32
    %766 = tpu.dynamic_rotate %584 by %c5_i32_396 dim 0 : vector<8x256xf32>, i32 -> vector<8x256xf32>
    %c1_i32_397 = arith.constant 1 : i32
    %767 = tpu.dynamic_rotate %584 by %c1_i32_397 dim 0 : vector<8x256xf32>, i32 -> vector<8x256xf32>
    %768 = vector.shape_cast %197 : vector<8x1xi1> to vector<8x1xi1>
    %769 = vector.broadcast %768 : vector<8x1xi1> to vector<8x256xi1>
    %770 = arith.select %769, %766, %767 : vector<8x256xi1>, vector<8x256xf32>
    %771 = vector.broadcast %765 : vector<8x1xf32> to vector<8x256xf32>
    %772 = arith.mulf %771, %770 : vector<8x256xf32>
    %773 = arith.addf %745, %754 : vector<8x256xf32>
    %774 = arith.addf %763, %772 : vector<8x256xf32>
    %775 = arith.addf %773, %774 : vector<8x256xf32>
    %776 = arith.addf %662, %775 : vector<8x256xf32>
    %c255_i32_398 = arith.constant 255 : i32
    %777 = tpu.dynamic_rotate %584 by %c255_i32_398 dim 1 : vector<8x256xf32>, i32 -> vector<8x256xf32>
    %cst_399 = arith.constant 0.000000e+00 : f32
    %778 = vector.shape_cast %111 : vector<1x256xi1> to vector<1x256xi1>
    %779 = vector.broadcast %778 : vector<1x256xi1> to vector<8x256xi1>
    %780 = vector.broadcast %cst_399 : f32 to vector<8x256xf32>
    %781 = arith.select %779, %777, %780 : vector<8x256xi1>, vector<8x256xf32>
    %c5_400 = arith.constant 5 : index
    %c0_401 = arith.constant 0 : index
    %c0_402 = arith.constant 0 : index
    %c0_403 = arith.constant 0 : index
    %782 = vector.load %arg4[%c5_400, %c0_401, %c0_402, %c0_403] : memref<9x4x8x1xf32, #tpu.memory_space<vmem>>, vector<1x1x8x1xf32>
    %783 = vector.shape_cast %782 : vector<1x1x8x1xf32> to vector<8x1xf32>
    %784 = vector.broadcast %783 : vector<8x1xf32> to vector<8x256xf32>
    %785 = arith.mulf %784, %781 : vector<8x256xf32>
    %c5_404 = arith.constant 5 : index
    %c1_405 = arith.constant 1 : index
    %c0_406 = arith.constant 0 : index
    %c0_407 = arith.constant 0 : index
    %786 = vector.load %arg4[%c5_404, %c1_405, %c0_406, %c0_407] : memref<9x4x8x1xf32, #tpu.memory_space<vmem>>, vector<1x1x8x1xf32>
    %787 = vector.shape_cast %786 : vector<1x1x8x1xf32> to vector<8x1xf32>
    %c7_i32_408 = arith.constant 7 : i32
    %788 = tpu.dynamic_rotate %781 by %c7_i32_408 dim 0 : vector<8x256xf32>, i32 -> vector<8x256xf32>
    %c3_i32_409 = arith.constant 3 : i32
    %789 = tpu.dynamic_rotate %781 by %c3_i32_409 dim 0 : vector<8x256xf32>, i32 -> vector<8x256xf32>
    %790 = vector.shape_cast %189 : vector<8x1xi1> to vector<8x1xi1>
    %791 = vector.broadcast %790 : vector<8x1xi1> to vector<8x256xi1>
    %792 = arith.select %791, %788, %789 : vector<8x256xi1>, vector<8x256xf32>
    %793 = vector.broadcast %787 : vector<8x1xf32> to vector<8x256xf32>
    %794 = arith.mulf %793, %792 : vector<8x256xf32>
    %c5_410 = arith.constant 5 : index
    %c2_411 = arith.constant 2 : index
    %c0_412 = arith.constant 0 : index
    %c0_413 = arith.constant 0 : index
    %795 = vector.load %arg4[%c5_410, %c2_411, %c0_412, %c0_413] : memref<9x4x8x1xf32, #tpu.memory_space<vmem>>, vector<1x1x8x1xf32>
    %796 = vector.shape_cast %795 : vector<1x1x8x1xf32> to vector<8x1xf32>
    %c6_i32_414 = arith.constant 6 : i32
    %797 = tpu.dynamic_rotate %781 by %c6_i32_414 dim 0 : vector<8x256xf32>, i32 -> vector<8x256xf32>
    %c2_i32_415 = arith.constant 2 : i32
    %798 = tpu.dynamic_rotate %781 by %c2_i32_415 dim 0 : vector<8x256xf32>, i32 -> vector<8x256xf32>
    %799 = vector.shape_cast %193 : vector<8x1xi1> to vector<8x1xi1>
    %800 = vector.broadcast %799 : vector<8x1xi1> to vector<8x256xi1>
    %801 = arith.select %800, %797, %798 : vector<8x256xi1>, vector<8x256xf32>
    %802 = vector.broadcast %796 : vector<8x1xf32> to vector<8x256xf32>
    %803 = arith.mulf %802, %801 : vector<8x256xf32>
    %c5_416 = arith.constant 5 : index
    %c3_417 = arith.constant 3 : index
    %c0_418 = arith.constant 0 : index
    %c0_419 = arith.constant 0 : index
    %804 = vector.load %arg4[%c5_416, %c3_417, %c0_418, %c0_419] : memref<9x4x8x1xf32, #tpu.memory_space<vmem>>, vector<1x1x8x1xf32>
    %805 = vector.shape_cast %804 : vector<1x1x8x1xf32> to vector<8x1xf32>
    %c5_i32_420 = arith.constant 5 : i32
    %806 = tpu.dynamic_rotate %781 by %c5_i32_420 dim 0 : vector<8x256xf32>, i32 -> vector<8x256xf32>
    %c1_i32_421 = arith.constant 1 : i32
    %807 = tpu.dynamic_rotate %781 by %c1_i32_421 dim 0 : vector<8x256xf32>, i32 -> vector<8x256xf32>
    %808 = vector.shape_cast %197 : vector<8x1xi1> to vector<8x1xi1>
    %809 = vector.broadcast %808 : vector<8x1xi1> to vector<8x256xi1>
    %810 = arith.select %809, %806, %807 : vector<8x256xi1>, vector<8x256xf32>
    %811 = vector.broadcast %805 : vector<8x1xf32> to vector<8x256xf32>
    %812 = arith.mulf %811, %810 : vector<8x256xf32>
    %813 = arith.addf %785, %794 : vector<8x256xf32>
    %814 = arith.addf %803, %812 : vector<8x256xf32>
    %815 = arith.addf %813, %814 : vector<8x256xf32>
    %816 = arith.addf %701, %815 : vector<8x256xf32>
    %c241_i32_422 = arith.constant 241 : i32
    %817 = tpu.dynamic_rotate %584 by %c241_i32_422 dim 1 : vector<8x256xf32>, i32 -> vector<8x256xf32>
    %cst_423 = arith.constant 0.000000e+00 : f32
    %818 = vector.shape_cast %130 : vector<1x256xi1> to vector<1x256xi1>
    %819 = vector.broadcast %818 : vector<1x256xi1> to vector<8x256xi1>
    %820 = vector.broadcast %cst_423 : f32 to vector<8x256xf32>
    %821 = arith.select %819, %817, %820 : vector<8x256xi1>, vector<8x256xf32>
    %c6_424 = arith.constant 6 : index
    %c0_425 = arith.constant 0 : index
    %c0_426 = arith.constant 0 : index
    %c0_427 = arith.constant 0 : index
    %822 = vector.load %arg4[%c6_424, %c0_425, %c0_426, %c0_427] : memref<9x4x8x1xf32, #tpu.memory_space<vmem>>, vector<1x1x8x1xf32>
    %823 = vector.shape_cast %822 : vector<1x1x8x1xf32> to vector<8x1xf32>
    %824 = vector.broadcast %823 : vector<8x1xf32> to vector<8x256xf32>
    %825 = arith.mulf %824, %821 : vector<8x256xf32>
    %c6_428 = arith.constant 6 : index
    %c1_429 = arith.constant 1 : index
    %c0_430 = arith.constant 0 : index
    %c0_431 = arith.constant 0 : index
    %826 = vector.load %arg4[%c6_428, %c1_429, %c0_430, %c0_431] : memref<9x4x8x1xf32, #tpu.memory_space<vmem>>, vector<1x1x8x1xf32>
    %827 = vector.shape_cast %826 : vector<1x1x8x1xf32> to vector<8x1xf32>
    %c7_i32_432 = arith.constant 7 : i32
    %828 = tpu.dynamic_rotate %821 by %c7_i32_432 dim 0 : vector<8x256xf32>, i32 -> vector<8x256xf32>
    %c3_i32_433 = arith.constant 3 : i32
    %829 = tpu.dynamic_rotate %821 by %c3_i32_433 dim 0 : vector<8x256xf32>, i32 -> vector<8x256xf32>
    %830 = vector.shape_cast %189 : vector<8x1xi1> to vector<8x1xi1>
    %831 = vector.broadcast %830 : vector<8x1xi1> to vector<8x256xi1>
    %832 = arith.select %831, %828, %829 : vector<8x256xi1>, vector<8x256xf32>
    %833 = vector.broadcast %827 : vector<8x1xf32> to vector<8x256xf32>
    %834 = arith.mulf %833, %832 : vector<8x256xf32>
    %c6_434 = arith.constant 6 : index
    %c2_435 = arith.constant 2 : index
    %c0_436 = arith.constant 0 : index
    %c0_437 = arith.constant 0 : index
    %835 = vector.load %arg4[%c6_434, %c2_435, %c0_436, %c0_437] : memref<9x4x8x1xf32, #tpu.memory_space<vmem>>, vector<1x1x8x1xf32>
    %836 = vector.shape_cast %835 : vector<1x1x8x1xf32> to vector<8x1xf32>
    %c6_i32_438 = arith.constant 6 : i32
    %837 = tpu.dynamic_rotate %821 by %c6_i32_438 dim 0 : vector<8x256xf32>, i32 -> vector<8x256xf32>
    %c2_i32_439 = arith.constant 2 : i32
    %838 = tpu.dynamic_rotate %821 by %c2_i32_439 dim 0 : vector<8x256xf32>, i32 -> vector<8x256xf32>
    %839 = vector.shape_cast %193 : vector<8x1xi1> to vector<8x1xi1>
    %840 = vector.broadcast %839 : vector<8x1xi1> to vector<8x256xi1>
    %841 = arith.select %840, %837, %838 : vector<8x256xi1>, vector<8x256xf32>
    %842 = vector.broadcast %836 : vector<8x1xf32> to vector<8x256xf32>
    %843 = arith.mulf %842, %841 : vector<8x256xf32>
    %c6_440 = arith.constant 6 : index
    %c3_441 = arith.constant 3 : index
    %c0_442 = arith.constant 0 : index
    %c0_443 = arith.constant 0 : index
    %844 = vector.load %arg4[%c6_440, %c3_441, %c0_442, %c0_443] : memref<9x4x8x1xf32, #tpu.memory_space<vmem>>, vector<1x1x8x1xf32>
    %845 = vector.shape_cast %844 : vector<1x1x8x1xf32> to vector<8x1xf32>
    %c5_i32_444 = arith.constant 5 : i32
    %846 = tpu.dynamic_rotate %821 by %c5_i32_444 dim 0 : vector<8x256xf32>, i32 -> vector<8x256xf32>
    %c1_i32_445 = arith.constant 1 : i32
    %847 = tpu.dynamic_rotate %821 by %c1_i32_445 dim 0 : vector<8x256xf32>, i32 -> vector<8x256xf32>
    %848 = vector.shape_cast %197 : vector<8x1xi1> to vector<8x1xi1>
    %849 = vector.broadcast %848 : vector<8x1xi1> to vector<8x256xi1>
    %850 = arith.select %849, %846, %847 : vector<8x256xi1>, vector<8x256xf32>
    %851 = vector.broadcast %845 : vector<8x1xf32> to vector<8x256xf32>
    %852 = arith.mulf %851, %850 : vector<8x256xf32>
    %853 = arith.addf %825, %834 : vector<8x256xf32>
    %854 = arith.addf %843, %852 : vector<8x256xf32>
    %855 = arith.addf %853, %854 : vector<8x256xf32>
    %856 = arith.addf %741, %855 : vector<8x256xf32>
    %c240_i32_446 = arith.constant 240 : i32
    %857 = tpu.dynamic_rotate %584 by %c240_i32_446 dim 1 : vector<8x256xf32>, i32 -> vector<8x256xf32>
    %cst_447 = arith.constant 0.000000e+00 : f32
    %858 = vector.shape_cast %149 : vector<1x256xi1> to vector<1x256xi1>
    %859 = vector.broadcast %858 : vector<1x256xi1> to vector<8x256xi1>
    %860 = vector.broadcast %cst_447 : f32 to vector<8x256xf32>
    %861 = arith.select %859, %857, %860 : vector<8x256xi1>, vector<8x256xf32>
    %c7_448 = arith.constant 7 : index
    %c0_449 = arith.constant 0 : index
    %c0_450 = arith.constant 0 : index
    %c0_451 = arith.constant 0 : index
    %862 = vector.load %arg4[%c7_448, %c0_449, %c0_450, %c0_451] : memref<9x4x8x1xf32, #tpu.memory_space<vmem>>, vector<1x1x8x1xf32>
    %863 = vector.shape_cast %862 : vector<1x1x8x1xf32> to vector<8x1xf32>
    %864 = vector.broadcast %863 : vector<8x1xf32> to vector<8x256xf32>
    %865 = arith.mulf %864, %861 : vector<8x256xf32>
    %c7_452 = arith.constant 7 : index
    %c1_453 = arith.constant 1 : index
    %c0_454 = arith.constant 0 : index
    %c0_455 = arith.constant 0 : index
    %866 = vector.load %arg4[%c7_452, %c1_453, %c0_454, %c0_455] : memref<9x4x8x1xf32, #tpu.memory_space<vmem>>, vector<1x1x8x1xf32>
    %867 = vector.shape_cast %866 : vector<1x1x8x1xf32> to vector<8x1xf32>
    %c7_i32_456 = arith.constant 7 : i32
    %868 = tpu.dynamic_rotate %861 by %c7_i32_456 dim 0 : vector<8x256xf32>, i32 -> vector<8x256xf32>
    %c3_i32_457 = arith.constant 3 : i32
    %869 = tpu.dynamic_rotate %861 by %c3_i32_457 dim 0 : vector<8x256xf32>, i32 -> vector<8x256xf32>
    %870 = vector.shape_cast %189 : vector<8x1xi1> to vector<8x1xi1>
    %871 = vector.broadcast %870 : vector<8x1xi1> to vector<8x256xi1>
    %872 = arith.select %871, %868, %869 : vector<8x256xi1>, vector<8x256xf32>
    %873 = vector.broadcast %867 : vector<8x1xf32> to vector<8x256xf32>
    %874 = arith.mulf %873, %872 : vector<8x256xf32>
    %c7_458 = arith.constant 7 : index
    %c2_459 = arith.constant 2 : index
    %c0_460 = arith.constant 0 : index
    %c0_461 = arith.constant 0 : index
    %875 = vector.load %arg4[%c7_458, %c2_459, %c0_460, %c0_461] : memref<9x4x8x1xf32, #tpu.memory_space<vmem>>, vector<1x1x8x1xf32>
    %876 = vector.shape_cast %875 : vector<1x1x8x1xf32> to vector<8x1xf32>
    %c6_i32_462 = arith.constant 6 : i32
    %877 = tpu.dynamic_rotate %861 by %c6_i32_462 dim 0 : vector<8x256xf32>, i32 -> vector<8x256xf32>
    %c2_i32_463 = arith.constant 2 : i32
    %878 = tpu.dynamic_rotate %861 by %c2_i32_463 dim 0 : vector<8x256xf32>, i32 -> vector<8x256xf32>
    %879 = vector.shape_cast %193 : vector<8x1xi1> to vector<8x1xi1>
    %880 = vector.broadcast %879 : vector<8x1xi1> to vector<8x256xi1>
    %881 = arith.select %880, %877, %878 : vector<8x256xi1>, vector<8x256xf32>
    %882 = vector.broadcast %876 : vector<8x1xf32> to vector<8x256xf32>
    %883 = arith.mulf %882, %881 : vector<8x256xf32>
    %c7_464 = arith.constant 7 : index
    %c3_465 = arith.constant 3 : index
    %c0_466 = arith.constant 0 : index
    %c0_467 = arith.constant 0 : index
    %884 = vector.load %arg4[%c7_464, %c3_465, %c0_466, %c0_467] : memref<9x4x8x1xf32, #tpu.memory_space<vmem>>, vector<1x1x8x1xf32>
    %885 = vector.shape_cast %884 : vector<1x1x8x1xf32> to vector<8x1xf32>
    %c5_i32_468 = arith.constant 5 : i32
    %886 = tpu.dynamic_rotate %861 by %c5_i32_468 dim 0 : vector<8x256xf32>, i32 -> vector<8x256xf32>
    %c1_i32_469 = arith.constant 1 : i32
    %887 = tpu.dynamic_rotate %861 by %c1_i32_469 dim 0 : vector<8x256xf32>, i32 -> vector<8x256xf32>
    %888 = vector.shape_cast %197 : vector<8x1xi1> to vector<8x1xi1>
    %889 = vector.broadcast %888 : vector<8x1xi1> to vector<8x256xi1>
    %890 = arith.select %889, %886, %887 : vector<8x256xi1>, vector<8x256xf32>
    %891 = vector.broadcast %885 : vector<8x1xf32> to vector<8x256xf32>
    %892 = arith.mulf %891, %890 : vector<8x256xf32>
    %893 = arith.addf %865, %874 : vector<8x256xf32>
    %894 = arith.addf %883, %892 : vector<8x256xf32>
    %895 = arith.addf %893, %894 : vector<8x256xf32>
    %896 = arith.addf %776, %895 : vector<8x256xf32>
    %c239_i32_470 = arith.constant 239 : i32
    %897 = tpu.dynamic_rotate %584 by %c239_i32_470 dim 1 : vector<8x256xf32>, i32 -> vector<8x256xf32>
    %cst_471 = arith.constant 0.000000e+00 : f32
    %898 = vector.shape_cast %168 : vector<1x256xi1> to vector<1x256xi1>
    %899 = vector.broadcast %898 : vector<1x256xi1> to vector<8x256xi1>
    %900 = vector.broadcast %cst_471 : f32 to vector<8x256xf32>
    %901 = arith.select %899, %897, %900 : vector<8x256xi1>, vector<8x256xf32>
    %c8_472 = arith.constant 8 : index
    %c0_473 = arith.constant 0 : index
    %c0_474 = arith.constant 0 : index
    %c0_475 = arith.constant 0 : index
    %902 = vector.load %arg4[%c8_472, %c0_473, %c0_474, %c0_475] : memref<9x4x8x1xf32, #tpu.memory_space<vmem>>, vector<1x1x8x1xf32>
    %903 = vector.shape_cast %902 : vector<1x1x8x1xf32> to vector<8x1xf32>
    %904 = vector.broadcast %903 : vector<8x1xf32> to vector<8x256xf32>
    %905 = arith.mulf %904, %901 : vector<8x256xf32>
    %c8_476 = arith.constant 8 : index
    %c1_477 = arith.constant 1 : index
    %c0_478 = arith.constant 0 : index
    %c0_479 = arith.constant 0 : index
    %906 = vector.load %arg4[%c8_476, %c1_477, %c0_478, %c0_479] : memref<9x4x8x1xf32, #tpu.memory_space<vmem>>, vector<1x1x8x1xf32>
    %907 = vector.shape_cast %906 : vector<1x1x8x1xf32> to vector<8x1xf32>
    %c7_i32_480 = arith.constant 7 : i32
    %908 = tpu.dynamic_rotate %901 by %c7_i32_480 dim 0 : vector<8x256xf32>, i32 -> vector<8x256xf32>
    %c3_i32_481 = arith.constant 3 : i32
    %909 = tpu.dynamic_rotate %901 by %c3_i32_481 dim 0 : vector<8x256xf32>, i32 -> vector<8x256xf32>
    %910 = vector.shape_cast %189 : vector<8x1xi1> to vector<8x1xi1>
    %911 = vector.broadcast %910 : vector<8x1xi1> to vector<8x256xi1>
    %912 = arith.select %911, %908, %909 : vector<8x256xi1>, vector<8x256xf32>
    %913 = vector.broadcast %907 : vector<8x1xf32> to vector<8x256xf32>
    %914 = arith.mulf %913, %912 : vector<8x256xf32>
    %c8_482 = arith.constant 8 : index
    %c2_483 = arith.constant 2 : index
    %c0_484 = arith.constant 0 : index
    %c0_485 = arith.constant 0 : index
    %915 = vector.load %arg4[%c8_482, %c2_483, %c0_484, %c0_485] : memref<9x4x8x1xf32, #tpu.memory_space<vmem>>, vector<1x1x8x1xf32>
    %916 = vector.shape_cast %915 : vector<1x1x8x1xf32> to vector<8x1xf32>
    %c6_i32_486 = arith.constant 6 : i32
    %917 = tpu.dynamic_rotate %901 by %c6_i32_486 dim 0 : vector<8x256xf32>, i32 -> vector<8x256xf32>
    %c2_i32_487 = arith.constant 2 : i32
    %918 = tpu.dynamic_rotate %901 by %c2_i32_487 dim 0 : vector<8x256xf32>, i32 -> vector<8x256xf32>
    %919 = vector.shape_cast %193 : vector<8x1xi1> to vector<8x1xi1>
    %920 = vector.broadcast %919 : vector<8x1xi1> to vector<8x256xi1>
    %921 = arith.select %920, %917, %918 : vector<8x256xi1>, vector<8x256xf32>
    %922 = vector.broadcast %916 : vector<8x1xf32> to vector<8x256xf32>
    %923 = arith.mulf %922, %921 : vector<8x256xf32>
    %c8_488 = arith.constant 8 : index
    %c3_489 = arith.constant 3 : index
    %c0_490 = arith.constant 0 : index
    %c0_491 = arith.constant 0 : index
    %924 = vector.load %arg4[%c8_488, %c3_489, %c0_490, %c0_491] : memref<9x4x8x1xf32, #tpu.memory_space<vmem>>, vector<1x1x8x1xf32>
    %925 = vector.shape_cast %924 : vector<1x1x8x1xf32> to vector<8x1xf32>
    %c5_i32_492 = arith.constant 5 : i32
    %926 = tpu.dynamic_rotate %901 by %c5_i32_492 dim 0 : vector<8x256xf32>, i32 -> vector<8x256xf32>
    %c1_i32_493 = arith.constant 1 : i32
    %927 = tpu.dynamic_rotate %901 by %c1_i32_493 dim 0 : vector<8x256xf32>, i32 -> vector<8x256xf32>
    %928 = vector.shape_cast %197 : vector<8x1xi1> to vector<8x1xi1>
    %929 = vector.broadcast %928 : vector<8x1xi1> to vector<8x256xi1>
    %930 = arith.select %929, %926, %927 : vector<8x256xi1>, vector<8x256xf32>
    %931 = vector.broadcast %925 : vector<8x1xf32> to vector<8x256xf32>
    %932 = arith.mulf %931, %930 : vector<8x256xf32>
    %933 = arith.addf %905, %914 : vector<8x256xf32>
    %934 = arith.addf %923, %932 : vector<8x256xf32>
    %935 = arith.addf %933, %934 : vector<8x256xf32>
    %936 = arith.addf %816, %935 : vector<8x256xf32>
    %937 = arith.addf %856, %896 : vector<8x256xf32>
    %938 = arith.addf %937, %936 : vector<8x256xf32>
    %939 = arith.mulf %938, %938 : vector<8x256xf32>
    %940 = tpu.concatenate %938, %939 in 0 : vector<8x256xf32>, vector<8x256xf32> -> vector<16x256xf32>
    %cst_494 = arith.constant dense<0.000000e+00> : vector<16xf32>
    %941 = vector.multi_reduction <add>, %940, %cst_494 [1] : vector<16x256xf32> to vector<16xf32>
    %942 = vector.shape_cast %941 : vector<16xf32> to vector<16x1xf32>
    %943 = vector.extract_strided_slice %942 {offsets = [0, 0], sizes = [8, 1], strides = [1, 1]} : vector<16x1xf32> to vector<8x1xf32>
    %944 = vector.extract_strided_slice %942 {offsets = [8, 0], sizes = [8, 1], strides = [1, 1]} : vector<16x1xf32> to vector<8x1xf32>
    %c4_i32_495 = arith.constant 4 : i32
    %945 = tpu.dynamic_rotate %943 by %c4_i32_495 dim 0 : vector<8x1xf32>, i32 -> vector<8x1xf32>
    %946 = arith.addf %943, %945 : vector<8x1xf32>
    %c4_i32_496 = arith.constant 4 : i32
    %947 = tpu.dynamic_rotate %944 by %c4_i32_496 dim 0 : vector<8x1xf32>, i32 -> vector<8x1xf32>
    %948 = arith.addf %944, %947 : vector<8x1xf32>
    %cst_497 = arith.constant 0.001953125 : f32
    %949 = vector.broadcast %cst_497 : f32 to vector<8x1xf32>
    %950 = arith.mulf %946, %949 : vector<8x1xf32>
    %cst_498 = arith.constant 0.001953125 : f32
    %951 = vector.broadcast %cst_498 : f32 to vector<8x1xf32>
    %952 = arith.mulf %948, %951 : vector<8x1xf32>
    %953 = arith.mulf %950, %950 : vector<8x1xf32>
    %954 = arith.subf %952, %953 : vector<8x1xf32>
    %cst_499 = arith.constant 0.000000e+00 : f32
    %955 = vector.broadcast %cst_499 : f32 to vector<8x1xf32>
    %956 = arith.maximumf %954, %955 : vector<8x1xf32>
    %c0_500 = arith.constant 0 : index
    %c0_501 = arith.constant 0 : index
    %957 = vector.load %arg5[%c0_500, %c0_501] : memref<8x1xf32, #tpu.memory_space<vmem>>, vector<8x1xf32>
    %cst_502 = arith.constant 9.99999974E-6 : f32
    %958 = vector.broadcast %cst_502 : f32 to vector<8x1xf32>
    %959 = arith.addf %956, %958 : vector<8x1xf32>
    %960 = math.rsqrt %959 : vector<8x1xf32>
    %961 = arith.mulf %957, %960 : vector<8x1xf32>
    %c0_503 = arith.constant 0 : index
    %c0_504 = arith.constant 0 : index
    %962 = vector.load %arg6[%c0_503, %c0_504] : memref<8x1xf32, #tpu.memory_space<vmem>>, vector<8x1xf32>
    %963 = arith.mulf %950, %961 : vector<8x1xf32>
    %964 = arith.subf %962, %963 : vector<8x1xf32>
    %965 = vector.broadcast %961 : vector<8x1xf32> to vector<8x256xf32>
    %966 = arith.mulf %938, %965 : vector<8x256xf32>
    %967 = vector.broadcast %964 : vector<8x1xf32> to vector<8x256xf32>
    %968 = arith.addf %966, %967 : vector<8x256xf32>
    %c0_505 = arith.constant 0 : index
    %c0_506 = arith.constant 0 : index
    %969 = vector.load %arg0[%c0_505, %c0_506] : memref<8x256xf32, #tpu.memory_space<vmem>>, vector<8x256xf32>
    %970 = arith.addf %968, %969 : vector<8x256xf32>
    %cst_507 = arith.constant 0.000000e+00 : f32
    %971 = vector.broadcast %cst_507 : f32 to vector<8x256xf32>
    %972 = arith.maximumf %970, %971 : vector<8x256xf32>
    %c0_508 = arith.constant 0 : index
    %c0_509 = arith.constant 0 : index
    %973 = vector.load %arg7[%c0_508, %c0_509] : memref<8x256xf32, #tpu.memory_space<vmem>>, vector<8x256xf32>
    tpu.vector_store %arg7[%c0_508, %c0_509], %972 {strides = array<i32>} : memref<8x256xf32, #tpu.memory_space<vmem>>, vector<8x256xf32>,
    return
  }
}

</mosaic_0001>

<llo_original>
// kernel: tile.23
$region0: #{tile.23}
  #allocation0 [shape = 's32[1]{0}', space=sflag, size = 0x4, scoped, tag = 'scoped memory for tile.23']
  %s0 = inlined_call_operand.vmem [shape: f32[4], index: 0, kind: input, shape index: {}]
  %s1 = inlined_call_operand.vmem [shape: f32[2,4], index: 1, kind: output, shape index: {}]
  // Predicated region
  $region2: #{tile.23} parent=0 // pred_check
    _
  $region3: #{tile.23} parent=0 // pred_check_branch
    %3 = sbr.rel (0) target = $region5
  $region4: #{tile.23} parent=0 // pred_region
    _
  $region5: #{tile.23} parent=0 // pred_fallthru
    _
  %v4 = vld [vmem:[%s0] ss:$0 sm:$0xff]
  %5 = vst [vmem:[%s1] sm:$0x3] %v4

// kernel: tile.0
$region0: #{tile.0}
  %s0 = inlined_call_operand.vmem [shape: f32[2,4], index: 0, kind: input, shape index: {}]
  %s1 = inlined_call_operand.vmem [shape: f32[8,1], index: 1, kind: output, shape index: {}]
  $region1: #{tile.0} parent=0
    #allocation0 [shape = 'u8[4096]{0}', space=vmem, size = 0x1000, scoped, tag = 'scoped mem for input reshape']
    %s3 = sshll.u32 1, 2
    %s4 = ssub.s32 %s3, 1
    %v5 = vld [vmem:[%s0] sm:%s4]
    %6 = vst [vmem:[#allocation0] sm:%s4] %v5
    %v7 = vld [vmem:[#allocation0] sm:$0x3]
    %vm8 = vcmask 7168
    %9 = vst.msk [vmem:[%s1] ss:$4 sm:$0x3] %vm8, %v7
    %v10 = vld [vmem:[#allocation0] sm:$0x3]
    %11 = vrot.lane.b32.xlu0 %v10, 127
    %v12 = vpop.permute.xlu0 %11
    %vm13 = vcmask 7168
    %s14 = scalar_lea.vmem %s1, 1
    %15 = vst.msk [vmem:[%s14] ss:$4 sm:$0x3] %vm13, %v12
    %v16 = vld [vmem:[#allocation0] sm:$0x3]
    %17 = vrot.lane.b32.xlu0 %v16, 126
    %v18 = vpop.permute.xlu0 %17
    %vm19 = vcmask 7168
    %s20 = scalar_lea.vmem %s1, 2
    %21 = vst.msk [vmem:[%s20] ss:$4 sm:$0x3] %vm19, %v18
    %v22 = vld [vmem:[#allocation0] sm:$0x3]
    %23 = vrot.lane.b32.xlu0 %v22, 125
    %v24 = vpop.permute.xlu0 %23
    %vm25 = vcmask 7168
    %s26 = scalar_lea.vmem %s1, 3
    %27 = vst.msk [vmem:[%s26] ss:$4 sm:$0x3] %vm25, %v24

// kernel: resnet_block_encoder.1
$region0: #{resnet_block_encoder.1}
  #allocation0 [shape = 'u32[]', space=smem, size = 0x4, offset = 0x4, fixed_abs, tag = 'smem constant byte address 0x4 - core index']
  #allocation1 [shape = 'u32[144,128]{1,0:T(1,128)}', space=vmem, size = 0x12000, scoped, tag = 'internal scratch']
  %s0 = inlined_call_operand.vmem [shape: f32[8,256], index: 0, kind: input, shape index: {}]
  %s1 = inlined_call_operand.vmem [shape: f32[9,4,8,1], index: 1, kind: input, shape index: {}]
  %s2 = inlined_call_operand.vmem [shape: f32[8,1], index: 2, kind: input, shape index: {}]
  %s3 = inlined_call_operand.vmem [shape: f32[8,1], index: 3, kind: input, shape index: {}]
  %s4 = inlined_call_operand.vmem [shape: f32[9,4,8,1], index: 4, kind: input, shape index: {}]
  %s5 = inlined_call_operand.vmem [shape: f32[8,1], index: 5, kind: input, shape index: {}]
  %s6 = inlined_call_operand.vmem [shape: f32[8,1], index: 6, kind: input, shape index: {}]
  %s7 = inlined_call_operand.vmem [shape: f32[8,256], index: 7, kind: output, shape index: {}]
  %s8 = sld [smem:[#allocation0]]
  $region38: #{resnet_block_encoder.1} parent=0
    _
  %s10 = ssub.s32 1, %s8
  %s11 = scalar_select 0, %s10, %s8
  // Predicated region
  $region2: #{resnet_block_encoder.1} parent=0 // pred_check
    _
  $region3: #{resnet_block_encoder.1} parent=0 // pred_check_branch
    %13 = sbr.rel (0) target = $region5
  $region4: #{resnet_block_encoder.1} parent=0 // pred_region
    _
  $region5: #{resnet_block_encoder.1} parent=0 // pred_fallthru
    _
  // Predicated region
  $region6: #{resnet_block_encoder.1} parent=0 // pred_check
    _
  $region7: #{resnet_block_encoder.1} parent=0 // pred_check_branch
    %15 = sbr.rel (0) target = $region9
  $region8: #{resnet_block_encoder.1} parent=0 // pred_region
    _
  $region9: #{resnet_block_encoder.1} parent=0 // pred_fallthru
    _
  // Predicated region
  $region10: #{resnet_block_encoder.1} parent=0 // pred_check
    _
  $region11: #{resnet_block_encoder.1} parent=0 // pred_check_branch
    %17 = sbr.rel (0) target = $region13
  $region12: #{resnet_block_encoder.1} parent=0 // pred_region
    _
  $region13: #{resnet_block_encoder.1} parent=0 // pred_fallthru
    _
  // Predicated region
  $region14: #{resnet_block_encoder.1} parent=0 // pred_check
    _
  $region15: #{resnet_block_encoder.1} parent=0 // pred_check_branch
    %19 = sbr.rel (0) target = $region17
  $region16: #{resnet_block_encoder.1} parent=0 // pred_region
    _
  $region17: #{resnet_block_encoder.1} parent=0 // pred_fallthru
    _
  // Predicated region
  $region18: #{resnet_block_encoder.1} parent=0 // pred_check
    _
  $region19: #{resnet_block_encoder.1} parent=0 // pred_check_branch
    %21 = sbr.rel (0) target = $region21
  $region20: #{resnet_block_encoder.1} parent=0 // pred_region
    _
  $region21: #{resnet_block_encoder.1} parent=0 // pred_fallthru
    _
  // Predicated region
  $region22: #{resnet_block_encoder.1} parent=0 // pred_check
    _
  $region23: #{resnet_block_encoder.1} parent=0 // pred_check_branch
    %23 = sbr.rel (0) target = $region25
  $region24: #{resnet_block_encoder.1} parent=0 // pred_region
    _
  $region25: #{resnet_block_encoder.1} parent=0 // pred_fallthru
    _
  // Predicated region
  $region26: #{resnet_block_encoder.1} parent=0 // pred_check
    _
  $region27: #{resnet_block_encoder.1} parent=0 // pred_check_branch
    %25 = sbr.rel (0) target = $region29
  $region28: #{resnet_block_encoder.1} parent=0 // pred_region
    _
  $region29: #{resnet_block_encoder.1} parent=0 // pred_fallthru
    _
  %v26 = vlaneseq
  %v27 = vand.u32 %v26, 127
  %v28 = vadd.s32 %v27, 128
  %vm29 = vcmp.lt.s32.totalorder %v27, 0
  %v30 = vsub.s32 0, %v27
  %v31 = vsel %vm29, %v30, %v27
  %v32 = vshrl.u32 %v31, 4
  %v33 = vand.u32 %v31, 15
  %v34 = vsub.s32 0, %v33
  %v35 = vsel %vm29, %v34, %v33
  %vm36 = vcmp.lt.s32.totalorder %v28, 0
  %v37 = vsub.s32 0, %v28
  %v38 = vsel %vm36, %v37, %v28
  %v39 = vshrl.u32 %v38, 4
  %v40 = vand.u32 %v38, 15
  %v41 = vsub.s32 0, %v40
  %v42 = vsel %vm36, %v41, %v40
  %vm43 = vcmp.ne.s32.totalorder %v35, 0
  %vm44 = vcmp.ne.s32.totalorder %v42, 0
  %vm45 = vcmp.lt.s32.totalorder %v35, 0
  %vm46 = vcmp.lt.s32.totalorder %v42, 0
  %vm47 = vmand %vm45, %vm43
  %vm48 = vmand %vm46, %vm44
  %v49 = vadd.s32 %v35, 16
  %v50 = vadd.s32 %v42, 16
  %v51 = vsel %vm47, %v49, %v35
  %v52 = vsel %vm48, %v50, %v42
  %v53 = vadd.s32 %v27, 4294967279
  %v54 = vadd.s32 %v28, 4294967279
  %vm55 = vcmp.ge.s32.totalorder %v53, 0
  %vm56 = vcmp.ge.s32.totalorder %v54, 0
  %vm57 = vcmp.lt.s32.totalorder %v53, 256
  %vm58 = vcmp.lt.s32.totalorder %v54, 256
  %vm59 = vmand %vm55, %vm57
  %vm60 = vmand %vm56, %vm58
  %v61 = vadd.s32 %v51, 4294967295
  %v62 = vadd.s32 %v52, 4294967295
  %vm63 = vcmp.ge.s32.totalorder %v61, 0
  %vm64 = vcmp.ge.s32.totalorder %v62, 0
  %vm65 = vmand %vm59, %vm63
  %vm66 = vmand %vm60, %vm64
  %vm67 = vcmp.lt.s32.totalorder %v61, 16
  %vm68 = vcmp.lt.s32.totalorder %v62, 16
  %vm69 = vmand %vm65, %vm67
  %vm70 = vmand %vm66, %vm68
  %v71 = vadd.s32 %v27, 4294967280
  %v72 = vadd.s32 %v28, 4294967280
  %vm73 = vcmp.ge.s32.totalorder %v71, 0
  %vm74 = vcmp.ge.s32.totalorder %v72, 0
  %vm75 = vcmp.lt.s32.totalorder %v71, 256
  %vm76 = vcmp.lt.s32.totalorder %v72, 256
  %vm77 = vmand %vm73, %vm75
  %vm78 = vmand %vm74, %vm76
  %vm79 = vcmp.ge.s32.totalorder %v51, 0
  %vm80 = vcmp.ge.s32.totalorder %v52, 0
  %vm81 = vmand %vm77, %vm79
  %vm82 = vmand %vm78, %vm80
  %vm83 = vcmp.lt.s32.totalorder %v51, 16
  %vm84 = vcmp.lt.s32.totalorder %v52, 16
  %vm85 = vmand %vm81, %vm83
  %vm86 = vmand %vm82, %vm84
  %v87 = vadd.s32 %v27, 4294967281
  %v88 = vadd.s32 %v28, 4294967281
  %vm89 = vcmp.ge.s32.totalorder %v87, 0
  %vm90 = vcmp.ge.s32.totalorder %v88, 0
  %vm91 = vcmp.lt.s32.totalorder %v87, 256
  %vm92 = vcmp.lt.s32.totalorder %v88, 256
  %vm93 = vmand %vm89, %vm91
  %vm94 = vmand %vm90, %vm92
  %v95 = vadd.s32 %v51, 1
  %v96 = vadd.s32 %v52, 1
  %vm97 = vcmp.ge.s32.totalorder %v95, 0
  %vm98 = vcmp.ge.s32.totalorder %v96, 0
  %vm99 = vmand %vm93, %vm97
  %vm100 = vmand %vm94, %vm98
  %vm101 = vcmp.lt.s32.totalorder %v95, 16
  %vm102 = vcmp.lt.s32.totalorder %v96, 16
  %vm103 = vmand %vm99, %vm101
  %vm104 = vmand %vm100, %vm102
  %v105 = vadd.s32 %v27, 4294967295
  %v106 = vadd.s32 %v28, 4294967295
  %vm107 = vcmp.ge.s32.totalorder %v105, 0
  %vm108 = vcmp.ge.s32.totalorder %v106, 0
  %vm109 = vcmp.lt.s32.totalorder %v105, 256
  %vm110 = vcmp.lt.s32.totalorder %v106, 256
  %vm111 = vmand %vm107, %vm109
  %vm112 = vmand %vm108, %vm110
  %vm113 = vmand %vm111, %vm63
  %vm114 = vmand %vm112, %vm64
  %vm115 = vmand %vm113, %vm67
  %vm116 = vmand %vm114, %vm68
  %v117 = vadd.s32 %v27, 1
  %v118 = vadd.s32 %v28, 1
  %vm119 = vcmp.ge.s32.totalorder %v117, 0
  %vm120 = vcmp.ge.s32.totalorder %v118, 0
  %vm121 = vcmp.lt.s32.totalorder %v117, 256
  %vm122 = vcmp.lt.s32.totalorder %v118, 256
  %vm123 = vmand %vm119, %vm121
  %vm124 = vmand %vm120, %vm122
  %vm125 = vmand %vm123, %vm97
  %vm126 = vmand %vm124, %vm98
  %vm127 = vmand %vm125, %vm101
  %vm128 = vmand %vm126, %vm102
  %v129 = vadd.s32 %v27, 15
  %v130 = vadd.s32 %v28, 15
  %vm131 = vcmp.ge.s32.totalorder %v129, 0
  %vm132 = vcmp.ge.s32.totalorder %v130, 0
  %vm133 = vcmp.lt.s32.totalorder %v129, 256
  %vm134 = vcmp.lt.s32.totalorder %v130, 256
  %vm135 = vmand %vm131, %vm133
  %vm136 = vmand %vm132, %vm134
  %vm137 = vmand %vm135, %vm63
  %vm138 = vmand %vm136, %vm64
  %vm139 = vmand %vm137, %vm67
  %vm140 = vmand %vm138, %vm68
  %v141 = vadd.s32 %v27, 16
  %v142 = vadd.s32 %v28, 16
  %vm143 = vcmp.ge.s32.totalorder %v141, 0
  %vm144 = vcmp.ge.s32.totalorder %v142, 0
  %vm145 = vcmp.lt.s32.totalorder %v141, 256
  %vm146 = vcmp.lt.s32.totalorder %v142, 256
  %vm147 = vmand %vm143, %vm145
  %vm148 = vmand %vm144, %vm146
  %vm149 = vmand %vm147, %vm79
  %vm150 = vmand %vm148, %vm80
  %vm151 = vmand %vm149, %vm83
  %vm152 = vmand %vm150, %vm84
  %v153 = vadd.s32 %v27, 17
  %v154 = vadd.s32 %v28, 17
  %vm155 = vcmp.ge.s32.totalorder %v153, 0
  %vm156 = vcmp.ge.s32.totalorder %v154, 0
  %vm157 = vcmp.lt.s32.totalorder %v153, 256
  %vm158 = vcmp.lt.s32.totalorder %v154, 256
  %vm159 = vmand %vm155, %vm157
  %vm160 = vmand %vm156, %vm158
  %vm161 = vmand %vm159, %vm97
  %vm162 = vmand %vm160, %vm98
  %vm163 = vmand %vm161, %vm101
  %vm164 = vmand %vm162, %vm102
  %v165 = vlaneseq
  %v166 = vshrl.u32 %v165, 7
  %vm167 = vcmp.lt.s32.totalorder %v166, 0
  %v168 = vsub.s32 0, %v166
  %v169 = vsel %vm167, %v168, %v166
  %v170 = vshrl.u32 %v169, 2
  %v171 = vand.u32 %v169, 3
  %v172 = vsub.s32 0, %v171
  %v173 = vsel %vm167, %v172, %v171
  %vm174 = vcmp.ne.s32.totalorder %v173, 0
  %vm175 = vcmp.lt.s32.totalorder %v173, 0
  %vm176 = vmand %vm175, %vm174
  %v177 = vadd.s32 %v173, 4
  %v178 = vsel %vm176, %v177, %v173
  %v179 = vadd.s32 %v178, 1
  %vm180 = vcmp.lt.s32.totalorder %v179, 4
  %v181 = vadd.s32 %v178, 2
  %vm182 = vcmp.lt.s32.totalorder %v181, 4
  %v183 = vadd.s32 %v178, 3
  %vm184 = vcmp.lt.s32.totalorder %v183, 4
  %v185 = vld [vmem:[%s0] sm:$0xff]
  %v186 = vld [vmem:[%s0 + $0x8] sm:$0xff]
  %187 = vrot.lane.b32.xlu0 %v185, 17
  %v188 = vpop.permute.xlu0 %187
  %189 = vrot.lane.b32.xlu0 %v186, 17
  %v190 = vpop.permute.xlu0 %189
  %vm191 = vcmp.lt.s32.totalorder %v27, 17
  %v192 = vsel %vm191, %v188, %v190
  %v193 = vsel %vm191, %v190, %v188
  %v194 = vsel %vm69, 1, 0
  %v195 = vsel %vm70, 1, 0
  %vm196 = vcmp.eq.s32.totalorder %v194, 1
  %vm197 = vcmp.eq.s32.totalorder %v195, 1
  %v198 = vsel %vm196, %v193, 0.0
  %v199 = vsel %vm197, %v192, 0.0
  %v200 = vld [vmem:[%s1] sm:$0xff]
  %202 = vset.pattern.permute.xlu0 0
  %203 = vperm.xlu0 %202, %v200
  %v204 = vpop.permute.xlu0 %203
  %v206 = vmul.f32 %v204, %v198
  %v207 = vmul.f32 %v204, %v199
  %s208 = scalar_lea.vmem %s1, 8
  %v209 = vld [vmem:[%s208] sm:$0xff]
  %v210 = vrot.slane %v198, 1
  %v211 = vrot.slane %v199, 1
  %v212 = vrot.slane %v198, 5
  %v213 = vrot.slane %v199, 5
  %v214 = vsel %vm180, 1, 0
  %vm215 = vcmp.eq.s32.totalorder %v214, 1
  %v216 = vsel %vm215, %v210, %v212
  %v217 = vsel %vm215, %v211, %v213
  %219 = vset.pattern.permute.xlu0 0
  %220 = vperm.xlu0 %219, %v209
  %v221 = vpop.permute.xlu0 %220
  %v223 = vmul.f32 %v221, %v216
  %v224 = vmul.f32 %v221, %v217
  %s225 = scalar_lea.vmem %s1, 16
  %v226 = vld [vmem:[%s225] sm:$0xff]
  %v227 = vrot.slane %v198, 2
  %v228 = vrot.slane %v199, 2
  %v229 = vrot.slane %v198, 6
  %v230 = vrot.slane %v199, 6
  %v231 = vsel %vm182, 1, 0
  %vm232 = vcmp.eq.s32.totalorder %v231, 1
  %v233 = vsel %vm232, %v227, %v229
  %v234 = vsel %vm232, %v228, %v230
  %236 = vset.pattern.permute.xlu0 0
  %237 = vperm.xlu0 %236, %v226
  %v238 = vpop.permute.xlu0 %237
  %v240 = vmul.f32 %v238, %v233
  %v241 = vmul.f32 %v238, %v234
  %s242 = scalar_lea.vmem %s1, 24
  %v243 = vld [vmem:[%s242] sm:$0xff]
  %v244 = vrot.slane %v198, 3
  %v245 = vrot.slane %v199, 3
  %v246 = vrot.slane %v198, 7
  %v247 = vrot.slane %v199, 7
  %v248 = vsel %vm184, 1, 0
  %vm249 = vcmp.eq.s32.totalorder %v248, 1
  %v250 = vsel %vm249, %v244, %v246
  %v251 = vsel %vm249, %v245, %v247
  %253 = vset.pattern.permute.xlu0 0
  %254 = vperm.xlu0 %253, %v243
  %v255 = vpop.permute.xlu0 %254
  %v257 = vmul.f32 %v255, %v250
  %v258 = vmul.f32 %v255, %v251
  %v259 = vadd.f32 %v206, %v223
  %v260 = vadd.f32 %v207, %v224
  %v261 = vadd.f32 %v240, %v257
  %v262 = vadd.f32 %v241, %v258
  %v263 = vadd.f32 %v259, %v261
  %v264 = vadd.f32 %v260, %v262
  %265 = vrot.lane.b32.xlu0 %v185, 16
  %v266 = vpop.permute.xlu0 %265
  %267 = vrot.lane.b32.xlu0 %v186, 16
  %v268 = vpop.permute.xlu0 %267
  %vm269 = vcmp.lt.s32.totalorder %v27, 16
  %v270 = vsel %vm269, %v266, %v268
  %v271 = vsel %vm269, %v268, %v266
  %v272 = vsel %vm85, 1, 0
  %v273 = vsel %vm86, 1, 0
  %vm274 = vcmp.eq.s32.totalorder %v272, 1
  %vm275 = vcmp.eq.s32.totalorder %v273, 1
  %v276 = vsel %vm274, %v271, 0.0
  %v277 = vsel %vm275, %v270, 0.0
  %s278 = scalar_lea.vmem %s1, 32
  %v279 = vld [vmem:[%s278] sm:$0xff]
  %281 = vset.pattern.permute.xlu0 0
  %282 = vperm.xlu0 %281, %v279
  %v283 = vpop.permute.xlu0 %282
  %v285 = vmul.f32 %v283, %v276
  %v286 = vmul.f32 %v283, %v277
  %s287 = scalar_lea.vmem %s1, 40
  %v288 = vld [vmem:[%s287] sm:$0xff]
  %v289 = vrot.slane %v276, 1
  %v290 = vrot.slane %v277, 1
  %v291 = vrot.slane %v276, 5
  %v292 = vrot.slane %v277, 5
  %v293 = vsel %vm215, %v289, %v291
  %v294 = vsel %vm215, %v290, %v292
  %296 = vset.pattern.permute.xlu0 0
  %297 = vperm.xlu0 %296, %v288
  %v298 = vpop.permute.xlu0 %297
  %v300 = vmul.f32 %v298, %v293
  %v301 = vmul.f32 %v298, %v294
  %s302 = scalar_lea.vmem %s1, 48
  %v303 = vld [vmem:[%s302] sm:$0xff]
  %v304 = vrot.slane %v276, 2
  %v305 = vrot.slane %v277, 2
  %v306 = vrot.slane %v276, 6
  %v307 = vrot.slane %v277, 6
  %v308 = vsel %vm232, %v304, %v306
  %v309 = vsel %vm232, %v305, %v307
  %311 = vset.pattern.permute.xlu0 0
  %312 = vperm.xlu0 %311, %v303
  %v313 = vpop.permute.xlu0 %312
  %v315 = vmul.f32 %v313, %v308
  %v316 = vmul.f32 %v313, %v309
  %s317 = scalar_lea.vmem %s1, 56
  %v318 = vld [vmem:[%s317] sm:$0xff]
  %v319 = vrot.slane %v276, 3
  %v320 = vrot.slane %v277, 3
  %v321 = vrot.slane %v276, 7
  %v322 = vrot.slane %v277, 7
  %v323 = vsel %vm249, %v319, %v321
  %v324 = vsel %vm249, %v320, %v322
  %326 = vset.pattern.permute.xlu0 0
  %327 = vperm.xlu0 %326, %v318
  %v328 = vpop.permute.xlu0 %327
  %v330 = vmul.f32 %v328, %v323
  %v331 = vmul.f32 %v328, %v324
  %v332 = vadd.f32 %v285, %v300
  %v333 = vadd.f32 %v286, %v301
  %v334 = vadd.f32 %v315, %v330
  %v335 = vadd.f32 %v316, %v331
  %v336 = vadd.f32 %v332, %v334
  %v337 = vadd.f32 %v333, %v335
  %338 = vrot.lane.b32.xlu0 %v185, 15
  %v339 = vpop.permute.xlu0 %338
  %340 = vrot.lane.b32.xlu0 %v186, 15
  %v341 = vpop.permute.xlu0 %340
  %vm342 = vcmp.lt.s32.totalorder %v27, 15
  %v343 = vsel %vm342, %v339, %v341
  %v344 = vsel %vm342, %v341, %v339
  %v345 = vsel %vm103, 1, 0
  %v346 = vsel %vm104, 1, 0
  %vm347 = vcmp.eq.s32.totalorder %v345, 1
  %vm348 = vcmp.eq.s32.totalorder %v346, 1
  %v349 = vsel %vm347, %v344, 0.0
  %v350 = vsel %vm348, %v343, 0.0
  %s351 = scalar_lea.vmem %s1, 64
  %v352 = vld [vmem:[%s351] sm:$0xff]
  %354 = vset.pattern.permute.xlu0 0
  %355 = vperm.xlu0 %354, %v352
  %v356 = vpop.permute.xlu0 %355
  %v358 = vmul.f32 %v356, %v349
  %v359 = vmul.f32 %v356, %v350
  %s360 = scalar_lea.vmem %s1, 72
  %v361 = vld [vmem:[%s360] sm:$0xff]
  %v362 = vrot.slane %v349, 1
  %v363 = vrot.slane %v350, 1
  %v364 = vrot.slane %v349, 5
  %v365 = vrot.slane %v350, 5
  %v366 = vsel %vm215, %v362, %v364
  %v367 = vsel %vm215, %v363, %v365
  %369 = vset.pattern.permute.xlu0 0
  %370 = vperm.xlu0 %369, %v361
  %v371 = vpop.permute.xlu0 %370
  %v373 = vmul.f32 %v371, %v366
  %v374 = vmul.f32 %v371, %v367
  %s375 = scalar_lea.vmem %s1, 80
  %v376 = vld [vmem:[%s375] sm:$0xff]
  %v377 = vrot.slane %v349, 2
  %v378 = vrot.slane %v350, 2
  %v379 = vrot.slane %v349, 6
  %v380 = vrot.slane %v350, 6
  %v381 = vsel %vm232, %v377, %v379
  %v382 = vsel %vm232, %v378, %v380
  %384 = vset.pattern.permute.xlu0 0
  %385 = vperm.xlu0 %384, %v376
  %v386 = vpop.permute.xlu0 %385
  %v388 = vmul.f32 %v386, %v381
  %v389 = vmul.f32 %v386, %v382
  %s390 = scalar_lea.vmem %s1, 88
  %v391 = vld [vmem:[%s390] sm:$0xff]
  %v392 = vrot.slane %v349, 3
  %v393 = vrot.slane %v350, 3
  %v394 = vrot.slane %v349, 7
  %v395 = vrot.slane %v350, 7
  %v396 = vsel %vm249, %v392, %v394
  %v397 = vsel %vm249, %v393, %v395
  %399 = vset.pattern.permute.xlu0 0
  %400 = vperm.xlu0 %399, %v391
  %v401 = vpop.permute.xlu0 %400
  %v403 = vmul.f32 %v401, %v396
  %v404 = vmul.f32 %v401, %v397
  %v405 = vadd.f32 %v358, %v373
  %v406 = vadd.f32 %v359, %v374
  %v407 = vadd.f32 %v388, %v403
  %v408 = vadd.f32 %v389, %v404
  %v409 = vadd.f32 %v405, %v407
  %v410 = vadd.f32 %v406, %v408
  %411 = vrot.lane.b32.xlu0 %v185, 1
  %v412 = vpop.permute.xlu0 %411
  %413 = vrot.lane.b32.xlu0 %v186, 1
  %v414 = vpop.permute.xlu0 %413
  %vm415 = vcmp.lt.s32.totalorder %v27, 1
  %v416 = vsel %vm415, %v412, %v414
  %v417 = vsel %vm415, %v414, %v412
  %v418 = vsel %vm115, 1, 0
  %v419 = vsel %vm116, 1, 0
  %vm420 = vcmp.eq.s32.totalorder %v418, 1
  %vm421 = vcmp.eq.s32.totalorder %v419, 1
  %v422 = vsel %vm420, %v417, 0.0
  %v423 = vsel %vm421, %v416, 0.0
  %s424 = scalar_lea.vmem %s1, 96
  %v425 = vld [vmem:[%s424] sm:$0xff]
  %427 = vset.pattern.permute.xlu0 0
  %428 = vperm.xlu0 %427, %v425
  %v429 = vpop.permute.xlu0 %428
  %v431 = vmul.f32 %v429, %v422
  %v432 = vmul.f32 %v429, %v423
  %s433 = scalar_lea.vmem %s1, 104
  %v434 = vld [vmem:[%s433] sm:$0xff]
  %v435 = vrot.slane %v422, 1
  %v436 = vrot.slane %v423, 1
  %v437 = vrot.slane %v422, 5
  %v438 = vrot.slane %v423, 5
  %v439 = vsel %vm215, %v435, %v437
  %v440 = vsel %vm215, %v436, %v438
  %442 = vset.pattern.permute.xlu0 0
  %443 = vperm.xlu0 %442, %v434
  %v444 = vpop.permute.xlu0 %443
  %v446 = vmul.f32 %v444, %v439
  %v447 = vmul.f32 %v444, %v440
  %s448 = scalar_lea.vmem %s1, 112
  %v449 = vld [vmem:[%s448] sm:$0xff]
  %v450 = vrot.slane %v422, 2
  %v451 = vrot.slane %v423, 2
  %v452 = vrot.slane %v422, 6
  %v453 = vrot.slane %v423, 6
  %v454 = vsel %vm232, %v450, %v452
  %v455 = vsel %vm232, %v451, %v453
  %457 = vset.pattern.permute.xlu0 0
  %458 = vperm.xlu0 %457, %v449
  %v459 = vpop.permute.xlu0 %458
  %v461 = vmul.f32 %v459, %v454
  %v462 = vmul.f32 %v459, %v455
  %s463 = scalar_lea.vmem %s1, 120
  %v464 = vld [vmem:[%s463] sm:$0xff]
  %v465 = vrot.slane %v422, 3
  %v466 = vrot.slane %v423, 3
  %v467 = vrot.slane %v422, 7
  %v468 = vrot.slane %v423, 7
  %v469 = vsel %vm249, %v465, %v467
  %v470 = vsel %vm249, %v466, %v468
  %472 = vset.pattern.permute.xlu0 0
  %473 = vperm.xlu0 %472, %v464
  %v474 = vpop.permute.xlu0 %473
  %v476 = vmul.f32 %v474, %v469
  %v477 = vmul.f32 %v474, %v470
  %v478 = vadd.f32 %v431, %v446
  %v479 = vadd.f32 %v432, %v447
  %v480 = vadd.f32 %v461, %v476
  %v481 = vadd.f32 %v462, %v477
  %v482 = vadd.f32 %v478, %v480
  %v483 = vadd.f32 %v479, %v481
  %v484 = vadd.f32 %v263, %v482
  %v485 = vadd.f32 %v264, %v483
  %s486 = scalar_lea.vmem %s1, 128
  %v487 = vld [vmem:[%s486] sm:$0xff]
  %489 = vset.pattern.permute.xlu0 0
  %490 = vperm.xlu0 %489, %v487
  %v491 = vpop.permute.xlu0 %490
  %v493 = vmul.f32 %v491, %v185
  %v494 = vmul.f32 %v491, %v186
  %s495 = scalar_lea.vmem %s1, 136
  %v496 = vld [vmem:[%s495] sm:$0xff]
  %v497 = vrot.slane %v185, 1
  %v498 = vrot.slane %v186, 1
  %v499 = vrot.slane %v185, 5
  %v500 = vrot.slane %v186, 5
  %v501 = vsel %vm215, %v497, %v499
  %v502 = vsel %vm215, %v498, %v500
  %504 = vset.pattern.permute.xlu0 0
  %505 = vperm.xlu0 %504, %v496
  %v506 = vpop.permute.xlu0 %505
  %v508 = vmul.f32 %v506, %v501
  %v509 = vmul.f32 %v506, %v502
  %s510 = scalar_lea.vmem %s1, 144
  %v511 = vld [vmem:[%s510] sm:$0xff]
  %v512 = vrot.slane %v185, 2
  %v513 = vrot.slane %v186, 2
  %v514 = vrot.slane %v185, 6
  %v515 = vrot.slane %v186, 6
  %v516 = vsel %vm232, %v512, %v514
  %v517 = vsel %vm232, %v513, %v515
  %519 = vset.pattern.permute.xlu0 0
  %520 = vperm.xlu0 %519, %v511
  %v521 = vpop.permute.xlu0 %520
  %v523 = vmul.f32 %v521, %v516
  %v524 = vmul.f32 %v521, %v517
  %s525 = scalar_lea.vmem %s1, 152
  %v526 = vld [vmem:[%s525] sm:$0xff]
  %v527 = vrot.slane %v185, 3
  %v528 = vrot.slane %v186, 3
  %v529 = vrot.slane %v185, 7
  %v530 = vrot.slane %v186, 7
  %v531 = vsel %vm249, %v527, %v529
  %v532 = vsel %vm249, %v528, %v530
  %534 = vset.pattern.permute.xlu0 0
  %535 = vperm.xlu0 %534, %v526
  %v536 = vpop.permute.xlu0 %535
  %v538 = vmul.f32 %v536, %v531
  %v539 = vmul.f32 %v536, %v532
  %v540 = vadd.f32 %v493, %v508
  %v541 = vadd.f32 %v494, %v509
  %v542 = vadd.f32 %v523, %v538
  %v543 = vadd.f32 %v524, %v539
  %v544 = vadd.f32 %v540, %v542
  %v545 = vadd.f32 %v541, %v543
  %v546 = vadd.f32 %v336, %v544
  %v547 = vadd.f32 %v337, %v545
  %548 = vrot.lane.b32.xlu0 %v185, 127
  %v549 = vpop.permute.xlu0 %548
  %550 = vrot.lane.b32.xlu0 %v186, 127
  %v551 = vpop.permute.xlu0 %550
  %vm552 = vcmp.lt.s32.totalorder %v27, 127
  %v553 = vsel %vm552, %v549, %v551
  %v554 = vsel %vm552, %v551, %v549
  %v555 = vsel %vm127, 1, 0
  %v556 = vsel %vm128, 1, 0
  %vm557 = vcmp.eq.s32.totalorder %v555, 1
  %vm558 = vcmp.eq.s32.totalorder %v556, 1
  %v559 = vsel %vm557, %v553, 0.0
  %v560 = vsel %vm558, %v554, 0.0
  %s561 = scalar_lea.vmem %s1, 160
  %v562 = vld [vmem:[%s561] sm:$0xff]
  %564 = vset.pattern.permute.xlu0 0
  %565 = vperm.xlu0 %564, %v562
  %v566 = vpop.permute.xlu0 %565
  %v568 = vmul.f32 %v566, %v559
  %v569 = vmul.f32 %v566, %v560
  %s570 = scalar_lea.vmem %s1, 168
  %v571 = vld [vmem:[%s570] sm:$0xff]
  %v572 = vrot.slane %v559, 1
  %v573 = vrot.slane %v560, 1
  %v574 = vrot.slane %v559, 5
  %v575 = vrot.slane %v560, 5
  %v576 = vsel %vm215, %v572, %v574
  %v577 = vsel %vm215, %v573, %v575
  %579 = vset.pattern.permute.xlu0 0
  %580 = vperm.xlu0 %579, %v571
  %v581 = vpop.permute.xlu0 %580
  %v583 = vmul.f32 %v581, %v576
  %v584 = vmul.f32 %v581, %v577
  %s585 = scalar_lea.vmem %s1, 176
  %v586 = vld [vmem:[%s585] sm:$0xff]
  %v587 = vrot.slane %v559, 2
  %v588 = vrot.slane %v560, 2
  %v589 = vrot.slane %v559, 6
  %v590 = vrot.slane %v560, 6
  %v591 = vsel %vm232, %v587, %v589
  %v592 = vsel %vm232, %v588, %v590
  %594 = vset.pattern.permute.xlu0 0
  %595 = vperm.xlu0 %594, %v586
  %v596 = vpop.permute.xlu0 %595
  %v598 = vmul.f32 %v596, %v591
  %v599 = vmul.f32 %v596, %v592
  %s600 = scalar_lea.vmem %s1, 184
  %v601 = vld [vmem:[%s600] sm:$0xff]
  %v602 = vrot.slane %v559, 3
  %v603 = vrot.slane %v560, 3
  %v604 = vrot.slane %v559, 7
  %v605 = vrot.slane %v560, 7
  %v606 = vsel %vm249, %v602, %v604
  %v607 = vsel %vm249, %v603, %v605
  %609 = vset.pattern.permute.xlu0 0
  %610 = vperm.xlu0 %609, %v601
  %v611 = vpop.permute.xlu0 %610
  %v613 = vmul.f32 %v611, %v606
  %v614 = vmul.f32 %v611, %v607
  %v615 = vadd.f32 %v568, %v583
  %v616 = vadd.f32 %v569, %v584
  %v617 = vadd.f32 %v598, %v613
  %v618 = vadd.f32 %v599, %v614
  %v619 = vadd.f32 %v615, %v617
  %v620 = vadd.f32 %v616, %v618
  %v621 = vadd.f32 %v409, %v619
  %v622 = vadd.f32 %v410, %v620
  %623 = vrot.lane.b32.xlu0 %v185, 113
  %v624 = vpop.permute.xlu0 %623
  %625 = vrot.lane.b32.xlu0 %v186, 113
  %v626 = vpop.permute.xlu0 %625
  %vm627 = vcmp.lt.s32.totalorder %v27, 113
  %v628 = vsel %vm627, %v624, %v626
  %v629 = vsel %vm627, %v626, %v624
  %v630 = vsel %vm139, 1, 0
  %v631 = vsel %vm140, 1, 0
  %vm632 = vcmp.eq.s32.totalorder %v630, 1
  %vm633 = vcmp.eq.s32.totalorder %v631, 1
  %v634 = vsel %vm632, %v628, 0.0
  %v635 = vsel %vm633, %v629, 0.0
  %s636 = scalar_lea.vmem %s1, 192
  %v637 = vld [vmem:[%s636] sm:$0xff]
  %639 = vset.pattern.permute.xlu0 0
  %640 = vperm.xlu0 %639, %v637
  %v641 = vpop.permute.xlu0 %640
  %v643 = vmul.f32 %v641, %v634
  %v644 = vmul.f32 %v641, %v635
  %s645 = scalar_lea.vmem %s1, 200
  %v646 = vld [vmem:[%s645] sm:$0xff]
  %v647 = vrot.slane %v634, 1
  %v648 = vrot.slane %v635, 1
  %v649 = vrot.slane %v634, 5
  %v650 = vrot.slane %v635, 5
  %v651 = vsel %vm215, %v647, %v649
  %v652 = vsel %vm215, %v648, %v650
  %654 = vset.pattern.permute.xlu0 0
  %655 = vperm.xlu0 %654, %v646
  %v656 = vpop.permute.xlu0 %655
  %v658 = vmul.f32 %v656, %v651
  %v659 = vmul.f32 %v656, %v652
  %s660 = scalar_lea.vmem %s1, 208
  %v661 = vld [vmem:[%s660] sm:$0xff]
  %v662 = vrot.slane %v634, 2
  %v663 = vrot.slane %v635, 2
  %v664 = vrot.slane %v634, 6
  %v665 = vrot.slane %v635, 6
  %v666 = vsel %vm232, %v662, %v664
  %v667 = vsel %vm232, %v663, %v665
  %669 = vset.pattern.permute.xlu0 0
  %670 = vperm.xlu0 %669, %v661
  %v671 = vpop.permute.xlu0 %670
  %v673 = vmul.f32 %v671, %v666
  %v674 = vmul.f32 %v671, %v667
  %s675 = scalar_lea.vmem %s1, 216
  %v676 = vld [vmem:[%s675] sm:$0xff]
  %v677 = vrot.slane %v634, 3
  %v678 = vrot.slane %v635, 3
  %v679 = vrot.slane %v634, 7
  %v680 = vrot.slane %v635, 7
  %v681 = vsel %vm249, %v677, %v679
  %v682 = vsel %vm249, %v678, %v680
  %684 = vset.pattern.permute.xlu0 0
  %685 = vperm.xlu0 %684, %v676
  %v686 = vpop.permute.xlu0 %685
  %v688 = vmul.f32 %v686, %v681
  %v689 = vmul.f32 %v686, %v682
  %v690 = vadd.f32 %v643, %v658
  %v691 = vadd.f32 %v644, %v659
  %v692 = vadd.f32 %v673, %v688
  %v693 = vadd.f32 %v674, %v689
  %v694 = vadd.f32 %v690, %v692
  %v695 = vadd.f32 %v691, %v693
  %v696 = vadd.f32 %v484, %v694
  %v697 = vadd.f32 %v485, %v695
  %698 = vrot.lane.b32.xlu0 %v185, 112
  %v699 = vpop.permute.xlu0 %698
  %700 = vrot.lane.b32.xlu0 %v186, 112
  %v701 = vpop.permute.xlu0 %700
  %vm702 = vcmp.lt.s32.totalorder %v27, 112
  %v703 = vsel %vm702, %v699, %v701
  %v704 = vsel %vm702, %v701, %v699
  %v705 = vsel %vm151, 1, 0
  %v706 = vsel %vm152, 1, 0
  %vm707 = vcmp.eq.s32.totalorder %v705, 1
  %vm708 = vcmp.eq.s32.totalorder %v706, 1
  %v709 = vsel %vm707, %v703, 0.0
  %v710 = vsel %vm708, %v704, 0.0
  %s711 = scalar_lea.vmem %s1, 224
  %v712 = vld [vmem:[%s711] sm:$0xff]
  %714 = vset.pattern.permute.xlu0 0
  %715 = vperm.xlu0 %714, %v712
  %v716 = vpop.permute.xlu0 %715
  %v718 = vmul.f32 %v716, %v709
  %v719 = vmul.f32 %v716, %v710
  %s720 = scalar_lea.vmem %s1, 232
  %v721 = vld [vmem:[%s720] sm:$0xff]
  %v722 = vrot.slane %v709, 1
  %v723 = vrot.slane %v710, 1
  %v724 = vrot.slane %v709, 5
  %v725 = vrot.slane %v710, 5
  %v726 = vsel %vm215, %v722, %v724
  %v727 = vsel %vm215, %v723, %v725
  %729 = vset.pattern.permute.xlu0 0
  %730 = vperm.xlu0 %729, %v721
  %v731 = vpop.permute.xlu0 %730
  %v733 = vmul.f32 %v731, %v726
  %v734 = vmul.f32 %v731, %v727
  %s735 = scalar_lea.vmem %s1, 240
  %v736 = vld [vmem:[%s735] sm:$0xff]
  %v737 = vrot.slane %v709, 2
  %v738 = vrot.slane %v710, 2
  %v739 = vrot.slane %v709, 6
  %v740 = vrot.slane %v710, 6
  %v741 = vsel %vm232, %v737, %v739
  %v742 = vsel %vm232, %v738, %v740
  %744 = vset.pattern.permute.xlu0 0
  %745 = vperm.xlu0 %744, %v736
  %v746 = vpop.permute.xlu0 %745
  %v748 = vmul.f32 %v746, %v741
  %v749 = vmul.f32 %v746, %v742
  %s750 = scalar_lea.vmem %s1, 248
  %v751 = vld [vmem:[%s750] sm:$0xff]
  %v752 = vrot.slane %v709, 3
  %v753 = vrot.slane %v710, 3
  %v754 = vrot.slane %v709, 7
  %v755 = vrot.slane %v710, 7
  %v756 = vsel %vm249, %v752, %v754
  %v757 = vsel %vm249, %v753, %v755
  %759 = vset.pattern.permute.xlu0 0
  %760 = vperm.xlu0 %759, %v751
  %v761 = vpop.permute.xlu0 %760
  %v763 = vmul.f32 %v761, %v756
  %v764 = vmul.f32 %v761, %v757
  %v765 = vadd.f32 %v718, %v733
  %v766 = vadd.f32 %v719, %v734
  %v767 = vadd.f32 %v748, %v763
  %v768 = vadd.f32 %v749, %v764
  %v769 = vadd.f32 %v765, %v767
  %v770 = vadd.f32 %v766, %v768
  %v771 = vadd.f32 %v546, %v769
  %v772 = vadd.f32 %v547, %v770
  %773 = vrot.lane.b32.xlu0 %v185, 111
  %v774 = vpop.permute.xlu0 %773
  %775 = vrot.lane.b32.xlu0 %v186, 111
  %v776 = vpop.permute.xlu0 %775
  %vm777 = vcmp.lt.s32.totalorder %v27, 111
  %v778 = vsel %vm777, %v774, %v776
  %v779 = vsel %vm777, %v776, %v774
  %v780 = vsel %vm163, 1, 0
  %v781 = vsel %vm164, 1, 0
  %vm782 = vcmp.eq.s32.totalorder %v780, 1
  %vm783 = vcmp.eq.s32.totalorder %v781, 1
  %v784 = vsel %vm782, %v778, 0.0
  %v785 = vsel %vm783, %v779, 0.0
  %s786 = scalar_lea.vmem %s1, 256
  %v787 = vld [vmem:[%s786] sm:$0xff]
  %789 = vset.pattern.permute.xlu0 0
  %790 = vperm.xlu0 %789, %v787
  %v791 = vpop.permute.xlu0 %790
  %v793 = vmul.f32 %v791, %v784
  %v794 = vmul.f32 %v791, %v785
  %s795 = scalar_lea.vmem %s1, 264
  %v796 = vld [vmem:[%s795] sm:$0xff]
  %v797 = vrot.slane %v784, 1
  %v798 = vrot.slane %v785, 1
  %v799 = vrot.slane %v784, 5
  %v800 = vrot.slane %v785, 5
  %v801 = vsel %vm215, %v797, %v799
  %v802 = vsel %vm215, %v798, %v800
  %804 = vset.pattern.permute.xlu0 0
  %805 = vperm.xlu0 %804, %v796
  %v806 = vpop.permute.xlu0 %805
  %v808 = vmul.f32 %v806, %v801
  %v809 = vmul.f32 %v806, %v802
  %s810 = scalar_lea.vmem %s1, 272
  %v811 = vld [vmem:[%s810] sm:$0xff]
  %v812 = vrot.slane %v784, 2
  %v813 = vrot.slane %v785, 2
  %v814 = vrot.slane %v784, 6
  %v815 = vrot.slane %v785, 6
  %v816 = vsel %vm232, %v812, %v814
  %v817 = vsel %vm232, %v813, %v815
  %819 = vset.pattern.permute.xlu0 0
  %820 = vperm.xlu0 %819, %v811
  %v821 = vpop.permute.xlu0 %820
  %v823 = vmul.f32 %v821, %v816
  %v824 = vmul.f32 %v821, %v817
  %s825 = scalar_lea.vmem %s1, 280
  %v826 = vld [vmem:[%s825] sm:$0xff]
  %v827 = vrot.slane %v784, 3
  %v828 = vrot.slane %v785, 3
  %v829 = vrot.slane %v784, 7
  %v830 = vrot.slane %v785, 7
  %v831 = vsel %vm249, %v827, %v829
  %v832 = vsel %vm249, %v828, %v830
  %834 = vset.pattern.permute.xlu0 0
  %835 = vperm.xlu0 %834, %v826
  %v836 = vpop.permute.xlu0 %835
  %v838 = vmul.f32 %v836, %v831
  %v839 = vmul.f32 %v836, %v832
  %v840 = vadd.f32 %v793, %v808
  %v841 = vadd.f32 %v794, %v809
  %v842 = vadd.f32 %v823, %v838
  %v843 = vadd.f32 %v824, %v839
  %v844 = vadd.f32 %v840, %v842
  %v845 = vadd.f32 %v841, %v843
  %v846 = vadd.f32 %v621, %v844
  %v847 = vadd.f32 %v622, %v845
  %v848 = vadd.f32 %v696, %v771
  %v849 = vadd.f32 %v697, %v772
  %v850 = vadd.f32 %v848, %v846
  %v851 = vadd.f32 %v849, %v847
  %v852 = vmul.f32 %v850, %v850
  %v853 = vmul.f32 %v851, %v851
  %v854 = vadd.f32 %v850, %v851
  %855 = vadd.xlane.f32.xlu0 %v854
  %v856 = vpop.xlane.xlu0 %855
  %v857 = vadd.f32 %v852, %v853
  %858 = vadd.xlane.f32.xlu0 %v857
  %v859 = vpop.xlane.xlu0 %858
  %v860 = vrot.slane %v856, 4
  %v861 = vadd.f32 %v856, %v860
  %v862 = vrot.slane %v859, 4
  %v863 = vadd.f32 %v859, %v862
  %v864 = vmul.f32 %v861, 0.001953125
  %v865 = vmul.f32 %v863, 0.001953125
  %v866 = vmul.f32 %v864, %v864
  %v867 = vsub.f32 %v865, %v866
  %v868 = vmax.f32 %v867, 0.0
  %v869 = vld [vmem:[%s2] sm:$0xff]
  %v870 = vadd.f32 %v868, 1e-05
  %v871 = vrsqrt.pop %v870
  %v872 = vmul.f32 %v869, %v871
  %v873 = vld [vmem:[%s3] sm:$0xff]
  %v874 = vmul.f32 %v864, %v872
  %v875 = vsub.f32 %v873, %v874
  %877 = vset.pattern.permute.xlu0 0
  %878 = vperm.xlu0 %877, %v872
  %v879 = vpop.permute.xlu0 %878
  %v881 = vmul.f32 %v850, %v879
  %v882 = vmul.f32 %v851, %v879
  %884 = vset.pattern.permute.xlu0 0
  %885 = vperm.xlu0 %884, %v875
  %v886 = vpop.permute.xlu0 %885
  %v888 = vadd.f32 %v881, %v886
  %v889 = vadd.f32 %v882, %v886
  %v890 = vmax.f32 %v888, 0.0
  %v891 = vmax.f32 %v889, 0.0
  %892 = vrot.lane.b32.xlu0 %v890, 17
  %v893 = vpop.permute.xlu0 %892
  %894 = vrot.lane.b32.xlu0 %v891, 17
  %v895 = vpop.permute.xlu0 %894
  %v896 = vsel %vm191, %v893, %v895
  %v897 = vsel %vm191, %v895, %v893
  %v898 = vsel %vm196, %v897, 0.0
  %v899 = vsel %vm197, %v896, 0.0
  %v900 = vld [vmem:[%s4] sm:$0xff]
  %902 = vset.pattern.permute.xlu0 0
  %903 = vperm.xlu0 %902, %v900
  %v904 = vpop.permute.xlu0 %903
  %v906 = vmul.f32 %v904, %v898
  %v907 = vmul.f32 %v904, %v899
  %s908 = scalar_lea.vmem %s4, 8
  %v909 = vld [vmem:[%s908] sm:$0xff]
  %v910 = vrot.slane %v898, 1
  %v911 = vrot.slane %v899, 1
  %v912 = vrot.slane %v898, 5
  %v913 = vrot.slane %v899, 5
  %v914 = vsel %vm215, %v910, %v912
  %v915 = vsel %vm215, %v911, %v913
  %917 = vset.pattern.permute.xlu0 0
  %918 = vperm.xlu0 %917, %v909
  %v919 = vpop.permute.xlu0 %918
  %v921 = vmul.f32 %v919, %v914
  %v922 = vmul.f32 %v919, %v915
  %s923 = scalar_lea.vmem %s4, 16
  %v924 = vld [vmem:[%s923] sm:$0xff]
  %v925 = vrot.slane %v898, 2
  %v926 = vrot.slane %v899, 2
  %v927 = vrot.slane %v898, 6
  %v928 = vrot.slane %v899, 6
  %v929 = vsel %vm232, %v925, %v927
  %v930 = vsel %vm232, %v926, %v928
  %932 = vset.pattern.permute.xlu0 0
  %933 = vperm.xlu0 %932, %v924
  %v934 = vpop.permute.xlu0 %933
  %v936 = vmul.f32 %v934, %v929
  %v937 = vmul.f32 %v934, %v930
  %s938 = scalar_lea.vmem %s4, 24
  %v939 = vld [vmem:[%s938] sm:$0xff]
  %v940 = vrot.slane %v898, 3
  %v941 = vrot.slane %v899, 3
  %v942 = vrot.slane %v898, 7
  %v943 = vrot.slane %v899, 7
  %v944 = vsel %vm249, %v940, %v942
  %v945 = vsel %vm249, %v941, %v943
  %947 = vset.pattern.permute.xlu0 0
  %948 = vperm.xlu0 %947, %v939
  %v949 = vpop.permute.xlu0 %948
  %v951 = vmul.f32 %v949, %v944
  %v952 = vmul.f32 %v949, %v945
  %v953 = vadd.f32 %v906, %v921
  %v954 = vadd.f32 %v907, %v922
  %v955 = vadd.f32 %v936, %v951
  %v956 = vadd.f32 %v937, %v952
  %v957 = vadd.f32 %v953, %v955
  %v958 = vadd.f32 %v954, %v956
  %959 = vrot.lane.b32.xlu0 %v890, 16
  %v960 = vpop.permute.xlu0 %959
  %961 = vrot.lane.b32.xlu0 %v891, 16
  %v962 = vpop.permute.xlu0 %961
  %v963 = vsel %vm269, %v960, %v962
  %v964 = vsel %vm269, %v962, %v960
  %v965 = vsel %vm274, %v964, 0.0
  %v966 = vsel %vm275, %v963, 0.0
  %s967 = scalar_lea.vmem %s4, 32
  %v968 = vld [vmem:[%s967] sm:$0xff]
  %970 = vset.pattern.permute.xlu0 0
  %971 = vperm.xlu0 %970, %v968
  %v972 = vpop.permute.xlu0 %971
  %v974 = vmul.f32 %v972, %v965
  %v975 = vmul.f32 %v972, %v966
  %s976 = scalar_lea.vmem %s4, 40
  %v977 = vld [vmem:[%s976] sm:$0xff]
  %v978 = vrot.slane %v965, 1
  %v979 = vrot.slane %v966, 1
  %v980 = vrot.slane %v965, 5
  %v981 = vrot.slane %v966, 5
  %v982 = vsel %vm215, %v978, %v980
  %v983 = vsel %vm215, %v979, %v981
  %985 = vset.pattern.permute.xlu0 0
  %986 = vperm.xlu0 %985, %v977
  %v987 = vpop.permute.xlu0 %986
  %v989 = vmul.f32 %v987, %v982
  %v990 = vmul.f32 %v987, %v983
  %s991 = scalar_lea.vmem %s4, 48
  %v992 = vld [vmem:[%s991] sm:$0xff]
  %v993 = vrot.slane %v965, 2
  %v994 = vrot.slane %v966, 2
  %v995 = vrot.slane %v965, 6
  %v996 = vrot.slane %v966, 6
  %v997 = vsel %vm232, %v993, %v995
  %v998 = vsel %vm232, %v994, %v996
  %1000 = vset.pattern.permute.xlu0 0
  %1001 = vperm.xlu0 %1000, %v992
  %v1002 = vpop.permute.xlu0 %1001
  %v1004 = vmul.f32 %v1002, %v997
  %v1005 = vmul.f32 %v1002, %v998
  %s1006 = scalar_lea.vmem %s4, 56
  %v1007 = vld [vmem:[%s1006] sm:$0xff]
  %v1008 = vrot.slane %v965, 3
  %v1009 = vrot.slane %v966, 3
  %v1010 = vrot.slane %v965, 7
  %v1011 = vrot.slane %v966, 7
  %v1012 = vsel %vm249, %v1008, %v1010
  %v1013 = vsel %vm249, %v1009, %v1011
  %1015 = vset.pattern.permute.xlu0 0
  %1016 = vperm.xlu0 %1015, %v1007
  %v1017 = vpop.permute.xlu0 %1016
  %v1019 = vmul.f32 %v1017, %v1012
  %v1020 = vmul.f32 %v1017, %v1013
  %v1021 = vadd.f32 %v974, %v989
  %v1022 = vadd.f32 %v975, %v990
  %v1023 = vadd.f32 %v1004, %v1019
  %v1024 = vadd.f32 %v1005, %v1020
  %v1025 = vadd.f32 %v1021, %v1023
  %v1026 = vadd.f32 %v1022, %v1024
  %1027 = vrot.lane.b32.xlu0 %v890, 15
  %v1028 = vpop.permute.xlu0 %1027
  %1029 = vrot.lane.b32.xlu0 %v891, 15
  %v1030 = vpop.permute.xlu0 %1029
  %v1031 = vsel %vm342, %v1028, %v1030
  %v1032 = vsel %vm342, %v1030, %v1028
  %v1033 = vsel %vm347, %v1032, 0.0
  %v1034 = vsel %vm348, %v1031, 0.0
  %s1035 = scalar_lea.vmem %s4, 64
  %v1036 = vld [vmem:[%s1035] sm:$0xff]
  %1038 = vset.pattern.permute.xlu0 0
  %1039 = vperm.xlu0 %1038, %v1036
  %v1040 = vpop.permute.xlu0 %1039
  %v1042 = vmul.f32 %v1040, %v1033
  %v1043 = vmul.f32 %v1040, %v1034
  %s1044 = scalar_lea.vmem %s4, 72
  %v1045 = vld [vmem:[%s1044] sm:$0xff]
  %v1046 = vrot.slane %v1033, 1
  %v1047 = vrot.slane %v1034, 1
  %v1048 = vrot.slane %v1033, 5
  %v1049 = vrot.slane %v1034, 5
  %v1050 = vsel %vm215, %v1046, %v1048
  %v1051 = vsel %vm215, %v1047, %v1049
  %1053 = vset.pattern.permute.xlu0 0
  %1054 = vperm.xlu0 %1053, %v1045
  %v1055 = vpop.permute.xlu0 %1054
  %v1057 = vmul.f32 %v1055, %v1050
  %v1058 = vmul.f32 %v1055, %v1051
  %s1059 = scalar_lea.vmem %s4, 80
  %v1060 = vld [vmem:[%s1059] sm:$0xff]
  %v1061 = vrot.slane %v1033, 2
  %v1062 = vrot.slane %v1034, 2
  %v1063 = vrot.slane %v1033, 6
  %v1064 = vrot.slane %v1034, 6
  %v1065 = vsel %vm232, %v1061, %v1063
  %v1066 = vsel %vm232, %v1062, %v1064
  %1068 = vset.pattern.permute.xlu0 0
  %1069 = vperm.xlu0 %1068, %v1060
  %v1070 = vpop.permute.xlu0 %1069
  %v1072 = vmul.f32 %v1070, %v1065
  %v1073 = vmul.f32 %v1070, %v1066
  %s1074 = scalar_lea.vmem %s4, 88
  %v1075 = vld [vmem:[%s1074] sm:$0xff]
  %v1076 = vrot.slane %v1033, 3
  %v1077 = vrot.slane %v1034, 3
  %v1078 = vrot.slane %v1033, 7
  %v1079 = vrot.slane %v1034, 7
  %v1080 = vsel %vm249, %v1076, %v1078
  %v1081 = vsel %vm249, %v1077, %v1079
  %1083 = vset.pattern.permute.xlu0 0
  %1084 = vperm.xlu0 %1083, %v1075
  %v1085 = vpop.permute.xlu0 %1084
  %v1087 = vmul.f32 %v1085, %v1080
  %v1088 = vmul.f32 %v1085, %v1081
  %v1089 = vadd.f32 %v1042, %v1057
  %v1090 = vadd.f32 %v1043, %v1058
  %v1091 = vadd.f32 %v1072, %v1087
  %v1092 = vadd.f32 %v1073, %v1088
  %v1093 = vadd.f32 %v1089, %v1091
  %v1094 = vadd.f32 %v1090, %v1092
  %1095 = vrot.lane.b32.xlu0 %v890, 1
  %v1096 = vpop.permute.xlu0 %1095
  %1097 = vrot.lane.b32.xlu0 %v891, 1
  %v1098 = vpop.permute.xlu0 %1097
  %v1099 = vsel %vm415, %v1096, %v1098
  %v1100 = vsel %vm415, %v1098, %v1096
  %v1101 = vsel %vm420, %v1100, 0.0
  %v1102 = vsel %vm421, %v1099, 0.0
  %s1103 = scalar_lea.vmem %s4, 96
  %v1104 = vld [vmem:[%s1103] sm:$0xff]
  %1106 = vset.pattern.permute.xlu0 0
  %1107 = vperm.xlu0 %1106, %v1104
  %v1108 = vpop.permute.xlu0 %1107
  %v1110 = vmul.f32 %v1108, %v1101
  %v1111 = vmul.f32 %v1108, %v1102
  %s1112 = scalar_lea.vmem %s4, 104
  %v1113 = vld [vmem:[%s1112] sm:$0xff]
  %v1114 = vrot.slane %v1101, 1
  %v1115 = vrot.slane %v1102, 1
  %v1116 = vrot.slane %v1101, 5
  %v1117 = vrot.slane %v1102, 5
  %v1118 = vsel %vm215, %v1114, %v1116
  %v1119 = vsel %vm215, %v1115, %v1117
  %1121 = vset.pattern.permute.xlu0 0
  %1122 = vperm.xlu0 %1121, %v1113
  %v1123 = vpop.permute.xlu0 %1122
  %v1125 = vmul.f32 %v1123, %v1118
  %v1126 = vmul.f32 %v1123, %v1119
  %s1127 = scalar_lea.vmem %s4, 112
  %v1128 = vld [vmem:[%s1127] sm:$0xff]
  %v1129 = vrot.slane %v1101, 2
  %v1130 = vrot.slane %v1102, 2
  %v1131 = vrot.slane %v1101, 6
  %v1132 = vrot.slane %v1102, 6
  %v1133 = vsel %vm232, %v1129, %v1131
  %v1134 = vsel %vm232, %v1130, %v1132
  %1136 = vset.pattern.permute.xlu0 0
  %1137 = vperm.xlu0 %1136, %v1128
  %v1138 = vpop.permute.xlu0 %1137
  %v1140 = vmul.f32 %v1138, %v1133
  %v1141 = vmul.f32 %v1138, %v1134
  %s1142 = scalar_lea.vmem %s4, 120
  %v1143 = vld [vmem:[%s1142] sm:$0xff]
  %v1144 = vrot.slane %v1101, 3
  %v1145 = vrot.slane %v1102, 3
  %v1146 = vrot.slane %v1101, 7
  %v1147 = vrot.slane %v1102, 7
  %v1148 = vsel %vm249, %v1144, %v1146
  %v1149 = vsel %vm249, %v1145, %v1147
  %1151 = vset.pattern.permute.xlu0 0
  %1152 = vperm.xlu0 %1151, %v1143
  %v1153 = vpop.permute.xlu0 %1152
  %v1155 = vmul.f32 %v1153, %v1148
  %v1156 = vmul.f32 %v1153, %v1149
  %v1157 = vadd.f32 %v1110, %v1125
  %v1158 = vadd.f32 %v1111, %v1126
  %v1159 = vadd.f32 %v1140, %v1155
  %v1160 = vadd.f32 %v1141, %v1156
  %v1161 = vadd.f32 %v1157, %v1159
  %v1162 = vadd.f32 %v1158, %v1160
  %v1163 = vadd.f32 %v957, %v1161
  %v1164 = vadd.f32 %v958, %v1162
  %s1165 = scalar_lea.vmem %s4, 128
  %v1166 = vld [vmem:[%s1165] sm:$0xff]
  %1168 = vset.pattern.permute.xlu0 0
  %1169 = vperm.xlu0 %1168, %v1166
  %v1170 = vpop.permute.xlu0 %1169
  %v1172 = vmul.f32 %v1170, %v890
  %v1173 = vmul.f32 %v1170, %v891
  %s1174 = scalar_lea.vmem %s4, 136
  %v1175 = vld [vmem:[%s1174] sm:$0xff]
  %v1176 = vrot.slane %v890, 1
  %v1177 = vrot.slane %v891, 1
  %v1178 = vrot.slane %v890, 5
  %v1179 = vrot.slane %v891, 5
  %v1180 = vsel %vm215, %v1176, %v1178
  %v1181 = vsel %vm215, %v1177, %v1179
  %1183 = vset.pattern.permute.xlu0 0
  %1184 = vperm.xlu0 %1183, %v1175
  %v1185 = vpop.permute.xlu0 %1184
  %v1187 = vmul.f32 %v1185, %v1180
  %v1188 = vmul.f32 %v1185, %v1181
  %s1189 = scalar_lea.vmem %s4, 144
  %v1190 = vld [vmem:[%s1189] sm:$0xff]
  %v1191 = vrot.slane %v890, 2
  %v1192 = vrot.slane %v891, 2
  %v1193 = vrot.slane %v890, 6
  %v1194 = vrot.slane %v891, 6
  %v1195 = vsel %vm232, %v1191, %v1193
  %v1196 = vsel %vm232, %v1192, %v1194
  %1198 = vset.pattern.permute.xlu0 0
  %1199 = vperm.xlu0 %1198, %v1190
  %v1200 = vpop.permute.xlu0 %1199
  %v1202 = vmul.f32 %v1200, %v1195
  %v1203 = vmul.f32 %v1200, %v1196
  %s1204 = scalar_lea.vmem %s4, 152
  %v1205 = vld [vmem:[%s1204] sm:$0xff]
  %v1206 = vrot.slane %v890, 3
  %v1207 = vrot.slane %v891, 3
  %v1208 = vrot.slane %v890, 7
  %v1209 = vrot.slane %v891, 7
  %v1210 = vsel %vm249, %v1206, %v1208
  %v1211 = vsel %vm249, %v1207, %v1209
  %1213 = vset.pattern.permute.xlu0 0
  %1214 = vperm.xlu0 %1213, %v1205
  %v1215 = vpop.permute.xlu0 %1214
  %v1217 = vmul.f32 %v1215, %v1210
  %v1218 = vmul.f32 %v1215, %v1211
  %v1219 = vadd.f32 %v1172, %v1187
  %v1220 = vadd.f32 %v1173, %v1188
  %v1221 = vadd.f32 %v1202, %v1217
  %v1222 = vadd.f32 %v1203, %v1218
  %v1223 = vadd.f32 %v1219, %v1221
  %v1224 = vadd.f32 %v1220, %v1222
  %v1225 = vadd.f32 %v1025, %v1223
  %v1226 = vadd.f32 %v1026, %v1224
  %1227 = vrot.lane.b32.xlu0 %v890, 127
  %v1228 = vpop.permute.xlu0 %1227
  %1229 = vrot.lane.b32.xlu0 %v891, 127
  %v1230 = vpop.permute.xlu0 %1229
  %v1231 = vsel %vm552, %v1228, %v1230
  %v1232 = vsel %vm552, %v1230, %v1228
  %v1233 = vsel %vm557, %v1231, 0.0
  %v1234 = vsel %vm558, %v1232, 0.0
  %s1235 = scalar_lea.vmem %s4, 160
  %v1236 = vld [vmem:[%s1235] sm:$0xff]
  %1238 = vset.pattern.permute.xlu0 0
  %1239 = vperm.xlu0 %1238, %v1236
  %v1240 = vpop.permute.xlu0 %1239
  %v1242 = vmul.f32 %v1240, %v1233
  %v1243 = vmul.f32 %v1240, %v1234
  %s1244 = scalar_lea.vmem %s4, 168
  %v1245 = vld [vmem:[%s1244] sm:$0xff]
  %v1246 = vrot.slane %v1233, 1
  %v1247 = vrot.slane %v1234, 1
  %v1248 = vrot.slane %v1233, 5
  %v1249 = vrot.slane %v1234, 5
  %v1250 = vsel %vm215, %v1246, %v1248
  %v1251 = vsel %vm215, %v1247, %v1249
  %1253 = vset.pattern.permute.xlu0 0
  %1254 = vperm.xlu0 %1253, %v1245
  %v1255 = vpop.permute.xlu0 %1254
  %v1257 = vmul.f32 %v1255, %v1250
  %v1258 = vmul.f32 %v1255, %v1251
  %s1259 = scalar_lea.vmem %s4, 176
  %v1260 = vld [vmem:[%s1259] sm:$0xff]
  %v1261 = vrot.slane %v1233, 2
  %v1262 = vrot.slane %v1234, 2
  %v1263 = vrot.slane %v1233, 6
  %v1264 = vrot.slane %v1234, 6
  %v1265 = vsel %vm232, %v1261, %v1263
  %v1266 = vsel %vm232, %v1262, %v1264
  %1268 = vset.pattern.permute.xlu0 0
  %1269 = vperm.xlu0 %1268, %v1260
  %v1270 = vpop.permute.xlu0 %1269
  %v1272 = vmul.f32 %v1270, %v1265
  %v1273 = vmul.f32 %v1270, %v1266
  %s1274 = scalar_lea.vmem %s4, 184
  %v1275 = vld [vmem:[%s1274] sm:$0xff]
  %v1276 = vrot.slane %v1233, 3
  %v1277 = vrot.slane %v1234, 3
  %v1278 = vrot.slane %v1233, 7
  %v1279 = vrot.slane %v1234, 7
  %v1280 = vsel %vm249, %v1276, %v1278
  %v1281 = vsel %vm249, %v1277, %v1279
  %1283 = vset.pattern.permute.xlu0 0
  %1284 = vperm.xlu0 %1283, %v1275
  %v1285 = vpop.permute.xlu0 %1284
  %v1287 = vmul.f32 %v1285, %v1280
  %v1288 = vmul.f32 %v1285, %v1281
  %v1289 = vadd.f32 %v1242, %v1257
  %v1290 = vadd.f32 %v1243, %v1258
  %v1291 = vadd.f32 %v1272, %v1287
  %v1292 = vadd.f32 %v1273, %v1288
  %v1293 = vadd.f32 %v1289, %v1291
  %v1294 = vadd.f32 %v1290, %v1292
  %v1295 = vadd.f32 %v1093, %v1293
  %v1296 = vadd.f32 %v1094, %v1294
  %1297 = vrot.lane.b32.xlu0 %v890, 113
  %v1298 = vpop.permute.xlu0 %1297
  %1299 = vrot.lane.b32.xlu0 %v891, 113
  %v1300 = vpop.permute.xlu0 %1299
  %v1301 = vsel %vm627, %v1298, %v1300
  %v1302 = vsel %vm627, %v1300, %v1298
  %v1303 = vsel %vm632, %v1301, 0.0
  %v1304 = vsel %vm633, %v1302, 0.0
  %s1305 = scalar_lea.vmem %s4, 192
  %v1306 = vld [vmem:[%s1305] sm:$0xff]
  %1308 = vset.pattern.permute.xlu0 0
  %1309 = vperm.xlu0 %1308, %v1306
  %v1310 = vpop.permute.xlu0 %1309
  %v1312 = vmul.f32 %v1310, %v1303
  %v1313 = vmul.f32 %v1310, %v1304
  %s1314 = scalar_lea.vmem %s4, 200
  %v1315 = vld [vmem:[%s1314] sm:$0xff]
  %v1316 = vrot.slane %v1303, 1
  %v1317 = vrot.slane %v1304, 1
  %v1318 = vrot.slane %v1303, 5
  %v1319 = vrot.slane %v1304, 5
  %v1320 = vsel %vm215, %v1316, %v1318
  %v1321 = vsel %vm215, %v1317, %v1319
  %1323 = vset.pattern.permute.xlu0 0
  %1324 = vperm.xlu0 %1323, %v1315
  %v1325 = vpop.permute.xlu0 %1324
  %v1327 = vmul.f32 %v1325, %v1320
  %v1328 = vmul.f32 %v1325, %v1321
  %s1329 = scalar_lea.vmem %s4, 208
  %v1330 = vld [vmem:[%s1329] sm:$0xff]
  %v1331 = vrot.slane %v1303, 2
  %v1332 = vrot.slane %v1304, 2
  %v1333 = vrot.slane %v1303, 6
  %v1334 = vrot.slane %v1304, 6
  %v1335 = vsel %vm232, %v1331, %v1333
  %v1336 = vsel %vm232, %v1332, %v1334
  %1338 = vset.pattern.permute.xlu0 0
  %1339 = vperm.xlu0 %1338, %v1330
  %v1340 = vpop.permute.xlu0 %1339
  %v1342 = vmul.f32 %v1340, %v1335
  %v1343 = vmul.f32 %v1340, %v1336
  %s1344 = scalar_lea.vmem %s4, 216
  %v1345 = vld [vmem:[%s1344] sm:$0xff]
  %v1346 = vrot.slane %v1303, 3
  %v1347 = vrot.slane %v1304, 3
  %v1348 = vrot.slane %v1303, 7
  %v1349 = vrot.slane %v1304, 7
  %v1350 = vsel %vm249, %v1346, %v1348
  %v1351 = vsel %vm249, %v1347, %v1349
  %1353 = vset.pattern.permute.xlu0 0
  %1354 = vperm.xlu0 %1353, %v1345
  %v1355 = vpop.permute.xlu0 %1354
  %v1357 = vmul.f32 %v1355, %v1350
  %v1358 = vmul.f32 %v1355, %v1351
  %v1359 = vadd.f32 %v1312, %v1327
  %v1360 = vadd.f32 %v1313, %v1328
  %v1361 = vadd.f32 %v1342, %v1357
  %v1362 = vadd.f32 %v1343, %v1358
  %v1363 = vadd.f32 %v1359, %v1361
  %v1364 = vadd.f32 %v1360, %v1362
  %v1365 = vadd.f32 %v1163, %v1363
  %v1366 = vadd.f32 %v1164, %v1364
  %1367 = vrot.lane.b32.xlu0 %v890, 112
  %v1368 = vpop.permute.xlu0 %1367
  %1369 = vrot.lane.b32.xlu0 %v891, 112
  %v1370 = vpop.permute.xlu0 %1369
  %v1371 = vsel %vm702, %v1368, %v1370
  %v1372 = vsel %vm702, %v1370, %v1368
  %v1373 = vsel %vm707, %v1371, 0.0
  %v1374 = vsel %vm708, %v1372, 0.0
  %s1375 = scalar_lea.vmem %s4, 224
  %v1376 = vld [vmem:[%s1375] sm:$0xff]
  %1378 = vset.pattern.permute.xlu0 0
  %1379 = vperm.xlu0 %1378, %v1376
  %v1380 = vpop.permute.xlu0 %1379
  %v1382 = vmul.f32 %v1380, %v1373
  %v1383 = vmul.f32 %v1380, %v1374
  %s1384 = scalar_lea.vmem %s4, 232
  %v1385 = vld [vmem:[%s1384] sm:$0xff]
  %v1386 = vrot.slane %v1373, 1
  %v1387 = vrot.slane %v1374, 1
  %v1388 = vrot.slane %v1373, 5
  %v1389 = vrot.slane %v1374, 5
  %v1390 = vsel %vm215, %v1386, %v1388
  %v1391 = vsel %vm215, %v1387, %v1389
  %1393 = vset.pattern.permute.xlu0 0
  %1394 = vperm.xlu0 %1393, %v1385
  %v1395 = vpop.permute.xlu0 %1394
  %v1397 = vmul.f32 %v1395, %v1390
  %v1398 = vmul.f32 %v1395, %v1391
  %s1399 = scalar_lea.vmem %s4, 240
  %v1400 = vld [vmem:[%s1399] sm:$0xff]
  %v1401 = vrot.slane %v1373, 2
  %v1402 = vrot.slane %v1374, 2
  %v1403 = vrot.slane %v1373, 6
  %v1404 = vrot.slane %v1374, 6
  %v1405 = vsel %vm232, %v1401, %v1403
  %v1406 = vsel %vm232, %v1402, %v1404
  %1408 = vset.pattern.permute.xlu0 0
  %1409 = vperm.xlu0 %1408, %v1400
  %v1410 = vpop.permute.xlu0 %1409
  %v1412 = vmul.f32 %v1410, %v1405
  %v1413 = vmul.f32 %v1410, %v1406
  %s1414 = scalar_lea.vmem %s4, 248
  %v1415 = vld [vmem:[%s1414] sm:$0xff]
  %v1416 = vrot.slane %v1373, 3
  %v1417 = vrot.slane %v1374, 3
  %v1418 = vrot.slane %v1373, 7
  %v1419 = vrot.slane %v1374, 7
  %v1420 = vsel %vm249, %v1416, %v1418
  %v1421 = vsel %vm249, %v1417, %v1419
  %1423 = vset.pattern.permute.xlu0 0
  %1424 = vperm.xlu0 %1423, %v1415
  %v1425 = vpop.permute.xlu0 %1424
  %v1427 = vmul.f32 %v1425, %v1420
  %v1428 = vmul.f32 %v1425, %v1421
  %v1429 = vadd.f32 %v1382, %v1397
  %v1430 = vadd.f32 %v1383, %v1398
  %v1431 = vadd.f32 %v1412, %v1427
  %v1432 = vadd.f32 %v1413, %v1428
  %v1433 = vadd.f32 %v1429, %v1431
  %v1434 = vadd.f32 %v1430, %v1432
  %v1435 = vadd.f32 %v1225, %v1433
  %v1436 = vadd.f32 %v1226, %v1434
  %1437 = vrot.lane.b32.xlu0 %v890, 111
  %v1438 = vpop.permute.xlu0 %1437
  %1439 = vrot.lane.b32.xlu0 %v891, 111
  %v1440 = vpop.permute.xlu0 %1439
  %v1441 = vsel %vm777, %v1438, %v1440
  %v1442 = vsel %vm777, %v1440, %v1438
  %v1443 = vsel %vm782, %v1441, 0.0
  %v1444 = vsel %vm783, %v1442, 0.0
  %s1445 = scalar_lea.vmem %s4, 256
  %v1446 = vld [vmem:[%s1445] sm:$0xff]
  %1448 = vset.pattern.permute.xlu0 0
  %1449 = vperm.xlu0 %1448, %v1446
  %v1450 = vpop.permute.xlu0 %1449
  %v1452 = vmul.f32 %v1450, %v1443
  %v1453 = vmul.f32 %v1450, %v1444
  %s1454 = scalar_lea.vmem %s4, 264
  %v1455 = vld [vmem:[%s1454] sm:$0xff]
  %v1456 = vrot.slane %v1443, 1
  %v1457 = vrot.slane %v1444, 1
  %v1458 = vrot.slane %v1443, 5
  %v1459 = vrot.slane %v1444, 5
  %v1460 = vsel %vm215, %v1456, %v1458
  %v1461 = vsel %vm215, %v1457, %v1459
  %1463 = vset.pattern.permute.xlu0 0
  %1464 = vperm.xlu0 %1463, %v1455
  %v1465 = vpop.permute.xlu0 %1464
  %v1467 = vmul.f32 %v1465, %v1460
  %v1468 = vmul.f32 %v1465, %v1461
  %s1469 = scalar_lea.vmem %s4, 272
  %v1470 = vld [vmem:[%s1469] sm:$0xff]
  %v1471 = vrot.slane %v1443, 2
  %v1472 = vrot.slane %v1444, 2
  %v1473 = vrot.slane %v1443, 6
  %v1474 = vrot.slane %v1444, 6
  %v1475 = vsel %vm232, %v1471, %v1473
  %v1476 = vsel %vm232, %v1472, %v1474
  %1478 = vset.pattern.permute.xlu0 0
  %1479 = vperm.xlu0 %1478, %v1470
  %v1480 = vpop.permute.xlu0 %1479
  %v1482 = vmul.f32 %v1480, %v1475
  %v1483 = vmul.f32 %v1480, %v1476
  %s1484 = scalar_lea.vmem %s4, 280
  %v1485 = vld [vmem:[%s1484] sm:$0xff]
  %v1486 = vrot.slane %v1443, 3
  %v1487 = vrot.slane %v1444, 3
  %v1488 = vrot.slane %v1443, 7
  %v1489 = vrot.slane %v1444, 7
  %v1490 = vsel %vm249, %v1486, %v1488
  %v1491 = vsel %vm249, %v1487, %v1489
  %1493 = vset.pattern.permute.xlu0 0
  %1494 = vperm.xlu0 %1493, %v1485
  %v1495 = vpop.permute.xlu0 %1494
  %v1497 = vmul.f32 %v1495, %v1490
  %v1498 = vmul.f32 %v1495, %v1491
  %v1499 = vadd.f32 %v1452, %v1467
  %v1500 = vadd.f32 %v1453, %v1468
  %v1501 = vadd.f32 %v1482, %v1497
  %v1502 = vadd.f32 %v1483, %v1498
  %v1503 = vadd.f32 %v1499, %v1501
  %v1504 = vadd.f32 %v1500, %v1502
  %v1505 = vadd.f32 %v1295, %v1503
  %v1506 = vadd.f32 %v1296, %v1504
  %v1507 = vadd.f32 %v1365, %v1435
  %v1508 = vadd.f32 %v1366, %v1436
  %v1509 = vadd.f32 %v1507, %v1505
  %v1510 = vadd.f32 %v1508, %v1506
  %v1511 = vmul.f32 %v1509, %v1509
  %v1512 = vmul.f32 %v1510, %v1510
  %v1513 = vadd.f32 %v1509, %v1510
  %1514 = vadd.xlane.f32.xlu0 %v1513
  %v1515 = vpop.xlane.xlu0 %1514
  %v1516 = vadd.f32 %v1511, %v1512
  %1517 = vadd.xlane.f32.xlu0 %v1516
  %v1518 = vpop.xlane.xlu0 %1517
  %v1519 = vrot.slane %v1515, 4
  %v1520 = vadd.f32 %v1515, %v1519
  %v1521 = vrot.slane %v1518, 4
  %v1522 = vadd.f32 %v1518, %v1521
  %v1523 = vmul.f32 %v1520, 0.001953125
  %v1524 = vmul.f32 %v1522, 0.001953125
  %v1525 = vmul.f32 %v1523, %v1523
  %v1526 = vsub.f32 %v1524, %v1525
  %v1527 = vmax.f32 %v1526, 0.0
  %v1528 = vld [vmem:[%s5] sm:$0xff]
  %v1529 = vadd.f32 %v1527, 1e-05
  %v1530 = vrsqrt.pop %v1529
  %v1531 = vmul.f32 %v1528, %v1530
  %v1532 = vld [vmem:[%s6] sm:$0xff]
  %v1533 = vmul.f32 %v1523, %v1531
  %v1534 = vsub.f32 %v1532, %v1533
  %1536 = vset.pattern.permute.xlu0 0
  %1537 = vperm.xlu0 %1536, %v1531
  %v1538 = vpop.permute.xlu0 %1537
  %v1540 = vmul.f32 %v1509, %v1538
  %v1541 = vmul.f32 %v1510, %v1538
  %1543 = vset.pattern.permute.xlu0 0
  %1544 = vperm.xlu0 %1543, %v1534
  %v1545 = vpop.permute.xlu0 %1544
  %v1547 = vadd.f32 %v1540, %v1545
  %v1548 = vadd.f32 %v1541, %v1545
  %v1549 = vadd.f32 %v1547, %v185
  %v1550 = vadd.f32 %v1548, %v186
  %v1551 = vmax.f32 %v1549, 0.0
  %v1552 = vmax.f32 %v1550, 0.0
  %1553 = vst [vmem:[%s7] sm:$0xff] %v1551
  %1554 = vst [vmem:[%s7 + $0x8] sm:$0xff] %v1552
  // Predicated region
  $region30: #{resnet_block_encoder.1} parent=0 // pred_check
    _
  $region31: #{resnet_block_encoder.1} parent=0 // pred_check_branch
    %1556 = sbr.rel (0) target = $region33
  $region32: #{resnet_block_encoder.1} parent=0 // pred_region
    _
  $region33: #{resnet_block_encoder.1} parent=0 // pred_fallthru
    _
  // Predicated region
  $region34: #{resnet_block_encoder.1} parent=0 // pred_check
    _
  $region35: #{resnet_block_encoder.1} parent=0 // pred_check_branch
    %1558 = sbr.rel (0) target = $region37
  $region36: #{resnet_block_encoder.1} parent=0 // pred_region
    _
  $region37: #{resnet_block_encoder.1} parent=0 // pred_fallthru
    _

</llo_original>
